<compile_context>
chip_gen: v5e
topology: v5e:2x2
jax: 0.10.0
libtpu: 0.0.40
codegen_flags: <defaults>
</compile_context>

<pallas_src>
import math
import functools

import jax
import jax.numpy as jnp
from jax.experimental import pallas as pl
from jax.experimental.pallas import tpu as pltpu


# ----------------------------- kernel helpers ------------------------------

def _layernorm(x, gamma, beta, eps=1e-5):
    # x: (R, C) f32, gamma/beta: (C,) f32
    mu = jnp.mean(x, axis=-1, keepdims=True)
    var = jnp.mean((x - mu) ** 2, axis=-1, keepdims=True)
    return (x - mu) * jax.lax.rsqrt(var + eps) * gamma + beta


def _gelu_exact(x):
    # nn.GELU default = exact (erf) form
    return 0.5 * x * (1.0 + jax.lax.erf(x * (1.0 / math.sqrt(2.0))))


# ------------------------------- the kernel --------------------------------

def block_kernel(x_ref,
                 ln1_g_ref, ln1_b_ref,
                 qkv_w_ref, qkv_b_ref,
                 proj_w_ref, proj_b_ref,
                 ln2_g_ref, ln2_b_ref,
                 fc1_w_ref, fc1_b_ref,
                 fc2_w_ref, fc2_b_ref,
                 o_ref,
                 *, num_heads):
    bt, S, C = x_ref.shape                  # batch-tile, seq, channels
    nh = num_heads
    hd = C // nh
    cdt = qkv_w_ref.dtype                   # matmul operand dtype (bf16 or f32)
    approx_rcp = cdt != jnp.float32         # use EUP approx reciprocal in fast path

    # ---- load + flatten rows: dense matmuls see bt*S rows on the MXU ----
    x = x_ref[...].astype(jnp.float32).reshape(bt * S, C)
    shortcut = x

    # ---- norm1 (f32 VPU math) ----
    xn = _layernorm(x, ln1_g_ref[0], ln1_b_ref[0])

    # ---- fused qkv projection (1/sqrt(hd) already folded into q cols) ----
    qkv = jnp.dot(xn.astype(cdt), qkv_w_ref[...],
                  preferred_element_type=jnp.float32) + qkv_b_ref[0]

    # ---- split heads into a single (bt*nh, S, hd) batch (no 4-D transpose) ----
    def split_heads(base):
        parts = []
        for b in range(bt):
            rows = qkv[b * S:(b + 1) * S, :]            # sublane-aligned slice
            for h in range(nh):
                parts.append(
                    rows[:, base + h * hd: base + (h + 1) * hd].reshape(1, S, hd))
        return jnp.concatenate(parts, axis=0).astype(cdt)

    q3 = split_heads(0)          # (bt*nh, S, hd), already pre-scaled
    k3 = split_heads(C)
    v3 = split_heads(2 * C)

    # ---- batched scaled-dot-product attention (single MXU-driving op each) ----
    s = jnp.einsum('bqd,bkd->bqk', q3, k3,
                   preferred_element_type=jnp.float32)          # (bt*nh, S, S)
    m = jnp.max(s, axis=-1, keepdims=True)
    p = jnp.exp(s - m)
    l = jnp.sum(p, axis=-1, keepdims=True)
    p = p * pl.reciprocal(l, approx=approx_rcp)
    o3 = jnp.einsum('bqk,bkd->bqd', p.astype(cdt), v3,
                    preferred_element_type=jnp.float32)         # (bt*nh, S, hd)

    # ---- recombine heads back to (bt*S, C) ----
    rows_out = []
    for b in range(bt):
        heads_b = [o3[b * nh + h] for h in range(nh)]           # (S, hd) each
        rows_out.append(jnp.concatenate(heads_b, axis=-1))      # (S, C)
    attn = jnp.concatenate(rows_out, axis=0)                    # (bt*S, C)

    # ---- output projection ----
    attn = jnp.dot(attn.astype(cdt), proj_w_ref[...],
                   preferred_element_type=jnp.float32) + proj_b_ref[0]

    # ---- residual 1 ----
    x1 = shortcut + attn

    # ---- norm2 + MLP (linear -> GELU -> linear), f32 elementwise ----
    xn2 = _layernorm(x1, ln2_g_ref[0], ln2_b_ref[0])
    h1 = jnp.dot(xn2.astype(cdt), fc1_w_ref[...],
                 preferred_element_type=jnp.float32) + fc1_b_ref[0]
    h1 = _gelu_exact(h1)
    h2 = jnp.dot(h1.astype(cdt), fc2_w_ref[...],
                 preferred_element_type=jnp.float32) + fc2_b_ref[0]

    # ---- residual 2 ----
    o_ref[...] = (x1 + h2).reshape(bt, S, C).astype(o_ref.dtype)


# ------------------------------- the wrapper --------------------------------

def vit_block_forward(x, params, num_heads, compute_dtype=jnp.bfloat16):
    """x: (B, H, W, C) float32. Returns (B, H, W, C).

    compute_dtype controls the MXU operand precision (weights + casted
    activations); accumulation and all elementwise math stay float32.
    """
    B, H, W, C = x.shape
    S = H * W
    hidden = params["fc1_w"].shape[1]
    nh = num_heads
    hd = C // nh
    cdt = jnp.dtype(compute_dtype)

    x_tok = x.reshape(B, S, C)

    # Batch-tile: pack several batch elements per grid step so the dense matmuls
    # see ~256-512 rows and the ~0.35us/step overhead amortizes.
    target_rows = 512
    bt = max(1, min(B, target_rows // max(S, 1)))
    while B % bt:
        bt -= 1
    grid = (B // bt,)

    # Fold the 1/sqrt(head_dim) attention scale into the q columns of qkv.
    scale = hd ** (-0.5)
    col_scale = jnp.concatenate([jnp.full((C,), scale, jnp.float32),
                                 jnp.ones((2 * C,), jnp.float32)])
    qkv_w = (params["qkv_w"].astype(jnp.float32) * col_scale[None, :]).astype(cdt)
    qkv_b = (params["qkv_b"].astype(jnp.float32) * col_scale).reshape(1, 3 * C)

    # Weights in compute dtype (half the VMEM/DMA in bf16); biases/LN params f32.
    p = {
        "ln1_g": params["ln1_g"].reshape(1, C).astype(jnp.float32),
        "ln1_b": params["ln1_b"].reshape(1, C).astype(jnp.float32),
        "qkv_w": qkv_w,                                        # (C, 3C), pre-scaled
        "qkv_b": qkv_b,                                        # (1, 3C) f32
        "proj_w": params["proj_w"].astype(cdt),                # (C, C)
        "proj_b": params["proj_b"].reshape(1, C).astype(jnp.float32),
        "ln2_g": params["ln2_g"].reshape(1, C).astype(jnp.float32),
        "ln2_b": params["ln2_b"].reshape(1, C).astype(jnp.float32),
        "fc1_w": params["fc1_w"].astype(cdt),                  # (C, hidden)
        "fc1_b": params["fc1_b"].reshape(1, hidden).astype(jnp.float32),
        "fc2_w": params["fc2_w"].astype(cdt),                  # (hidden, C)
        "fc2_b": params["fc2_b"].reshape(1, C).astype(jnp.float32),
    }
    order = ["ln1_g", "ln1_b", "qkv_w", "qkv_b", "proj_w", "proj_b",
             "ln2_g", "ln2_b", "fc1_w", "fc1_b", "fc2_w", "fc2_b"]

    def full_spec(arr):
        return pl.BlockSpec(arr.shape, lambda i: (0, 0))

    grid_spec = pltpu.PrefetchScalarGridSpec(
        num_scalar_prefetch=0,
        grid=grid,
        in_specs=[pl.BlockSpec((bt, S, C), lambda i: (i, 0, 0))] +
                 [full_spec(p[name]) for name in order],
        out_specs=pl.BlockSpec((bt, S, C), lambda i: (i, 0, 0)),
    )

    # Advisory roofline for XLA's scheduler.
    flops = B * (2 * S * C * (3 * C + C + 2 * hidden) + 4 * S * S * C)
    transcendentals = B * (nh * S * S + S * hidden)
    param_bytes = sum(int(v.size) * v.dtype.itemsize for v in p.values())
    bytes_accessed = 2 * B * S * C * x.dtype.itemsize + param_bytes
    cost = pl.CostEstimate(flops=flops, transcendentals=transcendentals,
                           bytes_accessed=bytes_accessed)

    out = pl.pallas_call(
        functools.partial(block_kernel, num_heads=num_heads),
        out_shape=jax.ShapeDtypeStruct((B, S, C), x.dtype),
        grid_spec=grid_spec,
        compiler_params=pltpu.CompilerParams(
            dimension_semantics=("parallel",)),
        cost_estimate=cost,
    )(x_tok, *[p[name] for name in order])

    return out.reshape(B, H, W, C)


# ----------------------------- pure-JAX reference ----------------------------

def vit_block_reference(x, params, num_heads):
    B, H, W, C = x.shape
    S = H * W
    hd = C // num_heads
    xt = x.reshape(B, S, C)

    def ln(z, g, b):
        mu = jnp.mean(z, axis=-1, keepdims=True)
        var = jnp.mean((z - mu) ** 2, axis=-1, keepdims=True)
        return (z - mu) / jnp.sqrt(var + 1e-5) * g + b

    shortcut = xt
    xn = ln(xt, params["ln1_g"], params["ln1_b"])
    qkv = xn @ params["qkv_w"] + params["qkv_b"]                  # (B, S, 3C)
    qkv = qkv.reshape(B, S, 3, num_heads, hd).transpose(2, 0, 3, 1, 4)
    q, k, v = qkv[0], qkv[1], qkv[2]                              # (B, nh, S, hd)
    s = jnp.einsum("bhqd,bhkd->bhqk", q, k) / math.sqrt(hd)
    pm = jax.nn.softmax(s, axis=-1)
    a = jnp.einsum("bhqk,bhkd->bhqd", pm, v)                      # (B, nh, S, hd)
    a = a.transpose(0, 2, 1, 3).reshape(B, S, C)
    a = a @ params["proj_w"] + params["proj_b"]
    x1 = shortcut + a
    xn2 = ln(x1, params["ln2_g"], params["ln2_b"])
    h1 = xn2 @ params["fc1_w"] + params["fc1_b"]
    h1 = 0.5 * h1 * (1.0 + jax.lax.erf(h1 / math.sqrt(2.0)))
    h2 = h1 @ params["fc2_w"] + params["fc2_b"]
    return (x1 + h2).reshape(B, H, W, C)


# ----------------------------------- main ------------------------------------

if __name__ == "__main__":
    B, H, W = 2, 8, 8
    dim = 32
    num_heads = 4
    mlp_ratio = 4.0
    hidden = int(dim * mlp_ratio)

    key = jax.random.PRNGKey(0)
    ks = jax.random.split(key, 8)

    x = jax.random.normal(ks[0], (B, H, W, dim), dtype=jnp.float32)

    params = {
        "ln1_g": jnp.ones((dim,), jnp.float32),
        "ln1_b": jnp.zeros((dim,), jnp.float32),
        "qkv_w": 0.05 * jax.random.normal(ks[1], (dim, 3 * dim), jnp.float32),
        "qkv_b": 0.01 * jax.random.normal(ks[2], (3 * dim,), jnp.float32),
        "proj_w": 0.05 * jax.random.normal(ks[3], (dim, dim), jnp.float32),
        "proj_b": 0.01 * jax.random.normal(ks[4], (dim,), jnp.float32),
        "ln2_g": jnp.ones((dim,), jnp.float32),
        "ln2_b": jnp.zeros((dim,), jnp.float32),
        "fc1_w": 0.05 * jax.random.normal(ks[5], (dim, hidden), jnp.float32),
        "fc1_b": 0.01 * jax.random.normal(ks[6], (hidden,), jnp.float32),
        "fc2_w": 0.05 * jax.random.normal(ks[7], (hidden, dim), jnp.float32),
        "fc2_b": jnp.zeros((dim,), jnp.float32),
    }

    ref = vit_block_reference(x, params, num_heads)

    # Exact path: f32 matmul operands, tight tolerance vs. the reference.
    out_f32 = jax.block_until_ready(
        vit_block_forward(x, params, num_heads, compute_dtype=jnp.float32))
    assert out_f32.shape == (B, H, W, dim)
    assert jnp.allclose(out_f32, ref, atol=1e-4, rtol=1e-4), (
        f"f32 max abs err {jnp.max(jnp.abs(out_f32 - ref))}")

    # Fast path: bf16 matmul operands with f32 accumulation (looser tolerance).
    out_bf16 = jax.block_until_ready(
        vit_block_forward(x, params, num_heads, compute_dtype=jnp.bfloat16))
    assert out_bf16.shape == (B, H, W, dim)
    assert jnp.allclose(out_bf16, ref, atol=3e-2, rtol=3e-2), (
        f"bf16 max abs err {jnp.max(jnp.abs(out_bf16 - ref))}")

    print("KERNEL_OK")
</pallas_src>

<mosaic_0001>
module attributes {stable_mosaic.version = 11 : i64} {
  func.func @block_kernel(%arg0: i32, %arg1: memref<2x64x32xf32, #tpu.memory_space<vmem>>, %arg2: memref<1x32xf32, #tpu.memory_space<vmem>>, %arg3: memref<1x32xf32, #tpu.memory_space<vmem>>, %arg4: memref<32x96xf32, #tpu.memory_space<vmem>>, %arg5: memref<1x96xf32, #tpu.memory_space<vmem>>, %arg6: memref<32x32xf32, #tpu.memory_space<vmem>>, %arg7: memref<1x32xf32, #tpu.memory_space<vmem>>, %arg8: memref<1x32xf32, #tpu.memory_space<vmem>>, %arg9: memref<1x32xf32, #tpu.memory_space<vmem>>, %arg10: memref<32x128xf32, #tpu.memory_space<vmem>>, %arg11: memref<1x128xf32, #tpu.memory_space<vmem>>, %arg12: memref<128x32xf32, #tpu.memory_space<vmem>>, %arg13: memref<1x32xf32, #tpu.memory_space<vmem>>, %arg14: memref<2x64x32xf32, #tpu.memory_space<vmem>>) attributes {dimension_semantics = [#tpu.dimension_semantics<parallel>], iteration_bounds = array<i64: 1>, scalar_prefetch = 0 : i64, scratch_operands = 0 : i64, tpu.core_type = #tpu.core_type<tc>, window_params = [{transform_indices = @transform_0, window_bounds = array<i64: 2, 64, 32>}, {pipeline_mode = #tpu.pipeline_mode<synchronous>, transform_indices = @transform_1, window_bounds = array<i64: 1, 32>}, {pipeline_mode = #tpu.pipeline_mode<synchronous>, transform_indices = @transform_2, window_bounds = array<i64: 1, 32>}, {pipeline_mode = #tpu.pipeline_mode<synchronous>, transform_indices = @transform_3, window_bounds = array<i64: 32, 96>}, {pipeline_mode = #tpu.pipeline_mode<synchronous>, transform_indices = @transform_4, window_bounds = array<i64: 1, 96>}, {pipeline_mode = #tpu.pipeline_mode<synchronous>, transform_indices = @transform_5, window_bounds = array<i64: 32, 32>}, {pipeline_mode = #tpu.pipeline_mode<synchronous>, transform_indices = @transform_6, window_bounds = array<i64: 1, 32>}, {pipeline_mode = #tpu.pipeline_mode<synchronous>, transform_indices = @transform_7, window_bounds = array<i64: 1, 32>}, {pipeline_mode = #tpu.pipeline_mode<synchronous>, transform_indices = @transform_8, window_bounds = array<i64: 1, 32>}, {pipeline_mode = #tpu.pipeline_mode<synchronous>, transform_indices = @transform_9, window_bounds = array<i64: 32, 128>}, {pipeline_mode = #tpu.pipeline_mode<synchronous>, transform_indices = @transform_10, window_bounds = array<i64: 1, 128>}, {pipeline_mode = #tpu.pipeline_mode<synchronous>, transform_indices = @transform_11, window_bounds = array<i64: 128, 32>}, {pipeline_mode = #tpu.pipeline_mode<synchronous>, transform_indices = @transform_12, window_bounds = array<i64: 1, 32>}, {transform_indices = @transform_13, window_bounds = array<i64: 2, 64, 32>}]} {
    %c0 = arith.constant 0 : index
    %c0_0 = arith.constant 0 : index
    %c0_1 = arith.constant 0 : index
    %0 = vector.load %arg1[%c0, %c0_0, %c0_1] : memref<2x64x32xf32, #tpu.memory_space<vmem>>, vector<2x64x32xf32>
    %1 = vector.shape_cast %0 : vector<2x64x32xf32> to vector<128x32xf32>
    %c0_2 = arith.constant 0 : index
    %c0_3 = arith.constant 0 : index
    %2 = vector.load %arg2[%c0_2, %c0_3] : memref<1x32xf32, #tpu.memory_space<vmem>>, vector<1x32xf32>
    %3 = vector.shape_cast %2 : vector<1x32xf32> to vector<32xf32>
    %c0_4 = arith.constant 0 : index
    %c0_5 = arith.constant 0 : index
    %4 = vector.load %arg3[%c0_4, %c0_5] : memref<1x32xf32, #tpu.memory_space<vmem>>, vector<1x32xf32>
    %5 = vector.shape_cast %4 : vector<1x32xf32> to vector<32xf32>
    %cst = arith.constant dense<0.000000e+00> : vector<128xf32>
    %6 = vector.multi_reduction <add>, %1, %cst [1] : vector<128x32xf32> to vector<128xf32>
    %7 = vector.shape_cast %6 : vector<128xf32> to vector<128x1xf32>
    %cst_6 = arith.constant 3.200000e+01 : f32
    %8 = vector.broadcast %cst_6 : f32 to vector<128x1xf32>
    %9 = arith.divf %7, %8 : vector<128x1xf32>
    %10 = vector.broadcast %9 : vector<128x1xf32> to vector<128x32xf32>
    %11 = arith.subf %1, %10 : vector<128x32xf32>
    %12 = arith.mulf %11, %11 : vector<128x32xf32>
    %cst_7 = arith.constant dense<0.000000e+00> : vector<128xf32>
    %13 = vector.multi_reduction <add>, %12, %cst_7 [1] : vector<128x32xf32> to vector<128xf32>
    %14 = vector.shape_cast %13 : vector<128xf32> to vector<128x1xf32>
    %cst_8 = arith.constant 3.200000e+01 : f32
    %15 = vector.broadcast %cst_8 : f32 to vector<128x1xf32>
    %16 = arith.divf %14, %15 : vector<128x1xf32>
    %17 = vector.broadcast %9 : vector<128x1xf32> to vector<128x32xf32>
    %18 = arith.subf %1, %17 : vector<128x32xf32>
    %cst_9 = arith.constant 9.99999974E-6 : f32
    %19 = vector.broadcast %cst_9 : f32 to vector<128x1xf32>
    %20 = arith.addf %16, %19 : vector<128x1xf32>
    %21 = math.rsqrt %20 : vector<128x1xf32>
    %22 = vector.broadcast %21 : vector<128x1xf32> to vector<128x32xf32>
    %23 = arith.mulf %18, %22 : vector<128x32xf32>
    %24 = vector.shape_cast %3 : vector<32xf32> to vector<1x32xf32>
    %25 = vector.broadcast %24 : vector<1x32xf32> to vector<128x32xf32>
    %26 = arith.mulf %23, %25 : vector<128x32xf32>
    %27 = vector.shape_cast %5 : vector<32xf32> to vector<1x32xf32>
    %28 = vector.broadcast %27 : vector<1x32xf32> to vector<128x32xf32>
    %29 = arith.addf %26, %28 : vector<128x32xf32>
    %c0_10 = arith.constant 0 : index
    %c0_11 = arith.constant 0 : index
    %30 = vector.load %arg4[%c0_10, %c0_11] : memref<32x96xf32, #tpu.memory_space<vmem>>, vector<32x96xf32>
    %cst_12 = arith.constant dense<0.000000e+00> : vector<128x96xf32>
    %31 = tpu.matmul %29, %30, %cst_12 {dimension_numbers = #tpu.dot_dimension_numbers<[1], [0], [0], [1], [0, 0, 1, 1], [], []>} : vector<128x32xf32>, vector<32x96xf32>, vector<128x96xf32> -> vector<128x96xf32>
    %c0_13 = arith.constant 0 : index
    %c0_14 = arith.constant 0 : index
    %32 = vector.load %arg5[%c0_13, %c0_14] : memref<1x96xf32, #tpu.memory_space<vmem>>, vector<1x96xf32>
    %33 = vector.shape_cast %32 : vector<1x96xf32> to vector<96xf32>
    %34 = vector.shape_cast %33 : vector<96xf32> to vector<1x96xf32>
    %35 = vector.broadcast %34 : vector<1x96xf32> to vector<128x96xf32>
    %36 = arith.addf %31, %35 : vector<128x96xf32>
    %37 = vector.extract_strided_slice %36 {offsets = [0, 0], sizes = [64, 96], strides = [1, 1]} : vector<128x96xf32> to vector<64x96xf32>
    %38 = vector.extract_strided_slice %37 {offsets = [0, 0], sizes = [64, 8], strides = [1, 1]} : vector<64x96xf32> to vector<64x8xf32>
    %39 = vector.shape_cast %38 : vector<64x8xf32> to vector<1x64x8xf32>
    %40 = vector.extract_strided_slice %37 {offsets = [0, 8], sizes = [64, 8], strides = [1, 1]} : vector<64x96xf32> to vector<64x8xf32>
    %41 = vector.shape_cast %40 : vector<64x8xf32> to vector<1x64x8xf32>
    %42 = vector.extract_strided_slice %37 {offsets = [0, 16], sizes = [64, 8], strides = [1, 1]} : vector<64x96xf32> to vector<64x8xf32>
    %43 = vector.shape_cast %42 : vector<64x8xf32> to vector<1x64x8xf32>
    %44 = vector.extract_strided_slice %37 {offsets = [0, 24], sizes = [64, 8], strides = [1, 1]} : vector<64x96xf32> to vector<64x8xf32>
    %45 = vector.shape_cast %44 : vector<64x8xf32> to vector<1x64x8xf32>
    %46 = vector.extract_strided_slice %36 {offsets = [64, 0], sizes = [64, 96], strides = [1, 1]} : vector<128x96xf32> to vector<64x96xf32>
    %47 = vector.extract_strided_slice %46 {offsets = [0, 0], sizes = [64, 8], strides = [1, 1]} : vector<64x96xf32> to vector<64x8xf32>
    %48 = vector.shape_cast %47 : vector<64x8xf32> to vector<1x64x8xf32>
    %49 = vector.extract_strided_slice %46 {offsets = [0, 8], sizes = [64, 8], strides = [1, 1]} : vector<64x96xf32> to vector<64x8xf32>
    %50 = vector.shape_cast %49 : vector<64x8xf32> to vector<1x64x8xf32>
    %51 = vector.extract_strided_slice %46 {offsets = [0, 16], sizes = [64, 8], strides = [1, 1]} : vector<64x96xf32> to vector<64x8xf32>
    %52 = vector.shape_cast %51 : vector<64x8xf32> to vector<1x64x8xf32>
    %53 = vector.extract_strided_slice %46 {offsets = [0, 24], sizes = [64, 8], strides = [1, 1]} : vector<64x96xf32> to vector<64x8xf32>
    %54 = vector.shape_cast %53 : vector<64x8xf32> to vector<1x64x8xf32>
    %55 = tpu.concatenate %39, %41, %43, %45, %48, %50, %52, %54 in 0 : vector<1x64x8xf32>, vector<1x64x8xf32>, vector<1x64x8xf32>, vector<1x64x8xf32>, vector<1x64x8xf32>, vector<1x64x8xf32>, vector<1x64x8xf32>, vector<1x64x8xf32> -> vector<8x64x8xf32>
    %56 = vector.extract_strided_slice %36 {offsets = [0, 0], sizes = [64, 96], strides = [1, 1]} : vector<128x96xf32> to vector<64x96xf32>
    %57 = vector.extract_strided_slice %56 {offsets = [0, 32], sizes = [64, 8], strides = [1, 1]} : vector<64x96xf32> to vector<64x8xf32>
    %58 = vector.shape_cast %57 : vector<64x8xf32> to vector<1x64x8xf32>
    %59 = vector.extract_strided_slice %56 {offsets = [0, 40], sizes = [64, 8], strides = [1, 1]} : vector<64x96xf32> to vector<64x8xf32>
    %60 = vector.shape_cast %59 : vector<64x8xf32> to vector<1x64x8xf32>
    %61 = vector.extract_strided_slice %56 {offsets = [0, 48], sizes = [64, 8], strides = [1, 1]} : vector<64x96xf32> to vector<64x8xf32>
    %62 = vector.shape_cast %61 : vector<64x8xf32> to vector<1x64x8xf32>
    %63 = vector.extract_strided_slice %56 {offsets = [0, 56], sizes = [64, 8], strides = [1, 1]} : vector<64x96xf32> to vector<64x8xf32>
    %64 = vector.shape_cast %63 : vector<64x8xf32> to vector<1x64x8xf32>
    %65 = vector.extract_strided_slice %36 {offsets = [64, 0], sizes = [64, 96], strides = [1, 1]} : vector<128x96xf32> to vector<64x96xf32>
    %66 = vector.extract_strided_slice %65 {offsets = [0, 32], sizes = [64, 8], strides = [1, 1]} : vector<64x96xf32> to vector<64x8xf32>
    %67 = vector.shape_cast %66 : vector<64x8xf32> to vector<1x64x8xf32>
    %68 = vector.extract_strided_slice %65 {offsets = [0, 40], sizes = [64, 8], strides = [1, 1]} : vector<64x96xf32> to vector<64x8xf32>
    %69 = vector.shape_cast %68 : vector<64x8xf32> to vector<1x64x8xf32>
    %70 = vector.extract_strided_slice %65 {offsets = [0, 48], sizes = [64, 8], strides = [1, 1]} : vector<64x96xf32> to vector<64x8xf32>
    %71 = vector.shape_cast %70 : vector<64x8xf32> to vector<1x64x8xf32>
    %72 = vector.extract_strided_slice %65 {offsets = [0, 56], sizes = [64, 8], strides = [1, 1]} : vector<64x96xf32> to vector<64x8xf32>
    %73 = vector.shape_cast %72 : vector<64x8xf32> to vector<1x64x8xf32>
    %74 = tpu.concatenate %58, %60, %62, %64, %67, %69, %71, %73 in 0 : vector<1x64x8xf32>, vector<1x64x8xf32>, vector<1x64x8xf32>, vector<1x64x8xf32>, vector<1x64x8xf32>, vector<1x64x8xf32>, vector<1x64x8xf32>, vector<1x64x8xf32> -> vector<8x64x8xf32>
    %75 = vector.extract_strided_slice %36 {offsets = [0, 0], sizes = [64, 96], strides = [1, 1]} : vector<128x96xf32> to vector<64x96xf32>
    %76 = vector.extract_strided_slice %75 {offsets = [0, 64], sizes = [64, 8], strides = [1, 1]} : vector<64x96xf32> to vector<64x8xf32>
    %77 = vector.shape_cast %76 : vector<64x8xf32> to vector<1x64x8xf32>
    %78 = vector.extract_strided_slice %75 {offsets = [0, 72], sizes = [64, 8], strides = [1, 1]} : vector<64x96xf32> to vector<64x8xf32>
    %79 = vector.shape_cast %78 : vector<64x8xf32> to vector<1x64x8xf32>
    %80 = vector.extract_strided_slice %75 {offsets = [0, 80], sizes = [64, 8], strides = [1, 1]} : vector<64x96xf32> to vector<64x8xf32>
    %81 = vector.shape_cast %80 : vector<64x8xf32> to vector<1x64x8xf32>
    %82 = vector.extract_strided_slice %75 {offsets = [0, 88], sizes = [64, 8], strides = [1, 1]} : vector<64x96xf32> to vector<64x8xf32>
    %83 = vector.shape_cast %82 : vector<64x8xf32> to vector<1x64x8xf32>
    %84 = vector.extract_strided_slice %36 {offsets = [64, 0], sizes = [64, 96], strides = [1, 1]} : vector<128x96xf32> to vector<64x96xf32>
    %85 = vector.extract_strided_slice %84 {offsets = [0, 64], sizes = [64, 8], strides = [1, 1]} : vector<64x96xf32> to vector<64x8xf32>
    %86 = vector.shape_cast %85 : vector<64x8xf32> to vector<1x64x8xf32>
    %87 = vector.extract_strided_slice %84 {offsets = [0, 72], sizes = [64, 8], strides = [1, 1]} : vector<64x96xf32> to vector<64x8xf32>
    %88 = vector.shape_cast %87 : vector<64x8xf32> to vector<1x64x8xf32>
    %89 = vector.extract_strided_slice %84 {offsets = [0, 80], sizes = [64, 8], strides = [1, 1]} : vector<64x96xf32> to vector<64x8xf32>
    %90 = vector.shape_cast %89 : vector<64x8xf32> to vector<1x64x8xf32>
    %91 = vector.extract_strided_slice %84 {offsets = [0, 88], sizes = [64, 8], strides = [1, 1]} : vector<64x96xf32> to vector<64x8xf32>
    %92 = vector.shape_cast %91 : vector<64x8xf32> to vector<1x64x8xf32>
    %93 = tpu.concatenate %77, %79, %81, %83, %86, %88, %90, %92 in 0 : vector<1x64x8xf32>, vector<1x64x8xf32>, vector<1x64x8xf32>, vector<1x64x8xf32>, vector<1x64x8xf32>, vector<1x64x8xf32>, vector<1x64x8xf32>, vector<1x64x8xf32> -> vector<8x64x8xf32>
    "tpu.trace_start"() <{level = 10 : i32, message = "bqd,bkd->bqk"}> : () -> ()
    %cst_15 = arith.constant dense<0.000000e+00> : vector<8x64x64xf32>
    %94 = tpu.matmul %55, %74, %cst_15 {dimension_numbers = #tpu.dot_dimension_numbers<[2], [2], [1], [1], [0, 0, 0, 1, 1, 1], [0], [0]>} : vector<8x64x8xf32>, vector<8x64x8xf32>, vector<8x64x64xf32> -> vector<8x64x64xf32>
    "tpu.trace_stop"() : () -> ()
    %cst_16 = arith.constant dense<0xFF800000> : vector<8x64xf32>
    %95 = vector.multi_reduction <maximumf>, %94, %cst_16 [2] : vector<8x64x64xf32> to vector<8x64xf32>
    %96 = vector.shape_cast %95 : vector<8x64xf32> to vector<8x64x1xf32>
    %97 = vector.broadcast %96 : vector<8x64x1xf32> to vector<8x64x64xf32>
    %98 = arith.subf %94, %97 : vector<8x64x64xf32>
    %99 = math.exp %98 : vector<8x64x64xf32>
    %cst_17 = arith.constant dense<0.000000e+00> : vector<8x64xf32>
    %100 = vector.multi_reduction <add>, %99, %cst_17 [2] : vector<8x64x64xf32> to vector<8x64xf32>
    %101 = vector.shape_cast %100 : vector<8x64xf32> to vector<8x64x1xf32>
    %102 = tpu.reciprocal %101 : vector<8x64x1xf32> -> vector<8x64x1xf32>
    %103 = vector.broadcast %102 : vector<8x64x1xf32> to vector<8x64x64xf32>
    %104 = arith.mulf %99, %103 : vector<8x64x64xf32>
    "tpu.trace_start"() <{level = 10 : i32, message = "bqk,bkd->bqd"}> : () -> ()
    %cst_18 = arith.constant dense<0.000000e+00> : vector<8x64x8xf32>
    %105 = tpu.matmul %104, %93, %cst_18 {dimension_numbers = #tpu.dot_dimension_numbers<[2], [1], [1], [2], [0, 0, 0, 1, 1, 2], [0], [0]>} : vector<8x64x64xf32>, vector<8x64x8xf32>, vector<8x64x8xf32> -> vector<8x64x8xf32>
    "tpu.trace_stop"() : () -> ()
    %106 = vector.extract_strided_slice %105 {offsets = [0, 0, 0], sizes = [1, 64, 8], strides = [1, 1, 1]} : vector<8x64x8xf32> to vector<1x64x8xf32>
    %107 = vector.shape_cast %106 : vector<1x64x8xf32> to vector<64x8xf32>
    %108 = vector.extract_strided_slice %105 {offsets = [1, 0, 0], sizes = [1, 64, 8], strides = [1, 1, 1]} : vector<8x64x8xf32> to vector<1x64x8xf32>
    %109 = vector.shape_cast %108 : vector<1x64x8xf32> to vector<64x8xf32>
    %110 = vector.extract_strided_slice %105 {offsets = [2, 0, 0], sizes = [1, 64, 8], strides = [1, 1, 1]} : vector<8x64x8xf32> to vector<1x64x8xf32>
    %111 = vector.shape_cast %110 : vector<1x64x8xf32> to vector<64x8xf32>
    %112 = vector.extract_strided_slice %105 {offsets = [3, 0, 0], sizes = [1, 64, 8], strides = [1, 1, 1]} : vector<8x64x8xf32> to vector<1x64x8xf32>
    %113 = vector.shape_cast %112 : vector<1x64x8xf32> to vector<64x8xf32>
    %114 = tpu.concatenate %107, %109, %111, %113 in 1 : vector<64x8xf32>, vector<64x8xf32>, vector<64x8xf32>, vector<64x8xf32> -> vector<64x32xf32>
    %115 = vector.extract_strided_slice %105 {offsets = [4, 0, 0], sizes = [1, 64, 8], strides = [1, 1, 1]} : vector<8x64x8xf32> to vector<1x64x8xf32>
    %116 = vector.shape_cast %115 : vector<1x64x8xf32> to vector<64x8xf32>
    %117 = vector.extract_strided_slice %105 {offsets = [5, 0, 0], sizes = [1, 64, 8], strides = [1, 1, 1]} : vector<8x64x8xf32> to vector<1x64x8xf32>
    %118 = vector.shape_cast %117 : vector<1x64x8xf32> to vector<64x8xf32>
    %119 = vector.extract_strided_slice %105 {offsets = [6, 0, 0], sizes = [1, 64, 8], strides = [1, 1, 1]} : vector<8x64x8xf32> to vector<1x64x8xf32>
    %120 = vector.shape_cast %119 : vector<1x64x8xf32> to vector<64x8xf32>
    %121 = vector.extract_strided_slice %105 {offsets = [7, 0, 0], sizes = [1, 64, 8], strides = [1, 1, 1]} : vector<8x64x8xf32> to vector<1x64x8xf32>
    %122 = vector.shape_cast %121 : vector<1x64x8xf32> to vector<64x8xf32>
    %123 = tpu.concatenate %116, %118, %120, %122 in 1 : vector<64x8xf32>, vector<64x8xf32>, vector<64x8xf32>, vector<64x8xf32> -> vector<64x32xf32>
    %124 = tpu.concatenate %114, %123 in 0 : vector<64x32xf32>, vector<64x32xf32> -> vector<128x32xf32>
    %c0_19 = arith.constant 0 : index
    %c0_20 = arith.constant 0 : index
    %125 = vector.load %arg6[%c0_19, %c0_20] : memref<32x32xf32, #tpu.memory_space<vmem>>, vector<32x32xf32>
    %cst_21 = arith.constant dense<0.000000e+00> : vector<128x32xf32>
    %126 = tpu.matmul %124, %125, %cst_21 {dimension_numbers = #tpu.dot_dimension_numbers<[1], [0], [0], [1], [0, 0, 1, 1], [], []>} : vector<128x32xf32>, vector<32x32xf32>, vector<128x32xf32> -> vector<128x32xf32>
    %c0_22 = arith.constant 0 : index
    %c0_23 = arith.constant 0 : index
    %127 = vector.load %arg7[%c0_22, %c0_23] : memref<1x32xf32, #tpu.memory_space<vmem>>, vector<1x32xf32>
    %128 = vector.shape_cast %127 : vector<1x32xf32> to vector<32xf32>
    %129 = vector.shape_cast %128 : vector<32xf32> to vector<1x32xf32>
    %130 = vector.broadcast %129 : vector<1x32xf32> to vector<128x32xf32>
    %131 = arith.addf %126, %130 : vector<128x32xf32>
    %132 = arith.addf %1, %131 : vector<128x32xf32>
    %c0_24 = arith.constant 0 : index
    %c0_25 = arith.constant 0 : index
    %133 = vector.load %arg8[%c0_24, %c0_25] : memref<1x32xf32, #tpu.memory_space<vmem>>, vector<1x32xf32>
    %134 = vector.shape_cast %133 : vector<1x32xf32> to vector<32xf32>
    %c0_26 = arith.constant 0 : index
    %c0_27 = arith.constant 0 : index
    %135 = vector.load %arg9[%c0_26, %c0_27] : memref<1x32xf32, #tpu.memory_space<vmem>>, vector<1x32xf32>
    %136 = vector.shape_cast %135 : vector<1x32xf32> to vector<32xf32>
    %cst_28 = arith.constant dense<0.000000e+00> : vector<128xf32>
    %137 = vector.multi_reduction <add>, %132, %cst_28 [1] : vector<128x32xf32> to vector<128xf32>
    %138 = vector.shape_cast %137 : vector<128xf32> to vector<128x1xf32>
    %cst_29 = arith.constant 3.200000e+01 : f32
    %139 = vector.broadcast %cst_29 : f32 to vector<128x1xf32>
    %140 = arith.divf %138, %139 : vector<128x1xf32>
    %141 = vector.broadcast %140 : vector<128x1xf32> to vector<128x32xf32>
    %142 = arith.subf %132, %141 : vector<128x32xf32>
    %143 = arith.mulf %142, %142 : vector<128x32xf32>
    %cst_30 = arith.constant dense<0.000000e+00> : vector<128xf32>
    %144 = vector.multi_reduction <add>, %143, %cst_30 [1] : vector<128x32xf32> to vector<128xf32>
    %145 = vector.shape_cast %144 : vector<128xf32> to vector<128x1xf32>
    %cst_31 = arith.constant 3.200000e+01 : f32
    %146 = vector.broadcast %cst_31 : f32 to vector<128x1xf32>
    %147 = arith.divf %145, %146 : vector<128x1xf32>
    %148 = vector.broadcast %140 : vector<128x1xf32> to vector<128x32xf32>
    %149 = arith.subf %132, %148 : vector<128x32xf32>
    %cst_32 = arith.constant 9.99999974E-6 : f32
    %150 = vector.broadcast %cst_32 : f32 to vector<128x1xf32>
    %151 = arith.addf %147, %150 : vector<128x1xf32>
    %152 = math.rsqrt %151 : vector<128x1xf32>
    %153 = vector.broadcast %152 : vector<128x1xf32> to vector<128x32xf32>
    %154 = arith.mulf %149, %153 : vector<128x32xf32>
    %155 = vector.shape_cast %134 : vector<32xf32> to vector<1x32xf32>
    %156 = vector.broadcast %155 : vector<1x32xf32> to vector<128x32xf32>
    %157 = arith.mulf %154, %156 : vector<128x32xf32>
    %158 = vector.shape_cast %136 : vector<32xf32> to vector<1x32xf32>
    %159 = vector.broadcast %158 : vector<1x32xf32> to vector<128x32xf32>
    %160 = arith.addf %157, %159 : vector<128x32xf32>
    %c0_33 = arith.constant 0 : index
    %c0_34 = arith.constant 0 : index
    %161 = vector.load %arg10[%c0_33, %c0_34] : memref<32x128xf32, #tpu.memory_space<vmem>>, vector<32x128xf32>
    %cst_35 = arith.constant dense<0.000000e+00> : vector<128x128xf32>
    %162 = tpu.matmul %160, %161, %cst_35 {dimension_numbers = #tpu.dot_dimension_numbers<[1], [0], [0], [1], [0, 0, 1, 1], [], []>} : vector<128x32xf32>, vector<32x128xf32>, vector<128x128xf32> -> vector<128x128xf32>
    %c0_36 = arith.constant 0 : index
    %c0_37 = arith.constant 0 : index
    %163 = vector.load %arg11[%c0_36, %c0_37] : memref<1x128xf32, #tpu.memory_space<vmem>>, vector<1x128xf32>
    %164 = vector.shape_cast %163 : vector<1x128xf32> to vector<128xf32>
    %165 = vector.shape_cast %164 : vector<128xf32> to vector<1x128xf32>
    %166 = vector.broadcast %165 : vector<1x128xf32> to vector<128x128xf32>
    %167 = arith.addf %162, %166 : vector<128x128xf32>
    %cst_38 = arith.constant 5.000000e-01 : f32
    %168 = vector.broadcast %cst_38 : f32 to vector<128x128xf32>
    %169 = arith.mulf %168, %167 : vector<128x128xf32>
    %cst_39 = arith.constant 0.707106769 : f32
    %170 = vector.broadcast %cst_39 : f32 to vector<128x128xf32>
    %171 = arith.mulf %167, %170 : vector<128x128xf32>
    %172 = math.erf %171 : vector<128x128xf32>
    %cst_40 = arith.constant 1.000000e+00 : f32
    %173 = vector.broadcast %cst_40 : f32 to vector<128x128xf32>
    %174 = arith.addf %173, %172 : vector<128x128xf32>
    %175 = arith.mulf %169, %174 : vector<128x128xf32>
    %c0_41 = arith.constant 0 : index
    %c0_42 = arith.constant 0 : index
    %176 = vector.load %arg12[%c0_41, %c0_42] : memref<128x32xf32, #tpu.memory_space<vmem>>, vector<128x32xf32>
    %cst_43 = arith.constant dense<0.000000e+00> : vector<128x32xf32>
    %177 = tpu.matmul %175, %176, %cst_43 {dimension_numbers = #tpu.dot_dimension_numbers<[1], [0], [0], [1], [0, 0, 1, 1], [], []>} : vector<128x128xf32>, vector<128x32xf32>, vector<128x32xf32> -> vector<128x32xf32>
    %c0_44 = arith.constant 0 : index
    %c0_45 = arith.constant 0 : index
    %178 = vector.load %arg13[%c0_44, %c0_45] : memref<1x32xf32, #tpu.memory_space<vmem>>, vector<1x32xf32>
    %179 = vector.shape_cast %178 : vector<1x32xf32> to vector<32xf32>
    %180 = vector.shape_cast %179 : vector<32xf32> to vector<1x32xf32>
    %181 = vector.broadcast %180 : vector<1x32xf32> to vector<128x32xf32>
    %182 = arith.addf %177, %181 : vector<128x32xf32>
    %183 = arith.addf %132, %182 : vector<128x32xf32>
    %184 = vector.shape_cast %183 : vector<128x32xf32> to vector<2x64x32xf32>
    %c0_46 = arith.constant 0 : index
    %c0_47 = arith.constant 0 : index
    %c0_48 = arith.constant 0 : index
    %185 = vector.load %arg14[%c0_46, %c0_47, %c0_48] : memref<2x64x32xf32, #tpu.memory_space<vmem>>, vector<2x64x32xf32>
    tpu.vector_store %arg14[%c0_46, %c0_47, %c0_48], %184 {strides = array<i32>} : memref<2x64x32xf32, #tpu.memory_space<vmem>>, vector<2x64x32xf32>,
    return
  }
  func.func @transform_0(%arg0: i32) -> (i32, i32, i32) {
    %c0_i32 = arith.constant 0 : i32
    %c0_i32_0 = arith.constant 0 : i32
    %c0_i32_1 = arith.constant 0 : i32
    return %arg0, %c0_i32, %c0_i32_0 : i32, i32, i32
  }
  func.func @transform_1(%arg0: i32) -> (i32, i32) {
    %c0_i32 = arith.constant 0 : i32
    %c0_i32_0 = arith.constant 0 : i32
    %c0_i32_1 = arith.constant 0 : i32
    return %c0_i32, %c0_i32_0 : i32, i32
  }
  func.func @transform_2(%arg0: i32) -> (i32, i32) {
    %c0_i32 = arith.constant 0 : i32
    %c0_i32_0 = arith.constant 0 : i32
    %c0_i32_1 = arith.constant 0 : i32
    return %c0_i32, %c0_i32_0 : i32, i32
  }
  func.func @transform_3(%arg0: i32) -> (i32, i32) {
    %c0_i32 = arith.constant 0 : i32
    %c0_i32_0 = arith.constant 0 : i32
    %c0_i32_1 = arith.constant 0 : i32
    return %c0_i32, %c0_i32_0 : i32, i32
  }
  func.func @transform_4(%arg0: i32) -> (i32, i32) {
    %c0_i32 = arith.constant 0 : i32
    %c0_i32_0 = arith.constant 0 : i32
    %c0_i32_1 = arith.constant 0 : i32
    return %c0_i32, %c0_i32_0 : i32, i32
  }
  func.func @transform_5(%arg0: i32) -> (i32, i32) {
    %c0_i32 = arith.constant 0 : i32
    %c0_i32_0 = arith.constant 0 : i32
    %c0_i32_1 = arith.constant 0 : i32
    return %c0_i32, %c0_i32_0 : i32, i32
  }
  func.func @transform_6(%arg0: i32) -> (i32, i32) {
    %c0_i32 = arith.constant 0 : i32
    %c0_i32_0 = arith.constant 0 : i32
    %c0_i32_1 = arith.constant 0 : i32
    return %c0_i32, %c0_i32_0 : i32, i32
  }
  func.func @transform_7(%arg0: i32) -> (i32, i32) {
    %c0_i32 = arith.constant 0 : i32
    %c0_i32_0 = arith.constant 0 : i32
    %c0_i32_1 = arith.constant 0 : i32
    return %c0_i32, %c0_i32_0 : i32, i32
  }
  func.func @transform_8(%arg0: i32) -> (i32, i32) {
    %c0_i32 = arith.constant 0 : i32
    %c0_i32_0 = arith.constant 0 : i32
    %c0_i32_1 = arith.constant 0 : i32
    return %c0_i32, %c0_i32_0 : i32, i32
  }
  func.func @transform_9(%arg0: i32) -> (i32, i32) {
    %c0_i32 = arith.constant 0 : i32
    %c0_i32_0 = arith.constant 0 : i32
    %c0_i32_1 = arith.constant 0 : i32
    return %c0_i32, %c0_i32_0 : i32, i32
  }
  func.func @transform_10(%arg0: i32) -> (i32, i32) {
    %c0_i32 = arith.constant 0 : i32
    %c0_i32_0 = arith.constant 0 : i32
    %c0_i32_1 = arith.constant 0 : i32
    return %c0_i32, %c0_i32_0 : i32, i32
  }
  func.func @transform_11(%arg0: i32) -> (i32, i32) {
    %c0_i32 = arith.constant 0 : i32
    %c0_i32_0 = arith.constant 0 : i32
    %c0_i32_1 = arith.constant 0 : i32
    return %c0_i32, %c0_i32_0 : i32, i32
  }
  func.func @transform_12(%arg0: i32) -> (i32, i32) {
    %c0_i32 = arith.constant 0 : i32
    %c0_i32_0 = arith.constant 0 : i32
    %c0_i32_1 = arith.constant 0 : i32
    return %c0_i32, %c0_i32_0 : i32, i32
  }
  func.func @transform_13(%arg0: i32) -> (i32, i32, i32) {
    %c0_i32 = arith.constant 0 : i32
    %c0_i32_0 = arith.constant 0 : i32
    %c0_i32_1 = arith.constant 0 : i32
    return %arg0, %c0_i32, %c0_i32_0 : i32, i32, i32
  }
}

</mosaic_0001>

<llo_original>
// kernel: tpu_custom_call.1
$region0: #{tpu_custom_call.1}
  #allocation0 [shape = 'u32[]', space=smem, size = 0x4, offset = 0x4, fixed_abs, tag = 'smem constant byte address 0x4 - core index']
  #allocation1 [shape = 'u32[72,128]{1,0:T(1,128)}', space=vmem, size = 0x9000, scoped, tag = 'internal scratch']
  %s0 = inlined_call_operand.vmem [shape: f32[2,64,32], index: 0, kind: input, shape index: {}]
  %s1 = inlined_call_operand.vmem [shape: f32[1,32], index: 1, kind: input, shape index: {}]
  %s2 = inlined_call_operand.vmem [shape: f32[1,32], index: 2, kind: input, shape index: {}]
  %s3 = inlined_call_operand.vmem [shape: f32[32,96], index: 3, kind: input, shape index: {}]
  %s4 = inlined_call_operand.vmem [shape: f32[1,96], index: 4, kind: input, shape index: {}]
  %s5 = inlined_call_operand.vmem [shape: f32[32,32], index: 5, kind: input, shape index: {}]
  %s6 = inlined_call_operand.vmem [shape: f32[1,32], index: 6, kind: input, shape index: {}]
  %s7 = inlined_call_operand.vmem [shape: f32[1,32], index: 7, kind: input, shape index: {}]
  %s8 = inlined_call_operand.vmem [shape: f32[1,32], index: 8, kind: input, shape index: {}]
  %s9 = inlined_call_operand.vmem [shape: f32[32,128], index: 9, kind: input, shape index: {}]
  %s10 = inlined_call_operand.vmem [shape: f32[1,128], index: 10, kind: input, shape index: {}]
  %s11 = inlined_call_operand.vmem [shape: f32[128,32], index: 11, kind: input, shape index: {}]
  %s12 = inlined_call_operand.vmem [shape: f32[1,32], index: 12, kind: input, shape index: {}]
  %s13 = inlined_call_operand.vmem [shape: f32[2,64,32], index: 13, kind: output, shape index: {}]
  %s14 = sld [smem:[#allocation0]]
  $region62: #{tpu_custom_call.1} parent=0
    _
  %s16 = ssub.s32 1, %s14
  %s17 = scalar_select 0, %s16, %s14
  // Predicated region
  $region2: #{tpu_custom_call.1} parent=0 // pred_check
    _
  $region3: #{tpu_custom_call.1} parent=0 // pred_check_branch
    %19 = sbr.rel (0) target = $region5
  $region4: #{tpu_custom_call.1} parent=0 // pred_region
    _
  $region5: #{tpu_custom_call.1} parent=0 // pred_fallthru
    _
  // Predicated region
  $region6: #{tpu_custom_call.1} parent=0 // pred_check
    _
  $region7: #{tpu_custom_call.1} parent=0 // pred_check_branch
    %21 = sbr.rel (0) target = $region9
  $region8: #{tpu_custom_call.1} parent=0 // pred_region
    _
  $region9: #{tpu_custom_call.1} parent=0 // pred_fallthru
    _
  // Predicated region
  $region10: #{tpu_custom_call.1} parent=0 // pred_check
    _
  $region11: #{tpu_custom_call.1} parent=0 // pred_check_branch
    %23 = sbr.rel (0) target = $region13
  $region12: #{tpu_custom_call.1} parent=0 // pred_region
    _
  $region13: #{tpu_custom_call.1} parent=0 // pred_fallthru
    _
  // Predicated region
  $region14: #{tpu_custom_call.1} parent=0 // pred_check
    _
  $region15: #{tpu_custom_call.1} parent=0 // pred_check_branch
    %25 = sbr.rel (0) target = $region17
  $region16: #{tpu_custom_call.1} parent=0 // pred_region
    _
  $region17: #{tpu_custom_call.1} parent=0 // pred_fallthru
    _
  // Predicated region
  $region18: #{tpu_custom_call.1} parent=0 // pred_check
    _
  $region19: #{tpu_custom_call.1} parent=0 // pred_check_branch
    %27 = sbr.rel (0) target = $region21
  $region20: #{tpu_custom_call.1} parent=0 // pred_region
    _
  $region21: #{tpu_custom_call.1} parent=0 // pred_fallthru
    _
  // Predicated region
  $region22: #{tpu_custom_call.1} parent=0 // pred_check
    _
  $region23: #{tpu_custom_call.1} parent=0 // pred_check_branch
    %29 = sbr.rel (0) target = $region25
  $region24: #{tpu_custom_call.1} parent=0 // pred_region
    _
  $region25: #{tpu_custom_call.1} parent=0 // pred_fallthru
    _
  // Predicated region
  $region26: #{tpu_custom_call.1} parent=0 // pred_check
    _
  $region27: #{tpu_custom_call.1} parent=0 // pred_check_branch
    %31 = sbr.rel (0) target = $region29
  $region28: #{tpu_custom_call.1} parent=0 // pred_region
    _
  $region29: #{tpu_custom_call.1} parent=0 // pred_fallthru
    _
  // Predicated region
  $region30: #{tpu_custom_call.1} parent=0 // pred_check
    _
  $region31: #{tpu_custom_call.1} parent=0 // pred_check_branch
    %33 = sbr.rel (0) target = $region33
  $region32: #{tpu_custom_call.1} parent=0 // pred_region
    _
  $region33: #{tpu_custom_call.1} parent=0 // pred_fallthru
    _
  // Predicated region
  $region34: #{tpu_custom_call.1} parent=0 // pred_check
    _
  $region35: #{tpu_custom_call.1} parent=0 // pred_check_branch
    %35 = sbr.rel (0) target = $region37
  $region36: #{tpu_custom_call.1} parent=0 // pred_region
    _
  $region37: #{tpu_custom_call.1} parent=0 // pred_fallthru
    _
  // Predicated region
  $region38: #{tpu_custom_call.1} parent=0 // pred_check
    _
  $region39: #{tpu_custom_call.1} parent=0 // pred_check_branch
    %37 = sbr.rel (0) target = $region41
  $region40: #{tpu_custom_call.1} parent=0 // pred_region
    _
  $region41: #{tpu_custom_call.1} parent=0 // pred_fallthru
    _
  // Predicated region
  $region42: #{tpu_custom_call.1} parent=0 // pred_check
    _
  $region43: #{tpu_custom_call.1} parent=0 // pred_check_branch
    %39 = sbr.rel (0) target = $region45
  $region44: #{tpu_custom_call.1} parent=0 // pred_region
    _
  $region45: #{tpu_custom_call.1} parent=0 // pred_fallthru
    _
  // Predicated region
  $region46: #{tpu_custom_call.1} parent=0 // pred_check
    _
  $region47: #{tpu_custom_call.1} parent=0 // pred_check_branch
    %41 = sbr.rel (0) target = $region49
  $region48: #{tpu_custom_call.1} parent=0 // pred_region
    _
  $region49: #{tpu_custom_call.1} parent=0 // pred_fallthru
    _
  // Predicated region
  $region50: #{tpu_custom_call.1} parent=0 // pred_check
    _
  $region51: #{tpu_custom_call.1} parent=0 // pred_check_branch
    %43 = sbr.rel (0) target = $region53
  $region52: #{tpu_custom_call.1} parent=0 // pred_region
    _
  $region53: #{tpu_custom_call.1} parent=0 // pred_fallthru
    _
  %v44 = vld [vmem:[%s0] sm:$0xff]
  %v45 = vld [vmem:[%s0 + $0x8] sm:$0xff]
  %v46 = vld [vmem:[%s0 + $0x10] sm:$0xff]
  %v47 = vld [vmem:[%s0 + $0x18] sm:$0xff]
  %v48 = vld [vmem:[%s0 + $0x20] sm:$0xff]
  %v49 = vld [vmem:[%s0 + $0x28] sm:$0xff]
  %v50 = vld [vmem:[%s0 + $0x30] sm:$0xff]
  %v51 = vld [vmem:[%s0 + $0x38] sm:$0xff]
  %v52 = vld [vmem:[%s0 + $0x40] sm:$0xff]
  %v53 = vld [vmem:[%s0 + $0x48] sm:$0xff]
  %v54 = vld [vmem:[%s0 + $0x50] sm:$0xff]
  %v55 = vld [vmem:[%s0 + $0x58] sm:$0xff]
  %v56 = vld [vmem:[%s0 + $0x60] sm:$0xff]
  %v57 = vld [vmem:[%s0 + $0x68] sm:$0xff]
  %v58 = vld [vmem:[%s0 + $0x70] sm:$0xff]
  %v59 = vld [vmem:[%s0 + $0x78] sm:$0xff]
  %v60 = vld [vmem:[%s1] sm:$0x1]
  %v61 = vld [vmem:[%s2] sm:$0x1]
  %vm62 = vcmask 261120
  %v63 = vsel %vm62, %v44, 0.0
  %64 = vadd.xlane.f32.xlu0 %v63
  %v65 = vpop.xlane.xlu0 %64
  %v66 = vsel %vm62, %v45, 0.0
  %67 = vadd.xlane.f32.xlu0 %v66
  %v68 = vpop.xlane.xlu0 %67
  %v69 = vsel %vm62, %v46, 0.0
  %70 = vadd.xlane.f32.xlu0 %v69
  %v71 = vpop.xlane.xlu0 %70
  %v72 = vsel %vm62, %v47, 0.0
  %73 = vadd.xlane.f32.xlu0 %v72
  %v74 = vpop.xlane.xlu0 %73
  %v75 = vsel %vm62, %v48, 0.0
  %76 = vadd.xlane.f32.xlu0 %v75
  %v77 = vpop.xlane.xlu0 %76
  %v78 = vsel %vm62, %v49, 0.0
  %79 = vadd.xlane.f32.xlu0 %v78
  %v80 = vpop.xlane.xlu0 %79
  %v81 = vsel %vm62, %v50, 0.0
  %82 = vadd.xlane.f32.xlu0 %v81
  %v83 = vpop.xlane.xlu0 %82
  %v84 = vsel %vm62, %v51, 0.0
  %85 = vadd.xlane.f32.xlu0 %v84
  %v86 = vpop.xlane.xlu0 %85
  %v87 = vsel %vm62, %v52, 0.0
  %88 = vadd.xlane.f32.xlu0 %v87
  %v89 = vpop.xlane.xlu0 %88
  %v90 = vsel %vm62, %v53, 0.0
  %91 = vadd.xlane.f32.xlu0 %v90
  %v92 = vpop.xlane.xlu0 %91
  %v93 = vsel %vm62, %v54, 0.0
  %94 = vadd.xlane.f32.xlu0 %v93
  %v95 = vpop.xlane.xlu0 %94
  %v96 = vsel %vm62, %v55, 0.0
  %97 = vadd.xlane.f32.xlu0 %v96
  %v98 = vpop.xlane.xlu0 %97
  %v99 = vsel %vm62, %v56, 0.0
  %100 = vadd.xlane.f32.xlu0 %v99
  %v101 = vpop.xlane.xlu0 %100
  %v102 = vsel %vm62, %v57, 0.0
  %103 = vadd.xlane.f32.xlu0 %v102
  %v104 = vpop.xlane.xlu0 %103
  %v105 = vsel %vm62, %v58, 0.0
  %106 = vadd.xlane.f32.xlu0 %v105
  %v107 = vpop.xlane.xlu0 %106
  %v108 = vsel %vm62, %v59, 0.0
  %109 = vadd.xlane.f32.xlu0 %v108
  %v110 = vpop.xlane.xlu0 %109
  %v111 = vrcp.pop 32.0
  %v112 = vmul.f32 32.0, %v111
  %v113 = vsub.f32 1.0, %v112
  %v114 = vmul.f32 %v111, %v113
  %v115 = vadd.f32 %v111, %v114
  %vm116 = vweird.f32 %v111
  %v117 = vsel %vm116, %v111, %v115
  %v118 = vmul.f32 %v65, %v117
  %v119 = vmul.f32 %v68, %v117
  %v120 = vmul.f32 %v71, %v117
  %v121 = vmul.f32 %v74, %v117
  %v122 = vmul.f32 %v77, %v117
  %v123 = vmul.f32 %v80, %v117
  %v124 = vmul.f32 %v83, %v117
  %v125 = vmul.f32 %v86, %v117
  %v126 = vmul.f32 %v89, %v117
  %v127 = vmul.f32 %v92, %v117
  %v128 = vmul.f32 %v95, %v117
  %v129 = vmul.f32 %v98, %v117
  %v130 = vmul.f32 %v101, %v117
  %v131 = vmul.f32 %v104, %v117
  %v132 = vmul.f32 %v107, %v117
  %v133 = vmul.f32 %v110, %v117
  %v134 = vsub.f32 %v44, %v118
  %v135 = vsub.f32 %v45, %v119
  %v136 = vsub.f32 %v46, %v120
  %v137 = vsub.f32 %v47, %v121
  %v138 = vsub.f32 %v48, %v122
  %v139 = vsub.f32 %v49, %v123
  %v140 = vsub.f32 %v50, %v124
  %v141 = vsub.f32 %v51, %v125
  %v142 = vsub.f32 %v52, %v126
  %v143 = vsub.f32 %v53, %v127
  %v144 = vsub.f32 %v54, %v128
  %v145 = vsub.f32 %v55, %v129
  %v146 = vsub.f32 %v56, %v130
  %v147 = vsub.f32 %v57, %v131
  %v148 = vsub.f32 %v58, %v132
  %v149 = vsub.f32 %v59, %v133
  %v150 = vmul.f32 %v134, %v134
  %v151 = vmul.f32 %v135, %v135
  %v152 = vmul.f32 %v136, %v136
  %v153 = vmul.f32 %v137, %v137
  %v154 = vmul.f32 %v138, %v138
  %v155 = vmul.f32 %v139, %v139
  %v156 = vmul.f32 %v140, %v140
  %v157 = vmul.f32 %v141, %v141
  %v158 = vmul.f32 %v142, %v142
  %v159 = vmul.f32 %v143, %v143
  %v160 = vmul.f32 %v144, %v144
  %v161 = vmul.f32 %v145, %v145
  %v162 = vmul.f32 %v146, %v146
  %v163 = vmul.f32 %v147, %v147
  %v164 = vmul.f32 %v148, %v148
  %v165 = vmul.f32 %v149, %v149
  %v166 = vsel %vm62, %v150, 0.0
  %167 = vadd.xlane.f32.xlu0 %v166
  %v168 = vpop.xlane.xlu0 %167
  %v169 = vsel %vm62, %v151, 0.0
  %170 = vadd.xlane.f32.xlu0 %v169
  %v171 = vpop.xlane.xlu0 %170
  %v172 = vsel %vm62, %v152, 0.0
  %173 = vadd.xlane.f32.xlu0 %v172
  %v174 = vpop.xlane.xlu0 %173
  %v175 = vsel %vm62, %v153, 0.0
  %176 = vadd.xlane.f32.xlu0 %v175
  %v177 = vpop.xlane.xlu0 %176
  %v178 = vsel %vm62, %v154, 0.0
  %179 = vadd.xlane.f32.xlu0 %v178
  %v180 = vpop.xlane.xlu0 %179
  %v181 = vsel %vm62, %v155, 0.0
  %182 = vadd.xlane.f32.xlu0 %v181
  %v183 = vpop.xlane.xlu0 %182
  %v184 = vsel %vm62, %v156, 0.0
  %185 = vadd.xlane.f32.xlu0 %v184
  %v186 = vpop.xlane.xlu0 %185
  %v187 = vsel %vm62, %v157, 0.0
  %188 = vadd.xlane.f32.xlu0 %v187
  %v189 = vpop.xlane.xlu0 %188
  %v190 = vsel %vm62, %v158, 0.0
  %191 = vadd.xlane.f32.xlu0 %v190
  %v192 = vpop.xlane.xlu0 %191
  %v193 = vsel %vm62, %v159, 0.0
  %194 = vadd.xlane.f32.xlu0 %v193
  %v195 = vpop.xlane.xlu0 %194
  %v196 = vsel %vm62, %v160, 0.0
  %197 = vadd.xlane.f32.xlu0 %v196
  %v198 = vpop.xlane.xlu0 %197
  %v199 = vsel %vm62, %v161, 0.0
  %200 = vadd.xlane.f32.xlu0 %v199
  %v201 = vpop.xlane.xlu0 %200
  %v202 = vsel %vm62, %v162, 0.0
  %203 = vadd.xlane.f32.xlu0 %v202
  %v204 = vpop.xlane.xlu0 %203
  %v205 = vsel %vm62, %v163, 0.0
  %206 = vadd.xlane.f32.xlu0 %v205
  %v207 = vpop.xlane.xlu0 %206
  %v208 = vsel %vm62, %v164, 0.0
  %209 = vadd.xlane.f32.xlu0 %v208
  %v210 = vpop.xlane.xlu0 %209
  %v211 = vsel %vm62, %v165, 0.0
  %212 = vadd.xlane.f32.xlu0 %v211
  %v213 = vpop.xlane.xlu0 %212
  %v214 = vmul.f32 %v168, %v117
  %v215 = vmul.f32 %v171, %v117
  %v216 = vmul.f32 %v174, %v117
  %v217 = vmul.f32 %v177, %v117
  %v218 = vmul.f32 %v180, %v117
  %v219 = vmul.f32 %v183, %v117
  %v220 = vmul.f32 %v186, %v117
  %v221 = vmul.f32 %v189, %v117
  %v222 = vmul.f32 %v192, %v117
  %v223 = vmul.f32 %v195, %v117
  %v224 = vmul.f32 %v198, %v117
  %v225 = vmul.f32 %v201, %v117
  %v226 = vmul.f32 %v204, %v117
  %v227 = vmul.f32 %v207, %v117
  %v228 = vmul.f32 %v210, %v117
  %v229 = vmul.f32 %v213, %v117
  %v230 = vadd.f32 %v214, 1e-05
  %v231 = vadd.f32 %v215, 1e-05
  %v232 = vadd.f32 %v216, 1e-05
  %v233 = vadd.f32 %v217, 1e-05
  %v234 = vadd.f32 %v218, 1e-05
  %v235 = vadd.f32 %v219, 1e-05
  %v236 = vadd.f32 %v220, 1e-05
  %v237 = vadd.f32 %v221, 1e-05
  %v238 = vadd.f32 %v222, 1e-05
  %v239 = vadd.f32 %v223, 1e-05
  %v240 = vadd.f32 %v224, 1e-05
  %v241 = vadd.f32 %v225, 1e-05
  %v242 = vadd.f32 %v226, 1e-05
  %v243 = vadd.f32 %v227, 1e-05
  %v244 = vadd.f32 %v228, 1e-05
  %v245 = vadd.f32 %v229, 1e-05
  %v246 = vrsqrt.pop %v230
  %v247 = vmul.f32 %v246, %v230
  %v248 = vmul.f32 %v247, %v246
  %v249 = vmul.f32 0.5, %v248
  %v250 = vsub.f32 1.5, %v249
  %v251 = vmul.f32 %v246, %v250
  %vm252 = vweird.f32 %v230
  %vm253 = vweird.f32 %v246
  %vm254 = vmor %vm252, %vm253
  %v255 = vsel %vm254, %v246, %v251
  %v256 = vrsqrt.pop %v231
  %v257 = vmul.f32 %v256, %v231
  %v258 = vmul.f32 %v257, %v256
  %v259 = vmul.f32 0.5, %v258
  %v260 = vsub.f32 1.5, %v259
  %v261 = vmul.f32 %v256, %v260
  %vm262 = vweird.f32 %v231
  %vm263 = vweird.f32 %v256
  %vm264 = vmor %vm262, %vm263
  %v265 = vsel %vm264, %v256, %v261
  %v266 = vrsqrt.pop %v232
  %v267 = vmul.f32 %v266, %v232
  %v268 = vmul.f32 %v267, %v266
  %v269 = vmul.f32 0.5, %v268
  %v270 = vsub.f32 1.5, %v269
  %v271 = vmul.f32 %v266, %v270
  %vm272 = vweird.f32 %v232
  %vm273 = vweird.f32 %v266
  %vm274 = vmor %vm272, %vm273
  %v275 = vsel %vm274, %v266, %v271
  %v276 = vrsqrt.pop %v233
  %v277 = vmul.f32 %v276, %v233
  %v278 = vmul.f32 %v277, %v276
  %v279 = vmul.f32 0.5, %v278
  %v280 = vsub.f32 1.5, %v279
  %v281 = vmul.f32 %v276, %v280
  %vm282 = vweird.f32 %v233
  %vm283 = vweird.f32 %v276
  %vm284 = vmor %vm282, %vm283
  %v285 = vsel %vm284, %v276, %v281
  %v286 = vrsqrt.pop %v234
  %v287 = vmul.f32 %v286, %v234
  %v288 = vmul.f32 %v287, %v286
  %v289 = vmul.f32 0.5, %v288
  %v290 = vsub.f32 1.5, %v289
  %v291 = vmul.f32 %v286, %v290
  %vm292 = vweird.f32 %v234
  %vm293 = vweird.f32 %v286
  %vm294 = vmor %vm292, %vm293
  %v295 = vsel %vm294, %v286, %v291
  %v296 = vrsqrt.pop %v235
  %v297 = vmul.f32 %v296, %v235
  %v298 = vmul.f32 %v297, %v296
  %v299 = vmul.f32 0.5, %v298
  %v300 = vsub.f32 1.5, %v299
  %v301 = vmul.f32 %v296, %v300
  %vm302 = vweird.f32 %v235
  %vm303 = vweird.f32 %v296
  %vm304 = vmor %vm302, %vm303
  %v305 = vsel %vm304, %v296, %v301
  %v306 = vrsqrt.pop %v236
  %v307 = vmul.f32 %v306, %v236
  %v308 = vmul.f32 %v307, %v306
  %v309 = vmul.f32 0.5, %v308
  %v310 = vsub.f32 1.5, %v309
  %v311 = vmul.f32 %v306, %v310
  %vm312 = vweird.f32 %v236
  %vm313 = vweird.f32 %v306
  %vm314 = vmor %vm312, %vm313
  %v315 = vsel %vm314, %v306, %v311
  %v316 = vrsqrt.pop %v237
  %v317 = vmul.f32 %v316, %v237
  %v318 = vmul.f32 %v317, %v316
  %v319 = vmul.f32 0.5, %v318
  %v320 = vsub.f32 1.5, %v319
  %v321 = vmul.f32 %v316, %v320
  %vm322 = vweird.f32 %v237
  %vm323 = vweird.f32 %v316
  %vm324 = vmor %vm322, %vm323
  %v325 = vsel %vm324, %v316, %v321
  %v326 = vrsqrt.pop %v238
  %v327 = vmul.f32 %v326, %v238
  %v328 = vmul.f32 %v327, %v326
  %v329 = vmul.f32 0.5, %v328
  %v330 = vsub.f32 1.5, %v329
  %v331 = vmul.f32 %v326, %v330
  %vm332 = vweird.f32 %v238
  %vm333 = vweird.f32 %v326
  %vm334 = vmor %vm332, %vm333
  %v335 = vsel %vm334, %v326, %v331
  %v336 = vrsqrt.pop %v239
  %v337 = vmul.f32 %v336, %v239
  %v338 = vmul.f32 %v337, %v336
  %v339 = vmul.f32 0.5, %v338
  %v340 = vsub.f32 1.5, %v339
  %v341 = vmul.f32 %v336, %v340
  %vm342 = vweird.f32 %v239
  %vm343 = vweird.f32 %v336
  %vm344 = vmor %vm342, %vm343
  %v345 = vsel %vm344, %v336, %v341
  %v346 = vrsqrt.pop %v240
  %v347 = vmul.f32 %v346, %v240
  %v348 = vmul.f32 %v347, %v346
  %v349 = vmul.f32 0.5, %v348
  %v350 = vsub.f32 1.5, %v349
  %v351 = vmul.f32 %v346, %v350
  %vm352 = vweird.f32 %v240
  %vm353 = vweird.f32 %v346
  %vm354 = vmor %vm352, %vm353
  %v355 = vsel %vm354, %v346, %v351
  %v356 = vrsqrt.pop %v241
  %v357 = vmul.f32 %v356, %v241
  %v358 = vmul.f32 %v357, %v356
  %v359 = vmul.f32 0.5, %v358
  %v360 = vsub.f32 1.5, %v359
  %v361 = vmul.f32 %v356, %v360
  %vm362 = vweird.f32 %v241
  %vm363 = vweird.f32 %v356
  %vm364 = vmor %vm362, %vm363
  %v365 = vsel %vm364, %v356, %v361
  %v366 = vrsqrt.pop %v242
  %v367 = vmul.f32 %v366, %v242
  %v368 = vmul.f32 %v367, %v366
  %v369 = vmul.f32 0.5, %v368
  %v370 = vsub.f32 1.5, %v369
  %v371 = vmul.f32 %v366, %v370
  %vm372 = vweird.f32 %v242
  %vm373 = vweird.f32 %v366
  %vm374 = vmor %vm372, %vm373
  %v375 = vsel %vm374, %v366, %v371
  %v376 = vrsqrt.pop %v243
  %v377 = vmul.f32 %v376, %v243
  %v378 = vmul.f32 %v377, %v376
  %v379 = vmul.f32 0.5, %v378
  %v380 = vsub.f32 1.5, %v379
  %v381 = vmul.f32 %v376, %v380
  %vm382 = vweird.f32 %v243
  %vm383 = vweird.f32 %v376
  %vm384 = vmor %vm382, %vm383
  %v385 = vsel %vm384, %v376, %v381
  %v386 = vrsqrt.pop %v244
  %v387 = vmul.f32 %v386, %v244
  %v388 = vmul.f32 %v387, %v386
  %v389 = vmul.f32 0.5, %v388
  %v390 = vsub.f32 1.5, %v389
  %v391 = vmul.f32 %v386, %v390
  %vm392 = vweird.f32 %v244
  %vm393 = vweird.f32 %v386
  %vm394 = vmor %vm392, %vm393
  %v395 = vsel %vm394, %v386, %v391
  %v396 = vrsqrt.pop %v245
  %v397 = vmul.f32 %v396, %v245
  %v398 = vmul.f32 %v397, %v396
  %v399 = vmul.f32 0.5, %v398
  %v400 = vsub.f32 1.5, %v399
  %v401 = vmul.f32 %v396, %v400
  %vm402 = vweird.f32 %v245
  %vm403 = vweird.f32 %v396
  %vm404 = vmor %vm402, %vm403
  %v405 = vsel %vm404, %v396, %v401
  %v406 = vmul.f32 %v134, %v255
  %v407 = vmul.f32 %v135, %v265
  %v408 = vmul.f32 %v136, %v275
  %v409 = vmul.f32 %v137, %v285
  %v410 = vmul.f32 %v138, %v295
  %v411 = vmul.f32 %v139, %v305
  %v412 = vmul.f32 %v140, %v315
  %v413 = vmul.f32 %v141, %v325
  %v414 = vmul.f32 %v142, %v335
  %v415 = vmul.f32 %v143, %v345
  %v416 = vmul.f32 %v144, %v355
  %v417 = vmul.f32 %v145, %v365
  %v418 = vmul.f32 %v146, %v375
  %v419 = vmul.f32 %v147, %v385
  %v420 = vmul.f32 %v148, %v395
  %v421 = vmul.f32 %v149, %v405
  %v423 = vperm.slane %v60, 0
  %v425 = vmul.f32 %v406, %v423
  %v426 = vmul.f32 %v407, %v423
  %v427 = vmul.f32 %v408, %v423
  %v428 = vmul.f32 %v409, %v423
  %v429 = vmul.f32 %v410, %v423
  %v430 = vmul.f32 %v411, %v423
  %v431 = vmul.f32 %v412, %v423
  %v432 = vmul.f32 %v413, %v423
  %v433 = vmul.f32 %v414, %v423
  %v434 = vmul.f32 %v415, %v423
  %v435 = vmul.f32 %v416, %v423
  %v436 = vmul.f32 %v417, %v423
  %v437 = vmul.f32 %v418, %v423
  %v438 = vmul.f32 %v419, %v423
  %v439 = vmul.f32 %v420, %v423
  %v440 = vmul.f32 %v421, %v423
  %v442 = vperm.slane %v61, 0
  %v444 = vadd.f32 %v425, %v442
  %v445 = vadd.f32 %v426, %v442
  %v446 = vadd.f32 %v427, %v442
  %v447 = vadd.f32 %v428, %v442
  %v448 = vadd.f32 %v429, %v442
  %v449 = vadd.f32 %v430, %v442
  %v450 = vadd.f32 %v431, %v442
  %v451 = vadd.f32 %v432, %v442
  %v452 = vadd.f32 %v433, %v442
  %v453 = vadd.f32 %v434, %v442
  %v454 = vadd.f32 %v435, %v442
  %v455 = vadd.f32 %v436, %v442
  %v456 = vadd.f32 %v437, %v442
  %v457 = vadd.f32 %v438, %v442
  %v458 = vadd.f32 %v439, %v442
  %v459 = vadd.f32 %v440, %v442
  %v460 = vld [vmem:[%s3] sm:$0xff]
  %v461 = vld [vmem:[%s3 + $0x8] sm:$0xff]
  %v462 = vld [vmem:[%s3 + $0x10] sm:$0xff]
  %v463 = vld [vmem:[%s3 + $0x18] sm:$0xff]
  %v464 = vld [vmem:[%s4] sm:$0x1]
  %v466 = vperm.slane %v464, 0
  %v469 = vsel %vm62, %v444, 0
  %v472 = vsel %vm62, %v445, 0
  %v475 = vsel %vm62, %v446, 0
  %v478 = vsel %vm62, %v447, 0
  %v481 = vsel %vm62, %v448, 0
  %v484 = vsel %vm62, %v449, 0
  %v487 = vsel %vm62, %v450, 0
  %v490 = vsel %vm62, %v451, 0
  %v493 = vsel %vm62, %v452, 0
  %v496 = vsel %vm62, %v453, 0
  %v499 = vsel %vm62, %v454, 0
  %v502 = vsel %vm62, %v455, 0
  %v505 = vsel %vm62, %v456, 0
  %v508 = vsel %vm62, %v457, 0
  %v511 = vsel %vm62, %v458, 0
  %v514 = vsel %vm62, %v459, 0
  %516 = vmatpush.msra.mxu0 0.0
  %517 = vmatpush.msra.mxu0 0.0
  %518 = vmatpush.msra.mxu0 0.0
  %519 = vmatpush.msra.mxu0 0.0
  %520 = vmatpush.msra.mxu0 0.0
  %521 = vmatpush.msra.mxu0 0.0
  %522 = vmatpush.msra.mxu0 0.0
  %523 = vmatpush.msra.mxu0 0.0
  %524 = vmatpush.msra.mxu0 0.0
  %525 = vmatpush.msra.mxu0 0.0
  %526 = vmatpush.msra.mxu0 0.0
  %527 = vmatpush.msra.mxu0 0.0
  %528 = vmatpush.msra.mxu0 %v463
  %529 = vmatpush.msra.mxu0 %v462
  %530 = vmatpush.msra.mxu0 %v461
  %531 = vmatpush.msra.mxu0 %v460
  %532 = vmatmul.f32.gmra.mxu0 %v469
  %v533 = vpop.f32.mrf.mxu0
  %v534 = vadd.f32 %v466, %v533
  %535 = vmatmul.f32.gmra.mxu0 %v472
  %v536 = vpop.f32.mrf.mxu0
  %v537 = vadd.f32 %v466, %v536
  %538 = vmatmul.f32.gmra.mxu0 %v475
  %v539 = vpop.f32.mrf.mxu0
  %v540 = vadd.f32 %v466, %v539
  %541 = vmatmul.f32.gmra.mxu0 %v478
  %v542 = vpop.f32.mrf.mxu0
  %v543 = vadd.f32 %v466, %v542
  %544 = vmatmul.f32.gmra.mxu0 %v481
  %v545 = vpop.f32.mrf.mxu0
  %v546 = vadd.f32 %v466, %v545
  %547 = vmatmul.f32.gmra.mxu0 %v484
  %v548 = vpop.f32.mrf.mxu0
  %v549 = vadd.f32 %v466, %v548
  %550 = vmatmul.f32.gmra.mxu0 %v487
  %v551 = vpop.f32.mrf.mxu0
  %v552 = vadd.f32 %v466, %v551
  %553 = vmatmul.f32.gmra.mxu0 %v490
  %v554 = vpop.f32.mrf.mxu0
  %v555 = vadd.f32 %v466, %v554
  %556 = vmatmul.f32.gmra.mxu0 %v493
  %v557 = vpop.f32.mrf.mxu0
  %v558 = vadd.f32 %v466, %v557
  %559 = vmatmul.f32.gmra.mxu0 %v496
  %v560 = vpop.f32.mrf.mxu0
  %v561 = vadd.f32 %v466, %v560
  %562 = vmatmul.f32.gmra.mxu0 %v499
  %v563 = vpop.f32.mrf.mxu0
  %v564 = vadd.f32 %v466, %v563
  %565 = vmatmul.f32.gmra.mxu0 %v502
  %v566 = vpop.f32.mrf.mxu0
  %v567 = vadd.f32 %v466, %v566
  %568 = vmatmul.f32.gmra.mxu0 %v505
  %v569 = vpop.f32.mrf.mxu0
  %v570 = vadd.f32 %v466, %v569
  %571 = vmatmul.f32.gmra.mxu0 %v508
  %v572 = vpop.f32.mrf.mxu0
  %v573 = vadd.f32 %v466, %v572
  %574 = vmatmul.f32.gmra.mxu0 %v511
  %v575 = vpop.f32.mrf.mxu0
  %v576 = vadd.f32 %v466, %v575
  %577 = vmatmul.f32.gmra.mxu0 %v514
  %v578 = vpop.f32.mrf.mxu0
  %v579 = vadd.f32 %v466, %v578
  %580 = vdwg.mxu0
  %589 = vrot.lane.b32.xlu0 %v534, 120
  %v590 = vpop.permute.xlu0 %589
  %591 = vrot.lane.b32.xlu0 %v537, 120
  %v592 = vpop.permute.xlu0 %591
  %593 = vrot.lane.b32.xlu0 %v540, 120
  %v594 = vpop.permute.xlu0 %593
  %595 = vrot.lane.b32.xlu0 %v543, 120
  %v596 = vpop.permute.xlu0 %595
  %597 = vrot.lane.b32.xlu0 %v546, 120
  %v598 = vpop.permute.xlu0 %597
  %599 = vrot.lane.b32.xlu0 %v549, 120
  %v600 = vpop.permute.xlu0 %599
  %601 = vrot.lane.b32.xlu0 %v552, 120
  %v602 = vpop.permute.xlu0 %601
  %603 = vrot.lane.b32.xlu0 %v555, 120
  %v604 = vpop.permute.xlu0 %603
  %605 = vrot.lane.b32.xlu0 %v534, 112
  %v606 = vpop.permute.xlu0 %605
  %607 = vrot.lane.b32.xlu0 %v537, 112
  %v608 = vpop.permute.xlu0 %607
  %609 = vrot.lane.b32.xlu0 %v540, 112
  %v610 = vpop.permute.xlu0 %609
  %611 = vrot.lane.b32.xlu0 %v543, 112
  %v612 = vpop.permute.xlu0 %611
  %613 = vrot.lane.b32.xlu0 %v546, 112
  %v614 = vpop.permute.xlu0 %613
  %615 = vrot.lane.b32.xlu0 %v549, 112
  %v616 = vpop.permute.xlu0 %615
  %617 = vrot.lane.b32.xlu0 %v552, 112
  %v618 = vpop.permute.xlu0 %617
  %619 = vrot.lane.b32.xlu0 %v555, 112
  %v620 = vpop.permute.xlu0 %619
  %621 = vrot.lane.b32.xlu0 %v534, 104
  %v622 = vpop.permute.xlu0 %621
  %623 = vrot.lane.b32.xlu0 %v537, 104
  %v624 = vpop.permute.xlu0 %623
  %625 = vrot.lane.b32.xlu0 %v540, 104
  %v626 = vpop.permute.xlu0 %625
  %627 = vrot.lane.b32.xlu0 %v543, 104
  %v628 = vpop.permute.xlu0 %627
  %629 = vrot.lane.b32.xlu0 %v546, 104
  %v630 = vpop.permute.xlu0 %629
  %631 = vrot.lane.b32.xlu0 %v549, 104
  %v632 = vpop.permute.xlu0 %631
  %633 = vrot.lane.b32.xlu0 %v552, 104
  %v634 = vpop.permute.xlu0 %633
  %635 = vrot.lane.b32.xlu0 %v555, 104
  %v636 = vpop.permute.xlu0 %635
  %645 = vrot.lane.b32.xlu0 %v558, 120
  %v646 = vpop.permute.xlu0 %645
  %647 = vrot.lane.b32.xlu0 %v561, 120
  %v648 = vpop.permute.xlu0 %647
  %649 = vrot.lane.b32.xlu0 %v564, 120
  %v650 = vpop.permute.xlu0 %649
  %651 = vrot.lane.b32.xlu0 %v567, 120
  %v652 = vpop.permute.xlu0 %651
  %653 = vrot.lane.b32.xlu0 %v570, 120
  %v654 = vpop.permute.xlu0 %653
  %655 = vrot.lane.b32.xlu0 %v573, 120
  %v656 = vpop.permute.xlu0 %655
  %657 = vrot.lane.b32.xlu0 %v576, 120
  %v658 = vpop.permute.xlu0 %657
  %659 = vrot.lane.b32.xlu0 %v579, 120
  %v660 = vpop.permute.xlu0 %659
  %661 = vrot.lane.b32.xlu0 %v558, 112
  %v662 = vpop.permute.xlu0 %661
  %663 = vrot.lane.b32.xlu0 %v561, 112
  %v664 = vpop.permute.xlu0 %663
  %665 = vrot.lane.b32.xlu0 %v564, 112
  %v666 = vpop.permute.xlu0 %665
  %667 = vrot.lane.b32.xlu0 %v567, 112
  %v668 = vpop.permute.xlu0 %667
  %669 = vrot.lane.b32.xlu0 %v570, 112
  %v670 = vpop.permute.xlu0 %669
  %671 = vrot.lane.b32.xlu0 %v573, 112
  %v672 = vpop.permute.xlu0 %671
  %673 = vrot.lane.b32.xlu0 %v576, 112
  %v674 = vpop.permute.xlu0 %673
  %675 = vrot.lane.b32.xlu0 %v579, 112
  %v676 = vpop.permute.xlu0 %675
  %677 = vrot.lane.b32.xlu0 %v558, 104
  %v678 = vpop.permute.xlu0 %677
  %679 = vrot.lane.b32.xlu0 %v561, 104
  %v680 = vpop.permute.xlu0 %679
  %681 = vrot.lane.b32.xlu0 %v564, 104
  %v682 = vpop.permute.xlu0 %681
  %683 = vrot.lane.b32.xlu0 %v567, 104
  %v684 = vpop.permute.xlu0 %683
  %685 = vrot.lane.b32.xlu0 %v570, 104
  %v686 = vpop.permute.xlu0 %685
  %687 = vrot.lane.b32.xlu0 %v573, 104
  %v688 = vpop.permute.xlu0 %687
  %689 = vrot.lane.b32.xlu0 %v576, 104
  %v690 = vpop.permute.xlu0 %689
  %691 = vrot.lane.b32.xlu0 %v579, 104
  %v692 = vpop.permute.xlu0 %691
  %693 = vrot.lane.b32.xlu0 %v534, 96
  %v694 = vpop.permute.xlu0 %693
  %695 = vrot.lane.b32.xlu0 %v537, 96
  %v696 = vpop.permute.xlu0 %695
  %697 = vrot.lane.b32.xlu0 %v540, 96
  %v698 = vpop.permute.xlu0 %697
  %699 = vrot.lane.b32.xlu0 %v543, 96
  %v700 = vpop.permute.xlu0 %699
  %701 = vrot.lane.b32.xlu0 %v546, 96
  %v702 = vpop.permute.xlu0 %701
  %703 = vrot.lane.b32.xlu0 %v549, 96
  %v704 = vpop.permute.xlu0 %703
  %705 = vrot.lane.b32.xlu0 %v552, 96
  %v706 = vpop.permute.xlu0 %705
  %707 = vrot.lane.b32.xlu0 %v555, 96
  %v708 = vpop.permute.xlu0 %707
  %vm709 = vcmask 64512
  %v710 = vsel %vm709, %v534, 0
  %v712 = vsel %vm709, %v537, 0
  %v714 = vsel %vm709, %v540, 0
  %v716 = vsel %vm709, %v543, 0
  %v718 = vsel %vm709, %v546, 0
  %v720 = vsel %vm709, %v549, 0
  %v722 = vsel %vm709, %v552, 0
  %v724 = vsel %vm709, %v555, 0
  %v726 = vsel %vm709, %v694, 0
  %v728 = vsel %vm709, %v696, 0
  %v730 = vsel %vm709, %v698, 0
  %v732 = vsel %vm709, %v700, 0
  %v734 = vsel %vm709, %v702, 0
  %v736 = vsel %vm709, %v704, 0
  %v738 = vsel %vm709, %v706, 0
  %v740 = vsel %vm709, %v708, 0
  %742 = vmatpush.xpose.msra.mxu0 0.0
  %743 = vmatpush.xpose.msra.mxu0 0.0
  %744 = vmatpush.xpose.msra.mxu0 0.0
  %745 = vmatpush.xpose.msra.mxu0 0.0
  %746 = vmatpush.xpose.msra.mxu0 0.0
  %747 = vmatpush.xpose.msra.mxu0 0.0
  %748 = vmatpush.xpose.msra.mxu0 0.0
  %749 = vmatpush.xpose.msra.mxu0 0.0
  %750 = vmatpush.xpose.msra.mxu0 %v740
  %751 = vmatpush.xpose.msra.mxu0 %v738
  %752 = vmatpush.xpose.msra.mxu0 %v736
  %753 = vmatpush.xpose.msra.mxu0 %v734
  %754 = vmatpush.xpose.msra.mxu0 %v732
  %755 = vmatpush.xpose.msra.mxu0 %v730
  %756 = vmatpush.xpose.msra.mxu0 %v728
  %757 = vmatpush.xpose.msra.mxu0 %v726
  %758 = vmatmul.f32.gmra.mxu0 %v710
  %v759 = vpop.f32.mrf.mxu0
  %v760 = vadd.f32 0.0, %v759
  %761 = vmatmul.f32.gmra.mxu0 %v712
  %v762 = vpop.f32.mrf.mxu0
  %v763 = vadd.f32 0.0, %v762
  %764 = vmatmul.f32.gmra.mxu0 %v714
  %v765 = vpop.f32.mrf.mxu0
  %v766 = vadd.f32 0.0, %v765
  %767 = vmatmul.f32.gmra.mxu0 %v716
  %v768 = vpop.f32.mrf.mxu0
  %v769 = vadd.f32 0.0, %v768
  %770 = vmatmul.f32.gmra.mxu0 %v718
  %v771 = vpop.f32.mrf.mxu0
  %v772 = vadd.f32 0.0, %v771
  %773 = vmatmul.f32.gmra.mxu0 %v720
  %v774 = vpop.f32.mrf.mxu0
  %v775 = vadd.f32 0.0, %v774
  %776 = vmatmul.f32.gmra.mxu0 %v722
  %v777 = vpop.f32.mrf.mxu0
  %v778 = vadd.f32 0.0, %v777
  %779 = vmatmul.f32.gmra.mxu0 %v724
  %v780 = vpop.f32.mrf.mxu0
  %v781 = vadd.f32 0.0, %v780
  %782 = vdwg.mxu0
  %783 = vrot.lane.b32.xlu0 %v590, 96
  %v784 = vpop.permute.xlu0 %783
  %785 = vrot.lane.b32.xlu0 %v592, 96
  %v786 = vpop.permute.xlu0 %785
  %787 = vrot.lane.b32.xlu0 %v594, 96
  %v788 = vpop.permute.xlu0 %787
  %789 = vrot.lane.b32.xlu0 %v596, 96
  %v790 = vpop.permute.xlu0 %789
  %791 = vrot.lane.b32.xlu0 %v598, 96
  %v792 = vpop.permute.xlu0 %791
  %793 = vrot.lane.b32.xlu0 %v600, 96
  %v794 = vpop.permute.xlu0 %793
  %795 = vrot.lane.b32.xlu0 %v602, 96
  %v796 = vpop.permute.xlu0 %795
  %797 = vrot.lane.b32.xlu0 %v604, 96
  %v798 = vpop.permute.xlu0 %797
  %v799 = vsel %vm709, %v590, 0
  %v801 = vsel %vm709, %v592, 0
  %v803 = vsel %vm709, %v594, 0
  %v805 = vsel %vm709, %v596, 0
  %v807 = vsel %vm709, %v598, 0
  %v809 = vsel %vm709, %v600, 0
  %v811 = vsel %vm709, %v602, 0
  %v813 = vsel %vm709, %v604, 0
  %v815 = vsel %vm709, %v784, 0
  %v817 = vsel %vm709, %v786, 0
  %v819 = vsel %vm709, %v788, 0
  %v821 = vsel %vm709, %v790, 0
  %v823 = vsel %vm709, %v792, 0
  %v825 = vsel %vm709, %v794, 0
  %v827 = vsel %vm709, %v796, 0
  %v829 = vsel %vm709, %v798, 0
  %831 = vmatpush.xpose.msra.mxu0 0.0
  %832 = vmatpush.xpose.msra.mxu0 0.0
  %833 = vmatpush.xpose.msra.mxu0 0.0
  %834 = vmatpush.xpose.msra.mxu0 0.0
  %835 = vmatpush.xpose.msra.mxu0 0.0
  %836 = vmatpush.xpose.msra.mxu0 0.0
  %837 = vmatpush.xpose.msra.mxu0 0.0
  %838 = vmatpush.xpose.msra.mxu0 0.0
  %839 = vmatpush.xpose.msra.mxu0 %v829
  %840 = vmatpush.xpose.msra.mxu0 %v827
  %841 = vmatpush.xpose.msra.mxu0 %v825
  %842 = vmatpush.xpose.msra.mxu0 %v823
  %843 = vmatpush.xpose.msra.mxu0 %v821
  %844 = vmatpush.xpose.msra.mxu0 %v819
  %845 = vmatpush.xpose.msra.mxu0 %v817
  %846 = vmatpush.xpose.msra.mxu0 %v815
  %847 = vmatmul.f32.gmra.mxu0 %v799
  %v848 = vpop.f32.mrf.mxu0
  %v849 = vadd.f32 0.0, %v848
  %850 = vmatmul.f32.gmra.mxu0 %v801
  %v851 = vpop.f32.mrf.mxu0
  %v852 = vadd.f32 0.0, %v851
  %853 = vmatmul.f32.gmra.mxu0 %v803
  %v854 = vpop.f32.mrf.mxu0
  %v855 = vadd.f32 0.0, %v854
  %856 = vmatmul.f32.gmra.mxu0 %v805
  %v857 = vpop.f32.mrf.mxu0
  %v858 = vadd.f32 0.0, %v857
  %859 = vmatmul.f32.gmra.mxu0 %v807
  %v860 = vpop.f32.mrf.mxu0
  %v861 = vadd.f32 0.0, %v860
  %862 = vmatmul.f32.gmra.mxu0 %v809
  %v863 = vpop.f32.mrf.mxu0
  %v864 = vadd.f32 0.0, %v863
  %865 = vmatmul.f32.gmra.mxu0 %v811
  %v866 = vpop.f32.mrf.mxu0
  %v867 = vadd.f32 0.0, %v866
  %868 = vmatmul.f32.gmra.mxu0 %v813
  %v869 = vpop.f32.mrf.mxu0
  %v870 = vadd.f32 0.0, %v869
  %871 = vdwg.mxu0
  %872 = vrot.lane.b32.xlu0 %v606, 96
  %v873 = vpop.permute.xlu0 %872
  %874 = vrot.lane.b32.xlu0 %v608, 96
  %v875 = vpop.permute.xlu0 %874
  %876 = vrot.lane.b32.xlu0 %v610, 96
  %v877 = vpop.permute.xlu0 %876
  %878 = vrot.lane.b32.xlu0 %v612, 96
  %v879 = vpop.permute.xlu0 %878
  %880 = vrot.lane.b32.xlu0 %v614, 96
  %v881 = vpop.permute.xlu0 %880
  %882 = vrot.lane.b32.xlu0 %v616, 96
  %v883 = vpop.permute.xlu0 %882
  %884 = vrot.lane.b32.xlu0 %v618, 96
  %v885 = vpop.permute.xlu0 %884
  %886 = vrot.lane.b32.xlu0 %v620, 96
  %v887 = vpop.permute.xlu0 %886
  %v888 = vsel %vm709, %v606, 0
  %v890 = vsel %vm709, %v608, 0
  %v892 = vsel %vm709, %v610, 0
  %v894 = vsel %vm709, %v612, 0
  %v896 = vsel %vm709, %v614, 0
  %v898 = vsel %vm709, %v616, 0
  %v900 = vsel %vm709, %v618, 0
  %v902 = vsel %vm709, %v620, 0
  %v904 = vsel %vm709, %v873, 0
  %v906 = vsel %vm709, %v875, 0
  %v908 = vsel %vm709, %v877, 0
  %v910 = vsel %vm709, %v879, 0
  %v912 = vsel %vm709, %v881, 0
  %v914 = vsel %vm709, %v883, 0
  %v916 = vsel %vm709, %v885, 0
  %v918 = vsel %vm709, %v887, 0
  %920 = vmatpush.xpose.msra.mxu0 0.0
  %921 = vmatpush.xpose.msra.mxu0 0.0
  %922 = vmatpush.xpose.msra.mxu0 0.0
  %923 = vmatpush.xpose.msra.mxu0 0.0
  %924 = vmatpush.xpose.msra.mxu0 0.0
  %925 = vmatpush.xpose.msra.mxu0 0.0
  %926 = vmatpush.xpose.msra.mxu0 0.0
  %927 = vmatpush.xpose.msra.mxu0 0.0
  %928 = vmatpush.xpose.msra.mxu0 %v918
  %929 = vmatpush.xpose.msra.mxu0 %v916
  %930 = vmatpush.xpose.msra.mxu0 %v914
  %931 = vmatpush.xpose.msra.mxu0 %v912
  %932 = vmatpush.xpose.msra.mxu0 %v910
  %933 = vmatpush.xpose.msra.mxu0 %v908
  %934 = vmatpush.xpose.msra.mxu0 %v906
  %935 = vmatpush.xpose.msra.mxu0 %v904
  %936 = vmatmul.f32.gmra.mxu0 %v888
  %v937 = vpop.f32.mrf.mxu0
  %v938 = vadd.f32 0.0, %v937
  %939 = vmatmul.f32.gmra.mxu0 %v890
  %v940 = vpop.f32.mrf.mxu0
  %v941 = vadd.f32 0.0, %v940
  %942 = vmatmul.f32.gmra.mxu0 %v892
  %v943 = vpop.f32.mrf.mxu0
  %v944 = vadd.f32 0.0, %v943
  %945 = vmatmul.f32.gmra.mxu0 %v894
  %v946 = vpop.f32.mrf.mxu0
  %v947 = vadd.f32 0.0, %v946
  %948 = vmatmul.f32.gmra.mxu0 %v896
  %v949 = vpop.f32.mrf.mxu0
  %v950 = vadd.f32 0.0, %v949
  %951 = vmatmul.f32.gmra.mxu0 %v898
  %v952 = vpop.f32.mrf.mxu0
  %v953 = vadd.f32 0.0, %v952
  %954 = vmatmul.f32.gmra.mxu0 %v900
  %v955 = vpop.f32.mrf.mxu0
  %v956 = vadd.f32 0.0, %v955
  %957 = vmatmul.f32.gmra.mxu0 %v902
  %v958 = vpop.f32.mrf.mxu0
  %v959 = vadd.f32 0.0, %v958
  %960 = vdwg.mxu0
  %961 = vrot.lane.b32.xlu0 %v622, 96
  %v962 = vpop.permute.xlu0 %961
  %963 = vrot.lane.b32.xlu0 %v624, 96
  %v964 = vpop.permute.xlu0 %963
  %965 = vrot.lane.b32.xlu0 %v626, 96
  %v966 = vpop.permute.xlu0 %965
  %967 = vrot.lane.b32.xlu0 %v628, 96
  %v968 = vpop.permute.xlu0 %967
  %969 = vrot.lane.b32.xlu0 %v630, 96
  %v970 = vpop.permute.xlu0 %969
  %971 = vrot.lane.b32.xlu0 %v632, 96
  %v972 = vpop.permute.xlu0 %971
  %973 = vrot.lane.b32.xlu0 %v634, 96
  %v974 = vpop.permute.xlu0 %973
  %975 = vrot.lane.b32.xlu0 %v636, 96
  %v976 = vpop.permute.xlu0 %975
  %v977 = vsel %vm709, %v622, 0
  %v979 = vsel %vm709, %v624, 0
  %v981 = vsel %vm709, %v626, 0
  %v983 = vsel %vm709, %v628, 0
  %v985 = vsel %vm709, %v630, 0
  %v987 = vsel %vm709, %v632, 0
  %v989 = vsel %vm709, %v634, 0
  %v991 = vsel %vm709, %v636, 0
  %v993 = vsel %vm709, %v962, 0
  %v995 = vsel %vm709, %v964, 0
  %v997 = vsel %vm709, %v966, 0
  %v999 = vsel %vm709, %v968, 0
  %v1001 = vsel %vm709, %v970, 0
  %v1003 = vsel %vm709, %v972, 0
  %v1005 = vsel %vm709, %v974, 0
  %v1007 = vsel %vm709, %v976, 0
  %1009 = vmatpush.xpose.msra.mxu0 0.0
  %1010 = vmatpush.xpose.msra.mxu0 0.0
  %1011 = vmatpush.xpose.msra.mxu0 0.0
  %1012 = vmatpush.xpose.msra.mxu0 0.0
  %1013 = vmatpush.xpose.msra.mxu0 0.0
  %1014 = vmatpush.xpose.msra.mxu0 0.0
  %1015 = vmatpush.xpose.msra.mxu0 0.0
  %1016 = vmatpush.xpose.msra.mxu0 0.0
  %1017 = vmatpush.xpose.msra.mxu0 %v1007
  %1018 = vmatpush.xpose.msra.mxu0 %v1005
  %1019 = vmatpush.xpose.msra.mxu0 %v1003
  %1020 = vmatpush.xpose.msra.mxu0 %v1001
  %1021 = vmatpush.xpose.msra.mxu0 %v999
  %1022 = vmatpush.xpose.msra.mxu0 %v997
  %1023 = vmatpush.xpose.msra.mxu0 %v995
  %1024 = vmatpush.xpose.msra.mxu0 %v993
  %1025 = vmatmul.f32.gmra.mxu0 %v977
  %v1026 = vpop.f32.mrf.mxu0
  %v1027 = vadd.f32 0.0, %v1026
  %1028 = vmatmul.f32.gmra.mxu0 %v979
  %v1029 = vpop.f32.mrf.mxu0
  %v1030 = vadd.f32 0.0, %v1029
  %1031 = vmatmul.f32.gmra.mxu0 %v981
  %v1032 = vpop.f32.mrf.mxu0
  %v1033 = vadd.f32 0.0, %v1032
  %1034 = vmatmul.f32.gmra.mxu0 %v983
  %v1035 = vpop.f32.mrf.mxu0
  %v1036 = vadd.f32 0.0, %v1035
  %1037 = vmatmul.f32.gmra.mxu0 %v985
  %v1038 = vpop.f32.mrf.mxu0
  %v1039 = vadd.f32 0.0, %v1038
  %1040 = vmatmul.f32.gmra.mxu0 %v987
  %v1041 = vpop.f32.mrf.mxu0
  %v1042 = vadd.f32 0.0, %v1041
  %1043 = vmatmul.f32.gmra.mxu0 %v989
  %v1044 = vpop.f32.mrf.mxu0
  %v1045 = vadd.f32 0.0, %v1044
  %1046 = vmatmul.f32.gmra.mxu0 %v991
  %v1047 = vpop.f32.mrf.mxu0
  %v1048 = vadd.f32 0.0, %v1047
  %1049 = vdwg.mxu0
  %1050 = vrot.lane.b32.xlu0 %v558, 96
  %v1051 = vpop.permute.xlu0 %1050
  %1052 = vrot.lane.b32.xlu0 %v561, 96
  %v1053 = vpop.permute.xlu0 %1052
  %1054 = vrot.lane.b32.xlu0 %v564, 96
  %v1055 = vpop.permute.xlu0 %1054
  %1056 = vrot.lane.b32.xlu0 %v567, 96
  %v1057 = vpop.permute.xlu0 %1056
  %1058 = vrot.lane.b32.xlu0 %v570, 96
  %v1059 = vpop.permute.xlu0 %1058
  %1060 = vrot.lane.b32.xlu0 %v573, 96
  %v1061 = vpop.permute.xlu0 %1060
  %1062 = vrot.lane.b32.xlu0 %v576, 96
  %v1063 = vpop.permute.xlu0 %1062
  %1064 = vrot.lane.b32.xlu0 %v579, 96
  %v1065 = vpop.permute.xlu0 %1064
  %v1066 = vsel %vm709, %v558, 0
  %v1068 = vsel %vm709, %v561, 0
  %v1070 = vsel %vm709, %v564, 0
  %v1072 = vsel %vm709, %v567, 0
  %v1074 = vsel %vm709, %v570, 0
  %v1076 = vsel %vm709, %v573, 0
  %v1078 = vsel %vm709, %v576, 0
  %v1080 = vsel %vm709, %v579, 0
  %v1082 = vsel %vm709, %v1051, 0
  %v1084 = vsel %vm709, %v1053, 0
  %v1086 = vsel %vm709, %v1055, 0
  %v1088 = vsel %vm709, %v1057, 0
  %v1090 = vsel %vm709, %v1059, 0
  %v1092 = vsel %vm709, %v1061, 0
  %v1094 = vsel %vm709, %v1063, 0
  %v1096 = vsel %vm709, %v1065, 0
  %1098 = vmatpush.xpose.msra.mxu0 0.0
  %1099 = vmatpush.xpose.msra.mxu0 0.0
  %1100 = vmatpush.xpose.msra.mxu0 0.0
  %1101 = vmatpush.xpose.msra.mxu0 0.0
  %1102 = vmatpush.xpose.msra.mxu0 0.0
  %1103 = vmatpush.xpose.msra.mxu0 0.0
  %1104 = vmatpush.xpose.msra.mxu0 0.0
  %1105 = vmatpush.xpose.msra.mxu0 0.0
  %1106 = vmatpush.xpose.msra.mxu0 %v1096
  %1107 = vmatpush.xpose.msra.mxu0 %v1094
  %1108 = vmatpush.xpose.msra.mxu0 %v1092
  %1109 = vmatpush.xpose.msra.mxu0 %v1090
  %1110 = vmatpush.xpose.msra.mxu0 %v1088
  %1111 = vmatpush.xpose.msra.mxu0 %v1086
  %1112 = vmatpush.xpose.msra.mxu0 %v1084
  %1113 = vmatpush.xpose.msra.mxu0 %v1082
  %1114 = vmatmul.f32.gmra.mxu0 %v1066
  %v1115 = vpop.f32.mrf.mxu0
  %v1116 = vadd.f32 0.0, %v1115
  %1117 = vmatmul.f32.gmra.mxu0 %v1068
  %v1118 = vpop.f32.mrf.mxu0
  %v1119 = vadd.f32 0.0, %v1118
  %1120 = vmatmul.f32.gmra.mxu0 %v1070
  %v1121 = vpop.f32.mrf.mxu0
  %v1122 = vadd.f32 0.0, %v1121
  %1123 = vmatmul.f32.gmra.mxu0 %v1072
  %v1124 = vpop.f32.mrf.mxu0
  %v1125 = vadd.f32 0.0, %v1124
  %1126 = vmatmul.f32.gmra.mxu0 %v1074
  %v1127 = vpop.f32.mrf.mxu0
  %v1128 = vadd.f32 0.0, %v1127
  %1129 = vmatmul.f32.gmra.mxu0 %v1076
  %v1130 = vpop.f32.mrf.mxu0
  %v1131 = vadd.f32 0.0, %v1130
  %1132 = vmatmul.f32.gmra.mxu0 %v1078
  %v1133 = vpop.f32.mrf.mxu0
  %v1134 = vadd.f32 0.0, %v1133
  %1135 = vmatmul.f32.gmra.mxu0 %v1080
  %v1136 = vpop.f32.mrf.mxu0
  %v1137 = vadd.f32 0.0, %v1136
  %1138 = vdwg.mxu0
  %1139 = vrot.lane.b32.xlu0 %v646, 96
  %v1140 = vpop.permute.xlu0 %1139
  %1141 = vrot.lane.b32.xlu0 %v648, 96
  %v1142 = vpop.permute.xlu0 %1141
  %1143 = vrot.lane.b32.xlu0 %v650, 96
  %v1144 = vpop.permute.xlu0 %1143
  %1145 = vrot.lane.b32.xlu0 %v652, 96
  %v1146 = vpop.permute.xlu0 %1145
  %1147 = vrot.lane.b32.xlu0 %v654, 96
  %v1148 = vpop.permute.xlu0 %1147
  %1149 = vrot.lane.b32.xlu0 %v656, 96
  %v1150 = vpop.permute.xlu0 %1149
  %1151 = vrot.lane.b32.xlu0 %v658, 96
  %v1152 = vpop.permute.xlu0 %1151
  %1153 = vrot.lane.b32.xlu0 %v660, 96
  %v1154 = vpop.permute.xlu0 %1153
  %v1155 = vsel %vm709, %v646, 0
  %v1157 = vsel %vm709, %v648, 0
  %v1159 = vsel %vm709, %v650, 0
  %v1161 = vsel %vm709, %v652, 0
  %v1163 = vsel %vm709, %v654, 0
  %v1165 = vsel %vm709, %v656, 0
  %v1167 = vsel %vm709, %v658, 0
  %v1169 = vsel %vm709, %v660, 0
  %v1171 = vsel %vm709, %v1140, 0
  %v1173 = vsel %vm709, %v1142, 0
  %v1175 = vsel %vm709, %v1144, 0
  %v1177 = vsel %vm709, %v1146, 0
  %v1179 = vsel %vm709, %v1148, 0
  %v1181 = vsel %vm709, %v1150, 0
  %v1183 = vsel %vm709, %v1152, 0
  %v1185 = vsel %vm709, %v1154, 0
  %1187 = vmatpush.xpose.msra.mxu0 0.0
  %1188 = vmatpush.xpose.msra.mxu0 0.0
  %1189 = vmatpush.xpose.msra.mxu0 0.0
  %1190 = vmatpush.xpose.msra.mxu0 0.0
  %1191 = vmatpush.xpose.msra.mxu0 0.0
  %1192 = vmatpush.xpose.msra.mxu0 0.0
  %1193 = vmatpush.xpose.msra.mxu0 0.0
  %1194 = vmatpush.xpose.msra.mxu0 0.0
  %1195 = vmatpush.xpose.msra.mxu0 %v1185
  %1196 = vmatpush.xpose.msra.mxu0 %v1183
  %1197 = vmatpush.xpose.msra.mxu0 %v1181
  %1198 = vmatpush.xpose.msra.mxu0 %v1179
  %1199 = vmatpush.xpose.msra.mxu0 %v1177
  %1200 = vmatpush.xpose.msra.mxu0 %v1175
  %1201 = vmatpush.xpose.msra.mxu0 %v1173
  %1202 = vmatpush.xpose.msra.mxu0 %v1171
  %1203 = vmatmul.f32.gmra.mxu0 %v1155
  %v1204 = vpop.f32.mrf.mxu0
  %v1205 = vadd.f32 0.0, %v1204
  %1206 = vmatmul.f32.gmra.mxu0 %v1157
  %v1207 = vpop.f32.mrf.mxu0
  %v1208 = vadd.f32 0.0, %v1207
  %1209 = vmatmul.f32.gmra.mxu0 %v1159
  %v1210 = vpop.f32.mrf.mxu0
  %v1211 = vadd.f32 0.0, %v1210
  %1212 = vmatmul.f32.gmra.mxu0 %v1161
  %v1213 = vpop.f32.mrf.mxu0
  %v1214 = vadd.f32 0.0, %v1213
  %1215 = vmatmul.f32.gmra.mxu0 %v1163
  %v1216 = vpop.f32.mrf.mxu0
  %v1217 = vadd.f32 0.0, %v1216
  %1218 = vmatmul.f32.gmra.mxu0 %v1165
  %v1219 = vpop.f32.mrf.mxu0
  %v1220 = vadd.f32 0.0, %v1219
  %1221 = vmatmul.f32.gmra.mxu0 %v1167
  %v1222 = vpop.f32.mrf.mxu0
  %v1223 = vadd.f32 0.0, %v1222
  %1224 = vmatmul.f32.gmra.mxu0 %v1169
  %v1225 = vpop.f32.mrf.mxu0
  %v1226 = vadd.f32 0.0, %v1225
  %1227 = vdwg.mxu0
  %1228 = vrot.lane.b32.xlu0 %v662, 96
  %v1229 = vpop.permute.xlu0 %1228
  %1230 = vrot.lane.b32.xlu0 %v664, 96
  %v1231 = vpop.permute.xlu0 %1230
  %1232 = vrot.lane.b32.xlu0 %v666, 96
  %v1233 = vpop.permute.xlu0 %1232
  %1234 = vrot.lane.b32.xlu0 %v668, 96
  %v1235 = vpop.permute.xlu0 %1234
  %1236 = vrot.lane.b32.xlu0 %v670, 96
  %v1237 = vpop.permute.xlu0 %1236
  %1238 = vrot.lane.b32.xlu0 %v672, 96
  %v1239 = vpop.permute.xlu0 %1238
  %1240 = vrot.lane.b32.xlu0 %v674, 96
  %v1241 = vpop.permute.xlu0 %1240
  %1242 = vrot.lane.b32.xlu0 %v676, 96
  %v1243 = vpop.permute.xlu0 %1242
  %v1244 = vsel %vm709, %v662, 0
  %v1246 = vsel %vm709, %v664, 0
  %v1248 = vsel %vm709, %v666, 0
  %v1250 = vsel %vm709, %v668, 0
  %v1252 = vsel %vm709, %v670, 0
  %v1254 = vsel %vm709, %v672, 0
  %v1256 = vsel %vm709, %v674, 0
  %v1258 = vsel %vm709, %v676, 0
  %v1260 = vsel %vm709, %v1229, 0
  %v1262 = vsel %vm709, %v1231, 0
  %v1264 = vsel %vm709, %v1233, 0
  %v1266 = vsel %vm709, %v1235, 0
  %v1268 = vsel %vm709, %v1237, 0
  %v1270 = vsel %vm709, %v1239, 0
  %v1272 = vsel %vm709, %v1241, 0
  %v1274 = vsel %vm709, %v1243, 0
  %1276 = vmatpush.xpose.msra.mxu0 0.0
  %1277 = vmatpush.xpose.msra.mxu0 0.0
  %1278 = vmatpush.xpose.msra.mxu0 0.0
  %1279 = vmatpush.xpose.msra.mxu0 0.0
  %1280 = vmatpush.xpose.msra.mxu0 0.0
  %1281 = vmatpush.xpose.msra.mxu0 0.0
  %1282 = vmatpush.xpose.msra.mxu0 0.0
  %1283 = vmatpush.xpose.msra.mxu0 0.0
  %1284 = vmatpush.xpose.msra.mxu0 %v1274
  %1285 = vmatpush.xpose.msra.mxu0 %v1272
  %1286 = vmatpush.xpose.msra.mxu0 %v1270
  %1287 = vmatpush.xpose.msra.mxu0 %v1268
  %1288 = vmatpush.xpose.msra.mxu0 %v1266
  %1289 = vmatpush.xpose.msra.mxu0 %v1264
  %1290 = vmatpush.xpose.msra.mxu0 %v1262
  %1291 = vmatpush.xpose.msra.mxu0 %v1260
  %1292 = vmatmul.f32.gmra.mxu0 %v1244
  %v1293 = vpop.f32.mrf.mxu0
  %v1294 = vadd.f32 0.0, %v1293
  %1295 = vmatmul.f32.gmra.mxu0 %v1246
  %v1296 = vpop.f32.mrf.mxu0
  %v1297 = vadd.f32 0.0, %v1296
  %1298 = vmatmul.f32.gmra.mxu0 %v1248
  %v1299 = vpop.f32.mrf.mxu0
  %v1300 = vadd.f32 0.0, %v1299
  %1301 = vmatmul.f32.gmra.mxu0 %v1250
  %v1302 = vpop.f32.mrf.mxu0
  %v1303 = vadd.f32 0.0, %v1302
  %1304 = vmatmul.f32.gmra.mxu0 %v1252
  %v1305 = vpop.f32.mrf.mxu0
  %v1306 = vadd.f32 0.0, %v1305
  %1307 = vmatmul.f32.gmra.mxu0 %v1254
  %v1308 = vpop.f32.mrf.mxu0
  %v1309 = vadd.f32 0.0, %v1308
  %1310 = vmatmul.f32.gmra.mxu0 %v1256
  %v1311 = vpop.f32.mrf.mxu0
  %v1312 = vadd.f32 0.0, %v1311
  %1313 = vmatmul.f32.gmra.mxu0 %v1258
  %v1314 = vpop.f32.mrf.mxu0
  %v1315 = vadd.f32 0.0, %v1314
  %1316 = vdwg.mxu0
  %1317 = vrot.lane.b32.xlu0 %v678, 96
  %v1318 = vpop.permute.xlu0 %1317
  %1319 = vrot.lane.b32.xlu0 %v680, 96
  %v1320 = vpop.permute.xlu0 %1319
  %1321 = vrot.lane.b32.xlu0 %v682, 96
  %v1322 = vpop.permute.xlu0 %1321
  %1323 = vrot.lane.b32.xlu0 %v684, 96
  %v1324 = vpop.permute.xlu0 %1323
  %1325 = vrot.lane.b32.xlu0 %v686, 96
  %v1326 = vpop.permute.xlu0 %1325
  %1327 = vrot.lane.b32.xlu0 %v688, 96
  %v1328 = vpop.permute.xlu0 %1327
  %1329 = vrot.lane.b32.xlu0 %v690, 96
  %v1330 = vpop.permute.xlu0 %1329
  %1331 = vrot.lane.b32.xlu0 %v692, 96
  %v1332 = vpop.permute.xlu0 %1331
  %v1333 = vsel %vm709, %v678, 0
  %v1335 = vsel %vm709, %v680, 0
  %v1337 = vsel %vm709, %v682, 0
  %v1339 = vsel %vm709, %v684, 0
  %v1341 = vsel %vm709, %v686, 0
  %v1343 = vsel %vm709, %v688, 0
  %v1345 = vsel %vm709, %v690, 0
  %v1347 = vsel %vm709, %v692, 0
  %v1349 = vsel %vm709, %v1318, 0
  %v1351 = vsel %vm709, %v1320, 0
  %v1353 = vsel %vm709, %v1322, 0
  %v1355 = vsel %vm709, %v1324, 0
  %v1357 = vsel %vm709, %v1326, 0
  %v1359 = vsel %vm709, %v1328, 0
  %v1361 = vsel %vm709, %v1330, 0
  %v1363 = vsel %vm709, %v1332, 0
  %1365 = vmatpush.xpose.msra.mxu0 0.0
  %1366 = vmatpush.xpose.msra.mxu0 0.0
  %1367 = vmatpush.xpose.msra.mxu0 0.0
  %1368 = vmatpush.xpose.msra.mxu0 0.0
  %1369 = vmatpush.xpose.msra.mxu0 0.0
  %1370 = vmatpush.xpose.msra.mxu0 0.0
  %1371 = vmatpush.xpose.msra.mxu0 0.0
  %1372 = vmatpush.xpose.msra.mxu0 0.0
  %1373 = vmatpush.xpose.msra.mxu0 %v1363
  %1374 = vmatpush.xpose.msra.mxu0 %v1361
  %1375 = vmatpush.xpose.msra.mxu0 %v1359
  %1376 = vmatpush.xpose.msra.mxu0 %v1357
  %1377 = vmatpush.xpose.msra.mxu0 %v1355
  %1378 = vmatpush.xpose.msra.mxu0 %v1353
  %1379 = vmatpush.xpose.msra.mxu0 %v1351
  %1380 = vmatpush.xpose.msra.mxu0 %v1349
  %1381 = vmatmul.f32.gmra.mxu0 %v1333
  %v1382 = vpop.f32.mrf.mxu0
  %v1383 = vadd.f32 0.0, %v1382
  %1384 = vmatmul.f32.gmra.mxu0 %v1335
  %v1385 = vpop.f32.mrf.mxu0
  %v1386 = vadd.f32 0.0, %v1385
  %1387 = vmatmul.f32.gmra.mxu0 %v1337
  %v1388 = vpop.f32.mrf.mxu0
  %v1389 = vadd.f32 0.0, %v1388
  %1390 = vmatmul.f32.gmra.mxu0 %v1339
  %v1391 = vpop.f32.mrf.mxu0
  %v1392 = vadd.f32 0.0, %v1391
  %1393 = vmatmul.f32.gmra.mxu0 %v1341
  %v1394 = vpop.f32.mrf.mxu0
  %v1395 = vadd.f32 0.0, %v1394
  %1396 = vmatmul.f32.gmra.mxu0 %v1343
  %v1397 = vpop.f32.mrf.mxu0
  %v1398 = vadd.f32 0.0, %v1397
  %1399 = vmatmul.f32.gmra.mxu0 %v1345
  %v1400 = vpop.f32.mrf.mxu0
  %v1401 = vadd.f32 0.0, %v1400
  %1402 = vmatmul.f32.gmra.mxu0 %v1347
  %v1403 = vpop.f32.mrf.mxu0
  %v1404 = vadd.f32 0.0, %v1403
  %1405 = vdwg.mxu0
  %vm1406 = vcmask 523264
  %v1407 = vsel %vm1406, %v760, -inf
  %1408 = vmax.xlane.f32.xlu0 %v1407
  %v1409 = vpop.xlane.xlu0 %1408
  %v1410 = vsel %vm1406, %v763, -inf
  %1411 = vmax.xlane.f32.xlu0 %v1410
  %v1412 = vpop.xlane.xlu0 %1411
  %v1413 = vsel %vm1406, %v766, -inf
  %1414 = vmax.xlane.f32.xlu0 %v1413
  %v1415 = vpop.xlane.xlu0 %1414
  %v1416 = vsel %vm1406, %v769, -inf
  %1417 = vmax.xlane.f32.xlu0 %v1416
  %v1418 = vpop.xlane.xlu0 %1417
  %v1419 = vsel %vm1406, %v772, -inf
  %1420 = vmax.xlane.f32.xlu0 %v1419
  %v1421 = vpop.xlane.xlu0 %1420
  %v1422 = vsel %vm1406, %v775, -inf
  %1423 = vmax.xlane.f32.xlu0 %v1422
  %v1424 = vpop.xlane.xlu0 %1423
  %v1425 = vsel %vm1406, %v778, -inf
  %1426 = vmax.xlane.f32.xlu0 %v1425
  %v1427 = vpop.xlane.xlu0 %1426
  %v1428 = vsel %vm1406, %v781, -inf
  %1429 = vmax.xlane.f32.xlu0 %v1428
  %v1430 = vpop.xlane.xlu0 %1429
  %v1431 = vsel %vm1406, %v849, -inf
  %1432 = vmax.xlane.f32.xlu0 %v1431
  %v1433 = vpop.xlane.xlu0 %1432
  %v1434 = vsel %vm1406, %v852, -inf
  %1435 = vmax.xlane.f32.xlu0 %v1434
  %v1436 = vpop.xlane.xlu0 %1435
  %v1437 = vsel %vm1406, %v855, -inf
  %1438 = vmax.xlane.f32.xlu0 %v1437
  %v1439 = vpop.xlane.xlu0 %1438
  %v1440 = vsel %vm1406, %v858, -inf
  %1441 = vmax.xlane.f32.xlu0 %v1440
  %v1442 = vpop.xlane.xlu0 %1441
  %v1443 = vsel %vm1406, %v861, -inf
  %1444 = vmax.xlane.f32.xlu0 %v1443
  %v1445 = vpop.xlane.xlu0 %1444
  %v1446 = vsel %vm1406, %v864, -inf
  %1447 = vmax.xlane.f32.xlu0 %v1446
  %v1448 = vpop.xlane.xlu0 %1447
  %v1449 = vsel %vm1406, %v867, -inf
  %1450 = vmax.xlane.f32.xlu0 %v1449
  %v1451 = vpop.xlane.xlu0 %1450
  %v1452 = vsel %vm1406, %v870, -inf
  %1453 = vmax.xlane.f32.xlu0 %v1452
  %v1454 = vpop.xlane.xlu0 %1453
  %v1455 = vsel %vm1406, %v938, -inf
  %1456 = vmax.xlane.f32.xlu0 %v1455
  %v1457 = vpop.xlane.xlu0 %1456
  %v1458 = vsel %vm1406, %v941, -inf
  %1459 = vmax.xlane.f32.xlu0 %v1458
  %v1460 = vpop.xlane.xlu0 %1459
  %v1461 = vsel %vm1406, %v944, -inf
  %1462 = vmax.xlane.f32.xlu0 %v1461
  %v1463 = vpop.xlane.xlu0 %1462
  %v1464 = vsel %vm1406, %v947, -inf
  %1465 = vmax.xlane.f32.xlu0 %v1464
  %v1466 = vpop.xlane.xlu0 %1465
  %v1467 = vsel %vm1406, %v950, -inf
  %1468 = vmax.xlane.f32.xlu0 %v1467
  %v1469 = vpop.xlane.xlu0 %1468
  %v1470 = vsel %vm1406, %v953, -inf
  %1471 = vmax.xlane.f32.xlu0 %v1470
  %v1472 = vpop.xlane.xlu0 %1471
  %v1473 = vsel %vm1406, %v956, -inf
  %1474 = vmax.xlane.f32.xlu0 %v1473
  %v1475 = vpop.xlane.xlu0 %1474
  %v1476 = vsel %vm1406, %v959, -inf
  %1477 = vmax.xlane.f32.xlu0 %v1476
  %v1478 = vpop.xlane.xlu0 %1477
  %v1479 = vsel %vm1406, %v1027, -inf
  %1480 = vmax.xlane.f32.xlu0 %v1479
  %v1481 = vpop.xlane.xlu0 %1480
  %v1482 = vsel %vm1406, %v1030, -inf
  %1483 = vmax.xlane.f32.xlu0 %v1482
  %v1484 = vpop.xlane.xlu0 %1483
  %v1485 = vsel %vm1406, %v1033, -inf
  %1486 = vmax.xlane.f32.xlu0 %v1485
  %v1487 = vpop.xlane.xlu0 %1486
  %v1488 = vsel %vm1406, %v1036, -inf
  %1489 = vmax.xlane.f32.xlu0 %v1488
  %v1490 = vpop.xlane.xlu0 %1489
  %v1491 = vsel %vm1406, %v1039, -inf
  %1492 = vmax.xlane.f32.xlu0 %v1491
  %v1493 = vpop.xlane.xlu0 %1492
  %v1494 = vsel %vm1406, %v1042, -inf
  %1495 = vmax.xlane.f32.xlu0 %v1494
  %v1496 = vpop.xlane.xlu0 %1495
  %v1497 = vsel %vm1406, %v1045, -inf
  %1498 = vmax.xlane.f32.xlu0 %v1497
  %v1499 = vpop.xlane.xlu0 %1498
  %v1500 = vsel %vm1406, %v1048, -inf
  %1501 = vmax.xlane.f32.xlu0 %v1500
  %v1502 = vpop.xlane.xlu0 %1501
  %v1503 = vsel %vm1406, %v1116, -inf
  %1504 = vmax.xlane.f32.xlu0 %v1503
  %v1505 = vpop.xlane.xlu0 %1504
  %v1506 = vsel %vm1406, %v1119, -inf
  %1507 = vmax.xlane.f32.xlu0 %v1506
  %v1508 = vpop.xlane.xlu0 %1507
  %v1509 = vsel %vm1406, %v1122, -inf
  %1510 = vmax.xlane.f32.xlu0 %v1509
  %v1511 = vpop.xlane.xlu0 %1510
  %v1512 = vsel %vm1406, %v1125, -inf
  %1513 = vmax.xlane.f32.xlu0 %v1512
  %v1514 = vpop.xlane.xlu0 %1513
  %v1515 = vsel %vm1406, %v1128, -inf
  %1516 = vmax.xlane.f32.xlu0 %v1515
  %v1517 = vpop.xlane.xlu0 %1516
  %v1518 = vsel %vm1406, %v1131, -inf
  %1519 = vmax.xlane.f32.xlu0 %v1518
  %v1520 = vpop.xlane.xlu0 %1519
  %v1521 = vsel %vm1406, %v1134, -inf
  %1522 = vmax.xlane.f32.xlu0 %v1521
  %v1523 = vpop.xlane.xlu0 %1522
  %v1524 = vsel %vm1406, %v1137, -inf
  %1525 = vmax.xlane.f32.xlu0 %v1524
  %v1526 = vpop.xlane.xlu0 %1525
  %v1527 = vsel %vm1406, %v1205, -inf
  %1528 = vmax.xlane.f32.xlu0 %v1527
  %v1529 = vpop.xlane.xlu0 %1528
  %v1530 = vsel %vm1406, %v1208, -inf
  %1531 = vmax.xlane.f32.xlu0 %v1530
  %v1532 = vpop.xlane.xlu0 %1531
  %v1533 = vsel %vm1406, %v1211, -inf
  %1534 = vmax.xlane.f32.xlu0 %v1533
  %v1535 = vpop.xlane.xlu0 %1534
  %v1536 = vsel %vm1406, %v1214, -inf
  %1537 = vmax.xlane.f32.xlu0 %v1536
  %v1538 = vpop.xlane.xlu0 %1537
  %v1539 = vsel %vm1406, %v1217, -inf
  %1540 = vmax.xlane.f32.xlu0 %v1539
  %v1541 = vpop.xlane.xlu0 %1540
  %v1542 = vsel %vm1406, %v1220, -inf
  %1543 = vmax.xlane.f32.xlu0 %v1542
  %v1544 = vpop.xlane.xlu0 %1543
  %v1545 = vsel %vm1406, %v1223, -inf
  %1546 = vmax.xlane.f32.xlu0 %v1545
  %v1547 = vpop.xlane.xlu0 %1546
  %v1548 = vsel %vm1406, %v1226, -inf
  %1549 = vmax.xlane.f32.xlu0 %v1548
  %v1550 = vpop.xlane.xlu0 %1549
  %v1551 = vsel %vm1406, %v1294, -inf
  %1552 = vmax.xlane.f32.xlu0 %v1551
  %v1553 = vpop.xlane.xlu0 %1552
  %v1554 = vsel %vm1406, %v1297, -inf
  %1555 = vmax.xlane.f32.xlu0 %v1554
  %v1556 = vpop.xlane.xlu0 %1555
  %v1557 = vsel %vm1406, %v1300, -inf
  %1558 = vmax.xlane.f32.xlu0 %v1557
  %v1559 = vpop.xlane.xlu0 %1558
  %v1560 = vsel %vm1406, %v1303, -inf
  %1561 = vmax.xlane.f32.xlu0 %v1560
  %v1562 = vpop.xlane.xlu0 %1561
  %v1563 = vsel %vm1406, %v1306, -inf
  %1564 = vmax.xlane.f32.xlu0 %v1563
  %v1565 = vpop.xlane.xlu0 %1564
  %v1566 = vsel %vm1406, %v1309, -inf
  %1567 = vmax.xlane.f32.xlu0 %v1566
  %v1568 = vpop.xlane.xlu0 %1567
  %v1569 = vsel %vm1406, %v1312, -inf
  %1570 = vmax.xlane.f32.xlu0 %v1569
  %v1571 = vpop.xlane.xlu0 %1570
  %v1572 = vsel %vm1406, %v1315, -inf
  %1573 = vmax.xlane.f32.xlu0 %v1572
  %v1574 = vpop.xlane.xlu0 %1573
  %v1575 = vsel %vm1406, %v1383, -inf
  %1576 = vmax.xlane.f32.xlu0 %v1575
  %v1577 = vpop.xlane.xlu0 %1576
  %v1578 = vsel %vm1406, %v1386, -inf
  %1579 = vmax.xlane.f32.xlu0 %v1578
  %v1580 = vpop.xlane.xlu0 %1579
  %v1581 = vsel %vm1406, %v1389, -inf
  %1582 = vmax.xlane.f32.xlu0 %v1581
  %v1583 = vpop.xlane.xlu0 %1582
  %v1584 = vsel %vm1406, %v1392, -inf
  %1585 = vmax.xlane.f32.xlu0 %v1584
  %v1586 = vpop.xlane.xlu0 %1585
  %v1587 = vsel %vm1406, %v1395, -inf
  %1588 = vmax.xlane.f32.xlu0 %v1587
  %v1589 = vpop.xlane.xlu0 %1588
  %v1590 = vsel %vm1406, %v1398, -inf
  %1591 = vmax.xlane.f32.xlu0 %v1590
  %v1592 = vpop.xlane.xlu0 %1591
  %v1593 = vsel %vm1406, %v1401, -inf
  %1594 = vmax.xlane.f32.xlu0 %v1593
  %v1595 = vpop.xlane.xlu0 %1594
  %v1596 = vsel %vm1406, %v1404, -inf
  %1597 = vmax.xlane.f32.xlu0 %v1596
  %v1598 = vpop.xlane.xlu0 %1597
  %v1599 = vsub.f32 %v760, %v1409
  %v1600 = vsub.f32 %v763, %v1412
  %v1601 = vsub.f32 %v766, %v1415
  %v1602 = vsub.f32 %v769, %v1418
  %v1603 = vsub.f32 %v772, %v1421
  %v1604 = vsub.f32 %v775, %v1424
  %v1605 = vsub.f32 %v778, %v1427
  %v1606 = vsub.f32 %v781, %v1430
  %v1607 = vsub.f32 %v849, %v1433
  %v1608 = vsub.f32 %v852, %v1436
  %v1609 = vsub.f32 %v855, %v1439
  %v1610 = vsub.f32 %v858, %v1442
  %v1611 = vsub.f32 %v861, %v1445
  %v1612 = vsub.f32 %v864, %v1448
  %v1613 = vsub.f32 %v867, %v1451
  %v1614 = vsub.f32 %v870, %v1454
  %v1615 = vsub.f32 %v938, %v1457
  %v1616 = vsub.f32 %v941, %v1460
  %v1617 = vsub.f32 %v944, %v1463
  %v1618 = vsub.f32 %v947, %v1466
  %v1619 = vsub.f32 %v950, %v1469
  %v1620 = vsub.f32 %v953, %v1472
  %v1621 = vsub.f32 %v956, %v1475
  %v1622 = vsub.f32 %v959, %v1478
  %v1623 = vsub.f32 %v1027, %v1481
  %v1624 = vsub.f32 %v1030, %v1484
  %v1625 = vsub.f32 %v1033, %v1487
  %v1626 = vsub.f32 %v1036, %v1490
  %v1627 = vsub.f32 %v1039, %v1493
  %v1628 = vsub.f32 %v1042, %v1496
  %v1629 = vsub.f32 %v1045, %v1499
  %v1630 = vsub.f32 %v1048, %v1502
  %v1631 = vsub.f32 %v1116, %v1505
  %v1632 = vsub.f32 %v1119, %v1508
  %v1633 = vsub.f32 %v1122, %v1511
  %v1634 = vsub.f32 %v1125, %v1514
  %v1635 = vsub.f32 %v1128, %v1517
  %v1636 = vsub.f32 %v1131, %v1520
  %v1637 = vsub.f32 %v1134, %v1523
  %v1638 = vsub.f32 %v1137, %v1526
  %v1639 = vsub.f32 %v1205, %v1529
  %v1640 = vsub.f32 %v1208, %v1532
  %v1641 = vsub.f32 %v1211, %v1535
  %v1642 = vsub.f32 %v1214, %v1538
  %v1643 = vsub.f32 %v1217, %v1541
  %v1644 = vsub.f32 %v1220, %v1544
  %v1645 = vsub.f32 %v1223, %v1547
  %v1646 = vsub.f32 %v1226, %v1550
  %v1647 = vsub.f32 %v1294, %v1553
  %v1648 = vsub.f32 %v1297, %v1556
  %v1649 = vsub.f32 %v1300, %v1559
  %v1650 = vsub.f32 %v1303, %v1562
  %v1651 = vsub.f32 %v1306, %v1565
  %v1652 = vsub.f32 %v1309, %v1568
  %v1653 = vsub.f32 %v1312, %v1571
  %v1654 = vsub.f32 %v1315, %v1574
  %v1655 = vsub.f32 %v1383, %v1577
  %v1656 = vsub.f32 %v1386, %v1580
  %v1657 = vsub.f32 %v1389, %v1583
  %v1658 = vsub.f32 %v1392, %v1586
  %v1659 = vsub.f32 %v1395, %v1589
  %v1660 = vsub.f32 %v1398, %v1592
  %v1661 = vsub.f32 %v1401, %v1595
  %v1662 = vsub.f32 %v1404, %v1598
  %v1663 = vmul.f32 %v1599, 1.442695
  %v1664 = vpow.pop %v1663
  %v1665 = vmul.f32 %v1600, 1.442695
  %v1666 = vpow.pop %v1665
  %v1667 = vmul.f32 %v1601, 1.442695
  %v1668 = vpow.pop %v1667
  %v1669 = vmul.f32 %v1602, 1.442695
  %v1670 = vpow.pop %v1669
  %v1671 = vmul.f32 %v1603, 1.442695
  %v1672 = vpow.pop %v1671
  %v1673 = vmul.f32 %v1604, 1.442695
  %v1674 = vpow.pop %v1673
  %v1675 = vmul.f32 %v1605, 1.442695
  %v1676 = vpow.pop %v1675
  %v1677 = vmul.f32 %v1606, 1.442695
  %v1678 = vpow.pop %v1677
  %v1679 = vmul.f32 %v1607, 1.442695
  %v1680 = vpow.pop %v1679
  %v1681 = vmul.f32 %v1608, 1.442695
  %v1682 = vpow.pop %v1681
  %v1683 = vmul.f32 %v1609, 1.442695
  %v1684 = vpow.pop %v1683
  %v1685 = vmul.f32 %v1610, 1.442695
  %v1686 = vpow.pop %v1685
  %v1687 = vmul.f32 %v1611, 1.442695
  %v1688 = vpow.pop %v1687
  %v1689 = vmul.f32 %v1612, 1.442695
  %v1690 = vpow.pop %v1689
  %v1691 = vmul.f32 %v1613, 1.442695
  %v1692 = vpow.pop %v1691
  %v1693 = vmul.f32 %v1614, 1.442695
  %v1694 = vpow.pop %v1693
  %v1695 = vmul.f32 %v1615, 1.442695
  %v1696 = vpow.pop %v1695
  %v1697 = vmul.f32 %v1616, 1.442695
  %v1698 = vpow.pop %v1697
  %v1699 = vmul.f32 %v1617, 1.442695
  %v1700 = vpow.pop %v1699
  %v1701 = vmul.f32 %v1618, 1.442695
  %v1702 = vpow.pop %v1701
  %v1703 = vmul.f32 %v1619, 1.442695
  %v1704 = vpow.pop %v1703
  %v1705 = vmul.f32 %v1620, 1.442695
  %v1706 = vpow.pop %v1705
  %v1707 = vmul.f32 %v1621, 1.442695
  %v1708 = vpow.pop %v1707
  %v1709 = vmul.f32 %v1622, 1.442695
  %v1710 = vpow.pop %v1709
  %v1711 = vmul.f32 %v1623, 1.442695
  %v1712 = vpow.pop %v1711
  %v1713 = vmul.f32 %v1624, 1.442695
  %v1714 = vpow.pop %v1713
  %v1715 = vmul.f32 %v1625, 1.442695
  %v1716 = vpow.pop %v1715
  %v1717 = vmul.f32 %v1626, 1.442695
  %v1718 = vpow.pop %v1717
  %v1719 = vmul.f32 %v1627, 1.442695
  %v1720 = vpow.pop %v1719
  %v1721 = vmul.f32 %v1628, 1.442695
  %v1722 = vpow.pop %v1721
  %v1723 = vmul.f32 %v1629, 1.442695
  %v1724 = vpow.pop %v1723
  %v1725 = vmul.f32 %v1630, 1.442695
  %v1726 = vpow.pop %v1725
  %v1727 = vmul.f32 %v1631, 1.442695
  %v1728 = vpow.pop %v1727
  %v1729 = vmul.f32 %v1632, 1.442695
  %v1730 = vpow.pop %v1729
  %v1731 = vmul.f32 %v1633, 1.442695
  %v1732 = vpow.pop %v1731
  %v1733 = vmul.f32 %v1634, 1.442695
  %v1734 = vpow.pop %v1733
  %v1735 = vmul.f32 %v1635, 1.442695
  %v1736 = vpow.pop %v1735
  %v1737 = vmul.f32 %v1636, 1.442695
  %v1738 = vpow.pop %v1737
  %v1739 = vmul.f32 %v1637, 1.442695
  %v1740 = vpow.pop %v1739
  %v1741 = vmul.f32 %v1638, 1.442695
  %v1742 = vpow.pop %v1741
  %v1743 = vmul.f32 %v1639, 1.442695
  %v1744 = vpow.pop %v1743
  %v1745 = vmul.f32 %v1640, 1.442695
  %v1746 = vpow.pop %v1745
  %v1747 = vmul.f32 %v1641, 1.442695
  %v1748 = vpow.pop %v1747
  %v1749 = vmul.f32 %v1642, 1.442695
  %v1750 = vpow.pop %v1749
  %v1751 = vmul.f32 %v1643, 1.442695
  %v1752 = vpow.pop %v1751
  %v1753 = vmul.f32 %v1644, 1.442695
  %v1754 = vpow.pop %v1753
  %v1755 = vmul.f32 %v1645, 1.442695
  %v1756 = vpow.pop %v1755
  %v1757 = vmul.f32 %v1646, 1.442695
  %v1758 = vpow.pop %v1757
  %v1759 = vmul.f32 %v1647, 1.442695
  %v1760 = vpow.pop %v1759
  %v1761 = vmul.f32 %v1648, 1.442695
  %v1762 = vpow.pop %v1761
  %v1763 = vmul.f32 %v1649, 1.442695
  %v1764 = vpow.pop %v1763
  %v1765 = vmul.f32 %v1650, 1.442695
  %v1766 = vpow.pop %v1765
  %v1767 = vmul.f32 %v1651, 1.442695
  %v1768 = vpow.pop %v1767
  %v1769 = vmul.f32 %v1652, 1.442695
  %v1770 = vpow.pop %v1769
  %v1771 = vmul.f32 %v1653, 1.442695
  %v1772 = vpow.pop %v1771
  %v1773 = vmul.f32 %v1654, 1.442695
  %v1774 = vpow.pop %v1773
  %v1775 = vmul.f32 %v1655, 1.442695
  %v1776 = vpow.pop %v1775
  %v1777 = vmul.f32 %v1656, 1.442695
  %v1778 = vpow.pop %v1777
  %v1779 = vmul.f32 %v1657, 1.442695
  %v1780 = vpow.pop %v1779
  %v1781 = vmul.f32 %v1658, 1.442695
  %v1782 = vpow.pop %v1781
  %v1783 = vmul.f32 %v1659, 1.442695
  %v1784 = vpow.pop %v1783
  %v1785 = vmul.f32 %v1660, 1.442695
  %v1786 = vpow.pop %v1785
  %v1787 = vmul.f32 %v1661, 1.442695
  %v1788 = vpow.pop %v1787
  %v1789 = vmul.f32 %v1662, 1.442695
  %v1790 = vpow.pop %v1789
  %v1791 = vsel %vm1406, %v1664, 0.0
  %1792 = vadd.xlane.f32.xlu0 %v1791
  %v1793 = vpop.xlane.xlu0 %1792
  %v1794 = vsel %vm1406, %v1666, 0.0
  %1795 = vadd.xlane.f32.xlu0 %v1794
  %v1796 = vpop.xlane.xlu0 %1795
  %v1797 = vsel %vm1406, %v1668, 0.0
  %1798 = vadd.xlane.f32.xlu0 %v1797
  %v1799 = vpop.xlane.xlu0 %1798
  %v1800 = vsel %vm1406, %v1670, 0.0
  %1801 = vadd.xlane.f32.xlu0 %v1800
  %v1802 = vpop.xlane.xlu0 %1801
  %v1803 = vsel %vm1406, %v1672, 0.0
  %1804 = vadd.xlane.f32.xlu0 %v1803
  %v1805 = vpop.xlane.xlu0 %1804
  %v1806 = vsel %vm1406, %v1674, 0.0
  %1807 = vadd.xlane.f32.xlu0 %v1806
  %v1808 = vpop.xlane.xlu0 %1807
  %v1809 = vsel %vm1406, %v1676, 0.0
  %1810 = vadd.xlane.f32.xlu0 %v1809
  %v1811 = vpop.xlane.xlu0 %1810
  %v1812 = vsel %vm1406, %v1678, 0.0
  %1813 = vadd.xlane.f32.xlu0 %v1812
  %v1814 = vpop.xlane.xlu0 %1813
  %v1815 = vsel %vm1406, %v1680, 0.0
  %1816 = vadd.xlane.f32.xlu0 %v1815
  %v1817 = vpop.xlane.xlu0 %1816
  %v1818 = vsel %vm1406, %v1682, 0.0
  %1819 = vadd.xlane.f32.xlu0 %v1818
  %v1820 = vpop.xlane.xlu0 %1819
  %v1821 = vsel %vm1406, %v1684, 0.0
  %1822 = vadd.xlane.f32.xlu0 %v1821
  %v1823 = vpop.xlane.xlu0 %1822
  %v1824 = vsel %vm1406, %v1686, 0.0
  %1825 = vadd.xlane.f32.xlu0 %v1824
  %v1826 = vpop.xlane.xlu0 %1825
  %v1827 = vsel %vm1406, %v1688, 0.0
  %1828 = vadd.xlane.f32.xlu0 %v1827
  %v1829 = vpop.xlane.xlu0 %1828
  %v1830 = vsel %vm1406, %v1690, 0.0
  %1831 = vadd.xlane.f32.xlu0 %v1830
  %v1832 = vpop.xlane.xlu0 %1831
  %v1833 = vsel %vm1406, %v1692, 0.0
  %1834 = vadd.xlane.f32.xlu0 %v1833
  %v1835 = vpop.xlane.xlu0 %1834
  %v1836 = vsel %vm1406, %v1694, 0.0
  %1837 = vadd.xlane.f32.xlu0 %v1836
  %v1838 = vpop.xlane.xlu0 %1837
  %v1839 = vsel %vm1406, %v1696, 0.0
  %1840 = vadd.xlane.f32.xlu0 %v1839
  %v1841 = vpop.xlane.xlu0 %1840
  %v1842 = vsel %vm1406, %v1698, 0.0
  %1843 = vadd.xlane.f32.xlu0 %v1842
  %v1844 = vpop.xlane.xlu0 %1843
  %v1845 = vsel %vm1406, %v1700, 0.0
  %1846 = vadd.xlane.f32.xlu0 %v1845
  %v1847 = vpop.xlane.xlu0 %1846
  %v1848 = vsel %vm1406, %v1702, 0.0
  %1849 = vadd.xlane.f32.xlu0 %v1848
  %v1850 = vpop.xlane.xlu0 %1849
  %v1851 = vsel %vm1406, %v1704, 0.0
  %1852 = vadd.xlane.f32.xlu0 %v1851
  %v1853 = vpop.xlane.xlu0 %1852
  %v1854 = vsel %vm1406, %v1706, 0.0
  %1855 = vadd.xlane.f32.xlu0 %v1854
  %v1856 = vpop.xlane.xlu0 %1855
  %v1857 = vsel %vm1406, %v1708, 0.0
  %1858 = vadd.xlane.f32.xlu0 %v1857
  %v1859 = vpop.xlane.xlu0 %1858
  %v1860 = vsel %vm1406, %v1710, 0.0
  %1861 = vadd.xlane.f32.xlu0 %v1860
  %v1862 = vpop.xlane.xlu0 %1861
  %v1863 = vsel %vm1406, %v1712, 0.0
  %1864 = vadd.xlane.f32.xlu0 %v1863
  %v1865 = vpop.xlane.xlu0 %1864
  %v1866 = vsel %vm1406, %v1714, 0.0
  %1867 = vadd.xlane.f32.xlu0 %v1866
  %v1868 = vpop.xlane.xlu0 %1867
  %v1869 = vsel %vm1406, %v1716, 0.0
  %1870 = vadd.xlane.f32.xlu0 %v1869
  %v1871 = vpop.xlane.xlu0 %1870
  %v1872 = vsel %vm1406, %v1718, 0.0
  %1873 = vadd.xlane.f32.xlu0 %v1872
  %v1874 = vpop.xlane.xlu0 %1873
  %v1875 = vsel %vm1406, %v1720, 0.0
  %1876 = vadd.xlane.f32.xlu0 %v1875
  %v1877 = vpop.xlane.xlu0 %1876
  %v1878 = vsel %vm1406, %v1722, 0.0
  %1879 = vadd.xlane.f32.xlu0 %v1878
  %v1880 = vpop.xlane.xlu0 %1879
  %v1881 = vsel %vm1406, %v1724, 0.0
  %1882 = vadd.xlane.f32.xlu0 %v1881
  %v1883 = vpop.xlane.xlu0 %1882
  %v1884 = vsel %vm1406, %v1726, 0.0
  %1885 = vadd.xlane.f32.xlu0 %v1884
  %v1886 = vpop.xlane.xlu0 %1885
  %v1887 = vsel %vm1406, %v1728, 0.0
  %1888 = vadd.xlane.f32.xlu0 %v1887
  %v1889 = vpop.xlane.xlu0 %1888
  %v1890 = vsel %vm1406, %v1730, 0.0
  %1891 = vadd.xlane.f32.xlu0 %v1890
  %v1892 = vpop.xlane.xlu0 %1891
  %v1893 = vsel %vm1406, %v1732, 0.0
  %1894 = vadd.xlane.f32.xlu0 %v1893
  %v1895 = vpop.xlane.xlu0 %1894
  %v1896 = vsel %vm1406, %v1734, 0.0
  %1897 = vadd.xlane.f32.xlu0 %v1896
  %v1898 = vpop.xlane.xlu0 %1897
  %v1899 = vsel %vm1406, %v1736, 0.0
  %1900 = vadd.xlane.f32.xlu0 %v1899
  %v1901 = vpop.xlane.xlu0 %1900
  %v1902 = vsel %vm1406, %v1738, 0.0
  %1903 = vadd.xlane.f32.xlu0 %v1902
  %v1904 = vpop.xlane.xlu0 %1903
  %v1905 = vsel %vm1406, %v1740, 0.0
  %1906 = vadd.xlane.f32.xlu0 %v1905
  %v1907 = vpop.xlane.xlu0 %1906
  %v1908 = vsel %vm1406, %v1742, 0.0
  %1909 = vadd.xlane.f32.xlu0 %v1908
  %v1910 = vpop.xlane.xlu0 %1909
  %v1911 = vsel %vm1406, %v1744, 0.0
  %1912 = vadd.xlane.f32.xlu0 %v1911
  %v1913 = vpop.xlane.xlu0 %1912
  %v1914 = vsel %vm1406, %v1746, 0.0
  %1915 = vadd.xlane.f32.xlu0 %v1914
  %v1916 = vpop.xlane.xlu0 %1915
  %v1917 = vsel %vm1406, %v1748, 0.0
  %1918 = vadd.xlane.f32.xlu0 %v1917
  %v1919 = vpop.xlane.xlu0 %1918
  %v1920 = vsel %vm1406, %v1750, 0.0
  %1921 = vadd.xlane.f32.xlu0 %v1920
  %v1922 = vpop.xlane.xlu0 %1921
  %v1923 = vsel %vm1406, %v1752, 0.0
  %1924 = vadd.xlane.f32.xlu0 %v1923
  %v1925 = vpop.xlane.xlu0 %1924
  %v1926 = vsel %vm1406, %v1754, 0.0
  %1927 = vadd.xlane.f32.xlu0 %v1926
  %v1928 = vpop.xlane.xlu0 %1927
  %v1929 = vsel %vm1406, %v1756, 0.0
  %1930 = vadd.xlane.f32.xlu0 %v1929
  %v1931 = vpop.xlane.xlu0 %1930
  %v1932 = vsel %vm1406, %v1758, 0.0
  %1933 = vadd.xlane.f32.xlu0 %v1932
  %v1934 = vpop.xlane.xlu0 %1933
  %v1935 = vsel %vm1406, %v1760, 0.0
  %1936 = vadd.xlane.f32.xlu0 %v1935
  %v1937 = vpop.xlane.xlu0 %1936
  %v1938 = vsel %vm1406, %v1762, 0.0
  %1939 = vadd.xlane.f32.xlu0 %v1938
  %v1940 = vpop.xlane.xlu0 %1939
  %v1941 = vsel %vm1406, %v1764, 0.0
  %1942 = vadd.xlane.f32.xlu0 %v1941
  %v1943 = vpop.xlane.xlu0 %1942
  %v1944 = vsel %vm1406, %v1766, 0.0
  %1945 = vadd.xlane.f32.xlu0 %v1944
  %v1946 = vpop.xlane.xlu0 %1945
  %v1947 = vsel %vm1406, %v1768, 0.0
  %1948 = vadd.xlane.f32.xlu0 %v1947
  %v1949 = vpop.xlane.xlu0 %1948
  %v1950 = vsel %vm1406, %v1770, 0.0
  %1951 = vadd.xlane.f32.xlu0 %v1950
  %v1952 = vpop.xlane.xlu0 %1951
  %v1953 = vsel %vm1406, %v1772, 0.0
  %1954 = vadd.xlane.f32.xlu0 %v1953
  %v1955 = vpop.xlane.xlu0 %1954
  %v1956 = vsel %vm1406, %v1774, 0.0
  %1957 = vadd.xlane.f32.xlu0 %v1956
  %v1958 = vpop.xlane.xlu0 %1957
  %v1959 = vsel %vm1406, %v1776, 0.0
  %1960 = vadd.xlane.f32.xlu0 %v1959
  %v1961 = vpop.xlane.xlu0 %1960
  %v1962 = vsel %vm1406, %v1778, 0.0
  %1963 = vadd.xlane.f32.xlu0 %v1962
  %v1964 = vpop.xlane.xlu0 %1963
  %v1965 = vsel %vm1406, %v1780, 0.0
  %1966 = vadd.xlane.f32.xlu0 %v1965
  %v1967 = vpop.xlane.xlu0 %1966
  %v1968 = vsel %vm1406, %v1782, 0.0
  %1969 = vadd.xlane.f32.xlu0 %v1968
  %v1970 = vpop.xlane.xlu0 %1969
  %v1971 = vsel %vm1406, %v1784, 0.0
  %1972 = vadd.xlane.f32.xlu0 %v1971
  %v1973 = vpop.xlane.xlu0 %1972
  %v1974 = vsel %vm1406, %v1786, 0.0
  %1975 = vadd.xlane.f32.xlu0 %v1974
  %v1976 = vpop.xlane.xlu0 %1975
  %v1977 = vsel %vm1406, %v1788, 0.0
  %1978 = vadd.xlane.f32.xlu0 %v1977
  %v1979 = vpop.xlane.xlu0 %1978
  %v1980 = vsel %vm1406, %v1790, 0.0
  %1981 = vadd.xlane.f32.xlu0 %v1980
  %v1982 = vpop.xlane.xlu0 %1981
  %v1983 = vrcp.pop %v1793
  %v1984 = vmul.f32 %v1793, %v1983
  %v1985 = vsub.f32 1.0, %v1984
  %v1986 = vmul.f32 %v1983, %v1985
  %v1987 = vadd.f32 %v1983, %v1986
  %vm1988 = vweird.f32 %v1793
  %vm1989 = vweird.f32 %v1983
  %vm1990 = vmor %vm1988, %vm1989
  %v1991 = vsel %vm1990, %v1983, %v1987
  %v1992 = vand.u32 2147483647, %v1793
  %vm1993 = vcmp.eq.f32.partialorder %v1992, 8.507059e+37
  %v1994 = vand.u32 %v1793, 2147483648
  %v1995 = vor.u32 1.1754944e-38, %v1994
  %v1996 = vsel %vm1993, %v1995, %v1991
  %v1997 = vrcp.pop %v1796
  %v1998 = vmul.f32 %v1796, %v1997
  %v1999 = vsub.f32 1.0, %v1998
  %v2000 = vmul.f32 %v1997, %v1999
  %v2001 = vadd.f32 %v1997, %v2000
  %vm2002 = vweird.f32 %v1796
  %vm2003 = vweird.f32 %v1997
  %vm2004 = vmor %vm2002, %vm2003
  %v2005 = vsel %vm2004, %v1997, %v2001
  %v2006 = vand.u32 2147483647, %v1796
  %vm2007 = vcmp.eq.f32.partialorder %v2006, 8.507059e+37
  %v2008 = vand.u32 %v1796, 2147483648
  %v2009 = vor.u32 1.1754944e-38, %v2008
  %v2010 = vsel %vm2007, %v2009, %v2005
  %v2011 = vrcp.pop %v1799
  %v2012 = vmul.f32 %v1799, %v2011
  %v2013 = vsub.f32 1.0, %v2012
  %v2014 = vmul.f32 %v2011, %v2013
  %v2015 = vadd.f32 %v2011, %v2014
  %vm2016 = vweird.f32 %v1799
  %vm2017 = vweird.f32 %v2011
  %vm2018 = vmor %vm2016, %vm2017
  %v2019 = vsel %vm2018, %v2011, %v2015
  %v2020 = vand.u32 2147483647, %v1799
  %vm2021 = vcmp.eq.f32.partialorder %v2020, 8.507059e+37
  %v2022 = vand.u32 %v1799, 2147483648
  %v2023 = vor.u32 1.1754944e-38, %v2022
  %v2024 = vsel %vm2021, %v2023, %v2019
  %v2025 = vrcp.pop %v1802
  %v2026 = vmul.f32 %v1802, %v2025
  %v2027 = vsub.f32 1.0, %v2026
  %v2028 = vmul.f32 %v2025, %v2027
  %v2029 = vadd.f32 %v2025, %v2028
  %vm2030 = vweird.f32 %v1802
  %vm2031 = vweird.f32 %v2025
  %vm2032 = vmor %vm2030, %vm2031
  %v2033 = vsel %vm2032, %v2025, %v2029
  %v2034 = vand.u32 2147483647, %v1802
  %vm2035 = vcmp.eq.f32.partialorder %v2034, 8.507059e+37
  %v2036 = vand.u32 %v1802, 2147483648
  %v2037 = vor.u32 1.1754944e-38, %v2036
  %v2038 = vsel %vm2035, %v2037, %v2033
  %v2039 = vrcp.pop %v1805
  %v2040 = vmul.f32 %v1805, %v2039
  %v2041 = vsub.f32 1.0, %v2040
  %v2042 = vmul.f32 %v2039, %v2041
  %v2043 = vadd.f32 %v2039, %v2042
  %vm2044 = vweird.f32 %v1805
  %vm2045 = vweird.f32 %v2039
  %vm2046 = vmor %vm2044, %vm2045
  %v2047 = vsel %vm2046, %v2039, %v2043
  %v2048 = vand.u32 2147483647, %v1805
  %vm2049 = vcmp.eq.f32.partialorder %v2048, 8.507059e+37
  %v2050 = vand.u32 %v1805, 2147483648
  %v2051 = vor.u32 1.1754944e-38, %v2050
  %v2052 = vsel %vm2049, %v2051, %v2047
  %v2053 = vrcp.pop %v1808
  %v2054 = vmul.f32 %v1808, %v2053
  %v2055 = vsub.f32 1.0, %v2054
  %v2056 = vmul.f32 %v2053, %v2055
  %v2057 = vadd.f32 %v2053, %v2056
  %vm2058 = vweird.f32 %v1808
  %vm2059 = vweird.f32 %v2053
  %vm2060 = vmor %vm2058, %vm2059
  %v2061 = vsel %vm2060, %v2053, %v2057
  %v2062 = vand.u32 2147483647, %v1808
  %vm2063 = vcmp.eq.f32.partialorder %v2062, 8.507059e+37
  %v2064 = vand.u32 %v1808, 2147483648
  %v2065 = vor.u32 1.1754944e-38, %v2064
  %v2066 = vsel %vm2063, %v2065, %v2061
  %v2067 = vrcp.pop %v1811
  %v2068 = vmul.f32 %v1811, %v2067
  %v2069 = vsub.f32 1.0, %v2068
  %v2070 = vmul.f32 %v2067, %v2069
  %v2071 = vadd.f32 %v2067, %v2070
  %vm2072 = vweird.f32 %v1811
  %vm2073 = vweird.f32 %v2067
  %vm2074 = vmor %vm2072, %vm2073
  %v2075 = vsel %vm2074, %v2067, %v2071
  %v2076 = vand.u32 2147483647, %v1811
  %vm2077 = vcmp.eq.f32.partialorder %v2076, 8.507059e+37
  %v2078 = vand.u32 %v1811, 2147483648
  %v2079 = vor.u32 1.1754944e-38, %v2078
  %v2080 = vsel %vm2077, %v2079, %v2075
  %v2081 = vrcp.pop %v1814
  %v2082 = vmul.f32 %v1814, %v2081
  %v2083 = vsub.f32 1.0, %v2082
  %v2084 = vmul.f32 %v2081, %v2083
  %v2085 = vadd.f32 %v2081, %v2084
  %vm2086 = vweird.f32 %v1814
  %vm2087 = vweird.f32 %v2081
  %vm2088 = vmor %vm2086, %vm2087
  %v2089 = vsel %vm2088, %v2081, %v2085
  %v2090 = vand.u32 2147483647, %v1814
  %vm2091 = vcmp.eq.f32.partialorder %v2090, 8.507059e+37
  %v2092 = vand.u32 %v1814, 2147483648
  %v2093 = vor.u32 1.1754944e-38, %v2092
  %v2094 = vsel %vm2091, %v2093, %v2089
  %v2095 = vrcp.pop %v1817
  %v2096 = vmul.f32 %v1817, %v2095
  %v2097 = vsub.f32 1.0, %v2096
  %v2098 = vmul.f32 %v2095, %v2097
  %v2099 = vadd.f32 %v2095, %v2098
  %vm2100 = vweird.f32 %v1817
  %vm2101 = vweird.f32 %v2095
  %vm2102 = vmor %vm2100, %vm2101
  %v2103 = vsel %vm2102, %v2095, %v2099
  %v2104 = vand.u32 2147483647, %v1817
  %vm2105 = vcmp.eq.f32.partialorder %v2104, 8.507059e+37
  %v2106 = vand.u32 %v1817, 2147483648
  %v2107 = vor.u32 1.1754944e-38, %v2106
  %v2108 = vsel %vm2105, %v2107, %v2103
  %v2109 = vrcp.pop %v1820
  %v2110 = vmul.f32 %v1820, %v2109
  %v2111 = vsub.f32 1.0, %v2110
  %v2112 = vmul.f32 %v2109, %v2111
  %v2113 = vadd.f32 %v2109, %v2112
  %vm2114 = vweird.f32 %v1820
  %vm2115 = vweird.f32 %v2109
  %vm2116 = vmor %vm2114, %vm2115
  %v2117 = vsel %vm2116, %v2109, %v2113
  %v2118 = vand.u32 2147483647, %v1820
  %vm2119 = vcmp.eq.f32.partialorder %v2118, 8.507059e+37
  %v2120 = vand.u32 %v1820, 2147483648
  %v2121 = vor.u32 1.1754944e-38, %v2120
  %v2122 = vsel %vm2119, %v2121, %v2117
  %v2123 = vrcp.pop %v1823
  %v2124 = vmul.f32 %v1823, %v2123
  %v2125 = vsub.f32 1.0, %v2124
  %v2126 = vmul.f32 %v2123, %v2125
  %v2127 = vadd.f32 %v2123, %v2126
  %vm2128 = vweird.f32 %v1823
  %vm2129 = vweird.f32 %v2123
  %vm2130 = vmor %vm2128, %vm2129
  %v2131 = vsel %vm2130, %v2123, %v2127
  %v2132 = vand.u32 2147483647, %v1823
  %vm2133 = vcmp.eq.f32.partialorder %v2132, 8.507059e+37
  %v2134 = vand.u32 %v1823, 2147483648
  %v2135 = vor.u32 1.1754944e-38, %v2134
  %v2136 = vsel %vm2133, %v2135, %v2131
  %v2137 = vrcp.pop %v1826
  %v2138 = vmul.f32 %v1826, %v2137
  %v2139 = vsub.f32 1.0, %v2138
  %v2140 = vmul.f32 %v2137, %v2139
  %v2141 = vadd.f32 %v2137, %v2140
  %vm2142 = vweird.f32 %v1826
  %vm2143 = vweird.f32 %v2137
  %vm2144 = vmor %vm2142, %vm2143
  %v2145 = vsel %vm2144, %v2137, %v2141
  %v2146 = vand.u32 2147483647, %v1826
  %vm2147 = vcmp.eq.f32.partialorder %v2146, 8.507059e+37
  %v2148 = vand.u32 %v1826, 2147483648
  %v2149 = vor.u32 1.1754944e-38, %v2148
  %v2150 = vsel %vm2147, %v2149, %v2145
  %v2151 = vrcp.pop %v1829
  %v2152 = vmul.f32 %v1829, %v2151
  %v2153 = vsub.f32 1.0, %v2152
  %v2154 = vmul.f32 %v2151, %v2153
  %v2155 = vadd.f32 %v2151, %v2154
  %vm2156 = vweird.f32 %v1829
  %vm2157 = vweird.f32 %v2151
  %vm2158 = vmor %vm2156, %vm2157
  %v2159 = vsel %vm2158, %v2151, %v2155
  %v2160 = vand.u32 2147483647, %v1829
  %vm2161 = vcmp.eq.f32.partialorder %v2160, 8.507059e+37
  %v2162 = vand.u32 %v1829, 2147483648
  %v2163 = vor.u32 1.1754944e-38, %v2162
  %v2164 = vsel %vm2161, %v2163, %v2159
  %v2165 = vrcp.pop %v1832
  %v2166 = vmul.f32 %v1832, %v2165
  %v2167 = vsub.f32 1.0, %v2166
  %v2168 = vmul.f32 %v2165, %v2167
  %v2169 = vadd.f32 %v2165, %v2168
  %vm2170 = vweird.f32 %v1832
  %vm2171 = vweird.f32 %v2165
  %vm2172 = vmor %vm2170, %vm2171
  %v2173 = vsel %vm2172, %v2165, %v2169
  %v2174 = vand.u32 2147483647, %v1832
  %vm2175 = vcmp.eq.f32.partialorder %v2174, 8.507059e+37
  %v2176 = vand.u32 %v1832, 2147483648
  %v2177 = vor.u32 1.1754944e-38, %v2176
  %v2178 = vsel %vm2175, %v2177, %v2173
  %v2179 = vrcp.pop %v1835
  %v2180 = vmul.f32 %v1835, %v2179
  %v2181 = vsub.f32 1.0, %v2180
  %v2182 = vmul.f32 %v2179, %v2181
  %v2183 = vadd.f32 %v2179, %v2182
  %vm2184 = vweird.f32 %v1835
  %vm2185 = vweird.f32 %v2179
  %vm2186 = vmor %vm2184, %vm2185
  %v2187 = vsel %vm2186, %v2179, %v2183
  %v2188 = vand.u32 2147483647, %v1835
  %vm2189 = vcmp.eq.f32.partialorder %v2188, 8.507059e+37
  %v2190 = vand.u32 %v1835, 2147483648
  %v2191 = vor.u32 1.1754944e-38, %v2190
  %v2192 = vsel %vm2189, %v2191, %v2187
  %v2193 = vrcp.pop %v1838
  %v2194 = vmul.f32 %v1838, %v2193
  %v2195 = vsub.f32 1.0, %v2194
  %v2196 = vmul.f32 %v2193, %v2195
  %v2197 = vadd.f32 %v2193, %v2196
  %vm2198 = vweird.f32 %v1838
  %vm2199 = vweird.f32 %v2193
  %vm2200 = vmor %vm2198, %vm2199
  %v2201 = vsel %vm2200, %v2193, %v2197
  %v2202 = vand.u32 2147483647, %v1838
  %vm2203 = vcmp.eq.f32.partialorder %v2202, 8.507059e+37
  %v2204 = vand.u32 %v1838, 2147483648
  %v2205 = vor.u32 1.1754944e-38, %v2204
  %v2206 = vsel %vm2203, %v2205, %v2201
  %v2207 = vrcp.pop %v1841
  %v2208 = vmul.f32 %v1841, %v2207
  %v2209 = vsub.f32 1.0, %v2208
  %v2210 = vmul.f32 %v2207, %v2209
  %v2211 = vadd.f32 %v2207, %v2210
  %vm2212 = vweird.f32 %v1841
  %vm2213 = vweird.f32 %v2207
  %vm2214 = vmor %vm2212, %vm2213
  %v2215 = vsel %vm2214, %v2207, %v2211
  %v2216 = vand.u32 2147483647, %v1841
  %vm2217 = vcmp.eq.f32.partialorder %v2216, 8.507059e+37
  %v2218 = vand.u32 %v1841, 2147483648
  %v2219 = vor.u32 1.1754944e-38, %v2218
  %v2220 = vsel %vm2217, %v2219, %v2215
  %v2221 = vrcp.pop %v1844
  %v2222 = vmul.f32 %v1844, %v2221
  %v2223 = vsub.f32 1.0, %v2222
  %v2224 = vmul.f32 %v2221, %v2223
  %v2225 = vadd.f32 %v2221, %v2224
  %vm2226 = vweird.f32 %v1844
  %vm2227 = vweird.f32 %v2221
  %vm2228 = vmor %vm2226, %vm2227
  %v2229 = vsel %vm2228, %v2221, %v2225
  %v2230 = vand.u32 2147483647, %v1844
  %vm2231 = vcmp.eq.f32.partialorder %v2230, 8.507059e+37
  %v2232 = vand.u32 %v1844, 2147483648
  %v2233 = vor.u32 1.1754944e-38, %v2232
  %v2234 = vsel %vm2231, %v2233, %v2229
  %v2235 = vrcp.pop %v1847
  %v2236 = vmul.f32 %v1847, %v2235
  %v2237 = vsub.f32 1.0, %v2236
  %v2238 = vmul.f32 %v2235, %v2237
  %v2239 = vadd.f32 %v2235, %v2238
  %vm2240 = vweird.f32 %v1847
  %vm2241 = vweird.f32 %v2235
  %vm2242 = vmor %vm2240, %vm2241
  %v2243 = vsel %vm2242, %v2235, %v2239
  %v2244 = vand.u32 2147483647, %v1847
  %vm2245 = vcmp.eq.f32.partialorder %v2244, 8.507059e+37
  %v2246 = vand.u32 %v1847, 2147483648
  %v2247 = vor.u32 1.1754944e-38, %v2246
  %v2248 = vsel %vm2245, %v2247, %v2243
  %v2249 = vrcp.pop %v1850
  %v2250 = vmul.f32 %v1850, %v2249
  %v2251 = vsub.f32 1.0, %v2250
  %v2252 = vmul.f32 %v2249, %v2251
  %v2253 = vadd.f32 %v2249, %v2252
  %vm2254 = vweird.f32 %v1850
  %vm2255 = vweird.f32 %v2249
  %vm2256 = vmor %vm2254, %vm2255
  %v2257 = vsel %vm2256, %v2249, %v2253
  %v2258 = vand.u32 2147483647, %v1850
  %vm2259 = vcmp.eq.f32.partialorder %v2258, 8.507059e+37
  %v2260 = vand.u32 %v1850, 2147483648
  %v2261 = vor.u32 1.1754944e-38, %v2260
  %v2262 = vsel %vm2259, %v2261, %v2257
  %v2263 = vrcp.pop %v1853
  %v2264 = vmul.f32 %v1853, %v2263
  %v2265 = vsub.f32 1.0, %v2264
  %v2266 = vmul.f32 %v2263, %v2265
  %v2267 = vadd.f32 %v2263, %v2266
  %vm2268 = vweird.f32 %v1853
  %vm2269 = vweird.f32 %v2263
  %vm2270 = vmor %vm2268, %vm2269
  %v2271 = vsel %vm2270, %v2263, %v2267
  %v2272 = vand.u32 2147483647, %v1853
  %vm2273 = vcmp.eq.f32.partialorder %v2272, 8.507059e+37
  %v2274 = vand.u32 %v1853, 2147483648
  %v2275 = vor.u32 1.1754944e-38, %v2274
  %v2276 = vsel %vm2273, %v2275, %v2271
  %v2277 = vrcp.pop %v1856
  %v2278 = vmul.f32 %v1856, %v2277
  %v2279 = vsub.f32 1.0, %v2278
  %v2280 = vmul.f32 %v2277, %v2279
  %v2281 = vadd.f32 %v2277, %v2280
  %vm2282 = vweird.f32 %v1856
  %vm2283 = vweird.f32 %v2277
  %vm2284 = vmor %vm2282, %vm2283
  %v2285 = vsel %vm2284, %v2277, %v2281
  %v2286 = vand.u32 2147483647, %v1856
  %vm2287 = vcmp.eq.f32.partialorder %v2286, 8.507059e+37
  %v2288 = vand.u32 %v1856, 2147483648
  %v2289 = vor.u32 1.1754944e-38, %v2288
  %v2290 = vsel %vm2287, %v2289, %v2285
  %v2291 = vrcp.pop %v1859
  %v2292 = vmul.f32 %v1859, %v2291
  %v2293 = vsub.f32 1.0, %v2292
  %v2294 = vmul.f32 %v2291, %v2293
  %v2295 = vadd.f32 %v2291, %v2294
  %vm2296 = vweird.f32 %v1859
  %vm2297 = vweird.f32 %v2291
  %vm2298 = vmor %vm2296, %vm2297
  %v2299 = vsel %vm2298, %v2291, %v2295
  %v2300 = vand.u32 2147483647, %v1859
  %vm2301 = vcmp.eq.f32.partialorder %v2300, 8.507059e+37
  %v2302 = vand.u32 %v1859, 2147483648
  %v2303 = vor.u32 1.1754944e-38, %v2302
  %v2304 = vsel %vm2301, %v2303, %v2299
  %v2305 = vrcp.pop %v1862
  %v2306 = vmul.f32 %v1862, %v2305
  %v2307 = vsub.f32 1.0, %v2306
  %v2308 = vmul.f32 %v2305, %v2307
  %v2309 = vadd.f32 %v2305, %v2308
  %vm2310 = vweird.f32 %v1862
  %vm2311 = vweird.f32 %v2305
  %vm2312 = vmor %vm2310, %vm2311
  %v2313 = vsel %vm2312, %v2305, %v2309
  %v2314 = vand.u32 2147483647, %v1862
  %vm2315 = vcmp.eq.f32.partialorder %v2314, 8.507059e+37
  %v2316 = vand.u32 %v1862, 2147483648
  %v2317 = vor.u32 1.1754944e-38, %v2316
  %v2318 = vsel %vm2315, %v2317, %v2313
  %v2319 = vrcp.pop %v1865
  %v2320 = vmul.f32 %v1865, %v2319
  %v2321 = vsub.f32 1.0, %v2320
  %v2322 = vmul.f32 %v2319, %v2321
  %v2323 = vadd.f32 %v2319, %v2322
  %vm2324 = vweird.f32 %v1865
  %vm2325 = vweird.f32 %v2319
  %vm2326 = vmor %vm2324, %vm2325
  %v2327 = vsel %vm2326, %v2319, %v2323
  %v2328 = vand.u32 2147483647, %v1865
  %vm2329 = vcmp.eq.f32.partialorder %v2328, 8.507059e+37
  %v2330 = vand.u32 %v1865, 2147483648
  %v2331 = vor.u32 1.1754944e-38, %v2330
  %v2332 = vsel %vm2329, %v2331, %v2327
  %v2333 = vrcp.pop %v1868
  %v2334 = vmul.f32 %v1868, %v2333
  %v2335 = vsub.f32 1.0, %v2334
  %v2336 = vmul.f32 %v2333, %v2335
  %v2337 = vadd.f32 %v2333, %v2336
  %vm2338 = vweird.f32 %v1868
  %vm2339 = vweird.f32 %v2333
  %vm2340 = vmor %vm2338, %vm2339
  %v2341 = vsel %vm2340, %v2333, %v2337
  %v2342 = vand.u32 2147483647, %v1868
  %vm2343 = vcmp.eq.f32.partialorder %v2342, 8.507059e+37
  %v2344 = vand.u32 %v1868, 2147483648
  %v2345 = vor.u32 1.1754944e-38, %v2344
  %v2346 = vsel %vm2343, %v2345, %v2341
  %v2347 = vrcp.pop %v1871
  %v2348 = vmul.f32 %v1871, %v2347
  %v2349 = vsub.f32 1.0, %v2348
  %v2350 = vmul.f32 %v2347, %v2349
  %v2351 = vadd.f32 %v2347, %v2350
  %vm2352 = vweird.f32 %v1871
  %vm2353 = vweird.f32 %v2347
  %vm2354 = vmor %vm2352, %vm2353
  %v2355 = vsel %vm2354, %v2347, %v2351
  %v2356 = vand.u32 2147483647, %v1871
  %vm2357 = vcmp.eq.f32.partialorder %v2356, 8.507059e+37
  %v2358 = vand.u32 %v1871, 2147483648
  %v2359 = vor.u32 1.1754944e-38, %v2358
  %v2360 = vsel %vm2357, %v2359, %v2355
  %v2361 = vrcp.pop %v1874
  %v2362 = vmul.f32 %v1874, %v2361
  %v2363 = vsub.f32 1.0, %v2362
  %v2364 = vmul.f32 %v2361, %v2363
  %v2365 = vadd.f32 %v2361, %v2364
  %vm2366 = vweird.f32 %v1874
  %vm2367 = vweird.f32 %v2361
  %vm2368 = vmor %vm2366, %vm2367
  %v2369 = vsel %vm2368, %v2361, %v2365
  %v2370 = vand.u32 2147483647, %v1874
  %vm2371 = vcmp.eq.f32.partialorder %v2370, 8.507059e+37
  %v2372 = vand.u32 %v1874, 2147483648
  %v2373 = vor.u32 1.1754944e-38, %v2372
  %v2374 = vsel %vm2371, %v2373, %v2369
  %v2375 = vrcp.pop %v1877
  %v2376 = vmul.f32 %v1877, %v2375
  %v2377 = vsub.f32 1.0, %v2376
  %v2378 = vmul.f32 %v2375, %v2377
  %v2379 = vadd.f32 %v2375, %v2378
  %vm2380 = vweird.f32 %v1877
  %vm2381 = vweird.f32 %v2375
  %vm2382 = vmor %vm2380, %vm2381
  %v2383 = vsel %vm2382, %v2375, %v2379
  %v2384 = vand.u32 2147483647, %v1877
  %vm2385 = vcmp.eq.f32.partialorder %v2384, 8.507059e+37
  %v2386 = vand.u32 %v1877, 2147483648
  %v2387 = vor.u32 1.1754944e-38, %v2386
  %v2388 = vsel %vm2385, %v2387, %v2383
  %v2389 = vrcp.pop %v1880
  %v2390 = vmul.f32 %v1880, %v2389
  %v2391 = vsub.f32 1.0, %v2390
  %v2392 = vmul.f32 %v2389, %v2391
  %v2393 = vadd.f32 %v2389, %v2392
  %vm2394 = vweird.f32 %v1880
  %vm2395 = vweird.f32 %v2389
  %vm2396 = vmor %vm2394, %vm2395
  %v2397 = vsel %vm2396, %v2389, %v2393
  %v2398 = vand.u32 2147483647, %v1880
  %vm2399 = vcmp.eq.f32.partialorder %v2398, 8.507059e+37
  %v2400 = vand.u32 %v1880, 2147483648
  %v2401 = vor.u32 1.1754944e-38, %v2400
  %v2402 = vsel %vm2399, %v2401, %v2397
  %v2403 = vrcp.pop %v1883
  %v2404 = vmul.f32 %v1883, %v2403
  %v2405 = vsub.f32 1.0, %v2404
  %v2406 = vmul.f32 %v2403, %v2405
  %v2407 = vadd.f32 %v2403, %v2406
  %vm2408 = vweird.f32 %v1883
  %vm2409 = vweird.f32 %v2403
  %vm2410 = vmor %vm2408, %vm2409
  %v2411 = vsel %vm2410, %v2403, %v2407
  %v2412 = vand.u32 2147483647, %v1883
  %vm2413 = vcmp.eq.f32.partialorder %v2412, 8.507059e+37
  %v2414 = vand.u32 %v1883, 2147483648
  %v2415 = vor.u32 1.1754944e-38, %v2414
  %v2416 = vsel %vm2413, %v2415, %v2411
  %v2417 = vrcp.pop %v1886
  %v2418 = vmul.f32 %v1886, %v2417
  %v2419 = vsub.f32 1.0, %v2418
  %v2420 = vmul.f32 %v2417, %v2419
  %v2421 = vadd.f32 %v2417, %v2420
  %vm2422 = vweird.f32 %v1886
  %vm2423 = vweird.f32 %v2417
  %vm2424 = vmor %vm2422, %vm2423
  %v2425 = vsel %vm2424, %v2417, %v2421
  %v2426 = vand.u32 2147483647, %v1886
  %vm2427 = vcmp.eq.f32.partialorder %v2426, 8.507059e+37
  %v2428 = vand.u32 %v1886, 2147483648
  %v2429 = vor.u32 1.1754944e-38, %v2428
  %v2430 = vsel %vm2427, %v2429, %v2425
  %v2431 = vrcp.pop %v1889
  %v2432 = vmul.f32 %v1889, %v2431
  %v2433 = vsub.f32 1.0, %v2432
  %v2434 = vmul.f32 %v2431, %v2433
  %v2435 = vadd.f32 %v2431, %v2434
  %vm2436 = vweird.f32 %v1889
  %vm2437 = vweird.f32 %v2431
  %vm2438 = vmor %vm2436, %vm2437
  %v2439 = vsel %vm2438, %v2431, %v2435
  %v2440 = vand.u32 2147483647, %v1889
  %vm2441 = vcmp.eq.f32.partialorder %v2440, 8.507059e+37
  %v2442 = vand.u32 %v1889, 2147483648
  %v2443 = vor.u32 1.1754944e-38, %v2442
  %v2444 = vsel %vm2441, %v2443, %v2439
  %v2445 = vrcp.pop %v1892
  %v2446 = vmul.f32 %v1892, %v2445
  %v2447 = vsub.f32 1.0, %v2446
  %v2448 = vmul.f32 %v2445, %v2447
  %v2449 = vadd.f32 %v2445, %v2448
  %vm2450 = vweird.f32 %v1892
  %vm2451 = vweird.f32 %v2445
  %vm2452 = vmor %vm2450, %vm2451
  %v2453 = vsel %vm2452, %v2445, %v2449
  %v2454 = vand.u32 2147483647, %v1892
  %vm2455 = vcmp.eq.f32.partialorder %v2454, 8.507059e+37
  %v2456 = vand.u32 %v1892, 2147483648
  %v2457 = vor.u32 1.1754944e-38, %v2456
  %v2458 = vsel %vm2455, %v2457, %v2453
  %v2459 = vrcp.pop %v1895
  %v2460 = vmul.f32 %v1895, %v2459
  %v2461 = vsub.f32 1.0, %v2460
  %v2462 = vmul.f32 %v2459, %v2461
  %v2463 = vadd.f32 %v2459, %v2462
  %vm2464 = vweird.f32 %v1895
  %vm2465 = vweird.f32 %v2459
  %vm2466 = vmor %vm2464, %vm2465
  %v2467 = vsel %vm2466, %v2459, %v2463
  %v2468 = vand.u32 2147483647, %v1895
  %vm2469 = vcmp.eq.f32.partialorder %v2468, 8.507059e+37
  %v2470 = vand.u32 %v1895, 2147483648
  %v2471 = vor.u32 1.1754944e-38, %v2470
  %v2472 = vsel %vm2469, %v2471, %v2467
  %v2473 = vrcp.pop %v1898
  %v2474 = vmul.f32 %v1898, %v2473
  %v2475 = vsub.f32 1.0, %v2474
  %v2476 = vmul.f32 %v2473, %v2475
  %v2477 = vadd.f32 %v2473, %v2476
  %vm2478 = vweird.f32 %v1898
  %vm2479 = vweird.f32 %v2473
  %vm2480 = vmor %vm2478, %vm2479
  %v2481 = vsel %vm2480, %v2473, %v2477
  %v2482 = vand.u32 2147483647, %v1898
  %vm2483 = vcmp.eq.f32.partialorder %v2482, 8.507059e+37
  %v2484 = vand.u32 %v1898, 2147483648
  %v2485 = vor.u32 1.1754944e-38, %v2484
  %v2486 = vsel %vm2483, %v2485, %v2481
  %v2487 = vrcp.pop %v1901
  %v2488 = vmul.f32 %v1901, %v2487
  %v2489 = vsub.f32 1.0, %v2488
  %v2490 = vmul.f32 %v2487, %v2489
  %v2491 = vadd.f32 %v2487, %v2490
  %vm2492 = vweird.f32 %v1901
  %vm2493 = vweird.f32 %v2487
  %vm2494 = vmor %vm2492, %vm2493
  %v2495 = vsel %vm2494, %v2487, %v2491
  %v2496 = vand.u32 2147483647, %v1901
  %vm2497 = vcmp.eq.f32.partialorder %v2496, 8.507059e+37
  %v2498 = vand.u32 %v1901, 2147483648
  %v2499 = vor.u32 1.1754944e-38, %v2498
  %v2500 = vsel %vm2497, %v2499, %v2495
  %v2501 = vrcp.pop %v1904
  %v2502 = vmul.f32 %v1904, %v2501
  %v2503 = vsub.f32 1.0, %v2502
  %v2504 = vmul.f32 %v2501, %v2503
  %v2505 = vadd.f32 %v2501, %v2504
  %vm2506 = vweird.f32 %v1904
  %vm2507 = vweird.f32 %v2501
  %vm2508 = vmor %vm2506, %vm2507
  %v2509 = vsel %vm2508, %v2501, %v2505
  %v2510 = vand.u32 2147483647, %v1904
  %vm2511 = vcmp.eq.f32.partialorder %v2510, 8.507059e+37
  %v2512 = vand.u32 %v1904, 2147483648
  %v2513 = vor.u32 1.1754944e-38, %v2512
  %v2514 = vsel %vm2511, %v2513, %v2509
  %v2515 = vrcp.pop %v1907
  %v2516 = vmul.f32 %v1907, %v2515
  %v2517 = vsub.f32 1.0, %v2516
  %v2518 = vmul.f32 %v2515, %v2517
  %v2519 = vadd.f32 %v2515, %v2518
  %vm2520 = vweird.f32 %v1907
  %vm2521 = vweird.f32 %v2515
  %vm2522 = vmor %vm2520, %vm2521
  %v2523 = vsel %vm2522, %v2515, %v2519
  %v2524 = vand.u32 2147483647, %v1907
  %vm2525 = vcmp.eq.f32.partialorder %v2524, 8.507059e+37
  %v2526 = vand.u32 %v1907, 2147483648
  %v2527 = vor.u32 1.1754944e-38, %v2526
  %v2528 = vsel %vm2525, %v2527, %v2523
  %v2529 = vrcp.pop %v1910
  %v2530 = vmul.f32 %v1910, %v2529
  %v2531 = vsub.f32 1.0, %v2530
  %v2532 = vmul.f32 %v2529, %v2531
  %v2533 = vadd.f32 %v2529, %v2532
  %vm2534 = vweird.f32 %v1910
  %vm2535 = vweird.f32 %v2529
  %vm2536 = vmor %vm2534, %vm2535
  %v2537 = vsel %vm2536, %v2529, %v2533
  %v2538 = vand.u32 2147483647, %v1910
  %vm2539 = vcmp.eq.f32.partialorder %v2538, 8.507059e+37
  %v2540 = vand.u32 %v1910, 2147483648
  %v2541 = vor.u32 1.1754944e-38, %v2540
  %v2542 = vsel %vm2539, %v2541, %v2537
  %v2543 = vrcp.pop %v1913
  %v2544 = vmul.f32 %v1913, %v2543
  %v2545 = vsub.f32 1.0, %v2544
  %v2546 = vmul.f32 %v2543, %v2545
  %v2547 = vadd.f32 %v2543, %v2546
  %vm2548 = vweird.f32 %v1913
  %vm2549 = vweird.f32 %v2543
  %vm2550 = vmor %vm2548, %vm2549
  %v2551 = vsel %vm2550, %v2543, %v2547
  %v2552 = vand.u32 2147483647, %v1913
  %vm2553 = vcmp.eq.f32.partialorder %v2552, 8.507059e+37
  %v2554 = vand.u32 %v1913, 2147483648
  %v2555 = vor.u32 1.1754944e-38, %v2554
  %v2556 = vsel %vm2553, %v2555, %v2551
  %v2557 = vrcp.pop %v1916
  %v2558 = vmul.f32 %v1916, %v2557
  %v2559 = vsub.f32 1.0, %v2558
  %v2560 = vmul.f32 %v2557, %v2559
  %v2561 = vadd.f32 %v2557, %v2560
  %vm2562 = vweird.f32 %v1916
  %vm2563 = vweird.f32 %v2557
  %vm2564 = vmor %vm2562, %vm2563
  %v2565 = vsel %vm2564, %v2557, %v2561
  %v2566 = vand.u32 2147483647, %v1916
  %vm2567 = vcmp.eq.f32.partialorder %v2566, 8.507059e+37
  %v2568 = vand.u32 %v1916, 2147483648
  %v2569 = vor.u32 1.1754944e-38, %v2568
  %v2570 = vsel %vm2567, %v2569, %v2565
  %v2571 = vrcp.pop %v1919
  %v2572 = vmul.f32 %v1919, %v2571
  %v2573 = vsub.f32 1.0, %v2572
  %v2574 = vmul.f32 %v2571, %v2573
  %v2575 = vadd.f32 %v2571, %v2574
  %vm2576 = vweird.f32 %v1919
  %vm2577 = vweird.f32 %v2571
  %vm2578 = vmor %vm2576, %vm2577
  %v2579 = vsel %vm2578, %v2571, %v2575
  %v2580 = vand.u32 2147483647, %v1919
  %vm2581 = vcmp.eq.f32.partialorder %v2580, 8.507059e+37
  %v2582 = vand.u32 %v1919, 2147483648
  %v2583 = vor.u32 1.1754944e-38, %v2582
  %v2584 = vsel %vm2581, %v2583, %v2579
  %v2585 = vrcp.pop %v1922
  %v2586 = vmul.f32 %v1922, %v2585
  %v2587 = vsub.f32 1.0, %v2586
  %v2588 = vmul.f32 %v2585, %v2587
  %v2589 = vadd.f32 %v2585, %v2588
  %vm2590 = vweird.f32 %v1922
  %vm2591 = vweird.f32 %v2585
  %vm2592 = vmor %vm2590, %vm2591
  %v2593 = vsel %vm2592, %v2585, %v2589
  %v2594 = vand.u32 2147483647, %v1922
  %vm2595 = vcmp.eq.f32.partialorder %v2594, 8.507059e+37
  %v2596 = vand.u32 %v1922, 2147483648
  %v2597 = vor.u32 1.1754944e-38, %v2596
  %v2598 = vsel %vm2595, %v2597, %v2593
  %v2599 = vrcp.pop %v1925
  %v2600 = vmul.f32 %v1925, %v2599
  %v2601 = vsub.f32 1.0, %v2600
  %v2602 = vmul.f32 %v2599, %v2601
  %v2603 = vadd.f32 %v2599, %v2602
  %vm2604 = vweird.f32 %v1925
  %vm2605 = vweird.f32 %v2599
  %vm2606 = vmor %vm2604, %vm2605
  %v2607 = vsel %vm2606, %v2599, %v2603
  %v2608 = vand.u32 2147483647, %v1925
  %vm2609 = vcmp.eq.f32.partialorder %v2608, 8.507059e+37
  %v2610 = vand.u32 %v1925, 2147483648
  %v2611 = vor.u32 1.1754944e-38, %v2610
  %v2612 = vsel %vm2609, %v2611, %v2607
  %v2613 = vrcp.pop %v1928
  %v2614 = vmul.f32 %v1928, %v2613
  %v2615 = vsub.f32 1.0, %v2614
  %v2616 = vmul.f32 %v2613, %v2615
  %v2617 = vadd.f32 %v2613, %v2616
  %vm2618 = vweird.f32 %v1928
  %vm2619 = vweird.f32 %v2613
  %vm2620 = vmor %vm2618, %vm2619
  %v2621 = vsel %vm2620, %v2613, %v2617
  %v2622 = vand.u32 2147483647, %v1928
  %vm2623 = vcmp.eq.f32.partialorder %v2622, 8.507059e+37
  %v2624 = vand.u32 %v1928, 2147483648
  %v2625 = vor.u32 1.1754944e-38, %v2624
  %v2626 = vsel %vm2623, %v2625, %v2621
  %v2627 = vrcp.pop %v1931
  %v2628 = vmul.f32 %v1931, %v2627
  %v2629 = vsub.f32 1.0, %v2628
  %v2630 = vmul.f32 %v2627, %v2629
  %v2631 = vadd.f32 %v2627, %v2630
  %vm2632 = vweird.f32 %v1931
  %vm2633 = vweird.f32 %v2627
  %vm2634 = vmor %vm2632, %vm2633
  %v2635 = vsel %vm2634, %v2627, %v2631
  %v2636 = vand.u32 2147483647, %v1931
  %vm2637 = vcmp.eq.f32.partialorder %v2636, 8.507059e+37
  %v2638 = vand.u32 %v1931, 2147483648
  %v2639 = vor.u32 1.1754944e-38, %v2638
  %v2640 = vsel %vm2637, %v2639, %v2635
  %v2641 = vrcp.pop %v1934
  %v2642 = vmul.f32 %v1934, %v2641
  %v2643 = vsub.f32 1.0, %v2642
  %v2644 = vmul.f32 %v2641, %v2643
  %v2645 = vadd.f32 %v2641, %v2644
  %vm2646 = vweird.f32 %v1934
  %vm2647 = vweird.f32 %v2641
  %vm2648 = vmor %vm2646, %vm2647
  %v2649 = vsel %vm2648, %v2641, %v2645
  %v2650 = vand.u32 2147483647, %v1934
  %vm2651 = vcmp.eq.f32.partialorder %v2650, 8.507059e+37
  %v2652 = vand.u32 %v1934, 2147483648
  %v2653 = vor.u32 1.1754944e-38, %v2652
  %v2654 = vsel %vm2651, %v2653, %v2649
  %v2655 = vrcp.pop %v1937
  %v2656 = vmul.f32 %v1937, %v2655
  %v2657 = vsub.f32 1.0, %v2656
  %v2658 = vmul.f32 %v2655, %v2657
  %v2659 = vadd.f32 %v2655, %v2658
  %vm2660 = vweird.f32 %v1937
  %vm2661 = vweird.f32 %v2655
  %vm2662 = vmor %vm2660, %vm2661
  %v2663 = vsel %vm2662, %v2655, %v2659
  %v2664 = vand.u32 2147483647, %v1937
  %vm2665 = vcmp.eq.f32.partialorder %v2664, 8.507059e+37
  %v2666 = vand.u32 %v1937, 2147483648
  %v2667 = vor.u32 1.1754944e-38, %v2666
  %v2668 = vsel %vm2665, %v2667, %v2663
  %v2669 = vrcp.pop %v1940
  %v2670 = vmul.f32 %v1940, %v2669
  %v2671 = vsub.f32 1.0, %v2670
  %v2672 = vmul.f32 %v2669, %v2671
  %v2673 = vadd.f32 %v2669, %v2672
  %vm2674 = vweird.f32 %v1940
  %vm2675 = vweird.f32 %v2669
  %vm2676 = vmor %vm2674, %vm2675
  %v2677 = vsel %vm2676, %v2669, %v2673
  %v2678 = vand.u32 2147483647, %v1940
  %vm2679 = vcmp.eq.f32.partialorder %v2678, 8.507059e+37
  %v2680 = vand.u32 %v1940, 2147483648
  %v2681 = vor.u32 1.1754944e-38, %v2680
  %v2682 = vsel %vm2679, %v2681, %v2677
  %v2683 = vrcp.pop %v1943
  %v2684 = vmul.f32 %v1943, %v2683
  %v2685 = vsub.f32 1.0, %v2684
  %v2686 = vmul.f32 %v2683, %v2685
  %v2687 = vadd.f32 %v2683, %v2686
  %vm2688 = vweird.f32 %v1943
  %vm2689 = vweird.f32 %v2683
  %vm2690 = vmor %vm2688, %vm2689
  %v2691 = vsel %vm2690, %v2683, %v2687
  %v2692 = vand.u32 2147483647, %v1943
  %vm2693 = vcmp.eq.f32.partialorder %v2692, 8.507059e+37
  %v2694 = vand.u32 %v1943, 2147483648
  %v2695 = vor.u32 1.1754944e-38, %v2694
  %v2696 = vsel %vm2693, %v2695, %v2691
  %v2697 = vrcp.pop %v1946
  %v2698 = vmul.f32 %v1946, %v2697
  %v2699 = vsub.f32 1.0, %v2698
  %v2700 = vmul.f32 %v2697, %v2699
  %v2701 = vadd.f32 %v2697, %v2700
  %vm2702 = vweird.f32 %v1946
  %vm2703 = vweird.f32 %v2697
  %vm2704 = vmor %vm2702, %vm2703
  %v2705 = vsel %vm2704, %v2697, %v2701
  %v2706 = vand.u32 2147483647, %v1946
  %vm2707 = vcmp.eq.f32.partialorder %v2706, 8.507059e+37
  %v2708 = vand.u32 %v1946, 2147483648
  %v2709 = vor.u32 1.1754944e-38, %v2708
  %v2710 = vsel %vm2707, %v2709, %v2705
  %v2711 = vrcp.pop %v1949
  %v2712 = vmul.f32 %v1949, %v2711
  %v2713 = vsub.f32 1.0, %v2712
  %v2714 = vmul.f32 %v2711, %v2713
  %v2715 = vadd.f32 %v2711, %v2714
  %vm2716 = vweird.f32 %v1949
  %vm2717 = vweird.f32 %v2711
  %vm2718 = vmor %vm2716, %vm2717
  %v2719 = vsel %vm2718, %v2711, %v2715
  %v2720 = vand.u32 2147483647, %v1949
  %vm2721 = vcmp.eq.f32.partialorder %v2720, 8.507059e+37
  %v2722 = vand.u32 %v1949, 2147483648
  %v2723 = vor.u32 1.1754944e-38, %v2722
  %v2724 = vsel %vm2721, %v2723, %v2719
  %v2725 = vrcp.pop %v1952
  %v2726 = vmul.f32 %v1952, %v2725
  %v2727 = vsub.f32 1.0, %v2726
  %v2728 = vmul.f32 %v2725, %v2727
  %v2729 = vadd.f32 %v2725, %v2728
  %vm2730 = vweird.f32 %v1952
  %vm2731 = vweird.f32 %v2725
  %vm2732 = vmor %vm2730, %vm2731
  %v2733 = vsel %vm2732, %v2725, %v2729
  %v2734 = vand.u32 2147483647, %v1952
  %vm2735 = vcmp.eq.f32.partialorder %v2734, 8.507059e+37
  %v2736 = vand.u32 %v1952, 2147483648
  %v2737 = vor.u32 1.1754944e-38, %v2736
  %v2738 = vsel %vm2735, %v2737, %v2733
  %v2739 = vrcp.pop %v1955
  %v2740 = vmul.f32 %v1955, %v2739
  %v2741 = vsub.f32 1.0, %v2740
  %v2742 = vmul.f32 %v2739, %v2741
  %v2743 = vadd.f32 %v2739, %v2742
  %vm2744 = vweird.f32 %v1955
  %vm2745 = vweird.f32 %v2739
  %vm2746 = vmor %vm2744, %vm2745
  %v2747 = vsel %vm2746, %v2739, %v2743
  %v2748 = vand.u32 2147483647, %v1955
  %vm2749 = vcmp.eq.f32.partialorder %v2748, 8.507059e+37
  %v2750 = vand.u32 %v1955, 2147483648
  %v2751 = vor.u32 1.1754944e-38, %v2750
  %v2752 = vsel %vm2749, %v2751, %v2747
  %v2753 = vrcp.pop %v1958
  %v2754 = vmul.f32 %v1958, %v2753
  %v2755 = vsub.f32 1.0, %v2754
  %v2756 = vmul.f32 %v2753, %v2755
  %v2757 = vadd.f32 %v2753, %v2756
  %vm2758 = vweird.f32 %v1958
  %vm2759 = vweird.f32 %v2753
  %vm2760 = vmor %vm2758, %vm2759
  %v2761 = vsel %vm2760, %v2753, %v2757
  %v2762 = vand.u32 2147483647, %v1958
  %vm2763 = vcmp.eq.f32.partialorder %v2762, 8.507059e+37
  %v2764 = vand.u32 %v1958, 2147483648
  %v2765 = vor.u32 1.1754944e-38, %v2764
  %v2766 = vsel %vm2763, %v2765, %v2761
  %v2767 = vrcp.pop %v1961
  %v2768 = vmul.f32 %v1961, %v2767
  %v2769 = vsub.f32 1.0, %v2768
  %v2770 = vmul.f32 %v2767, %v2769
  %v2771 = vadd.f32 %v2767, %v2770
  %vm2772 = vweird.f32 %v1961
  %vm2773 = vweird.f32 %v2767
  %vm2774 = vmor %vm2772, %vm2773
  %v2775 = vsel %vm2774, %v2767, %v2771
  %v2776 = vand.u32 2147483647, %v1961
  %vm2777 = vcmp.eq.f32.partialorder %v2776, 8.507059e+37
  %v2778 = vand.u32 %v1961, 2147483648
  %v2779 = vor.u32 1.1754944e-38, %v2778
  %v2780 = vsel %vm2777, %v2779, %v2775
  %v2781 = vrcp.pop %v1964
  %v2782 = vmul.f32 %v1964, %v2781
  %v2783 = vsub.f32 1.0, %v2782
  %v2784 = vmul.f32 %v2781, %v2783
  %v2785 = vadd.f32 %v2781, %v2784
  %vm2786 = vweird.f32 %v1964
  %vm2787 = vweird.f32 %v2781
  %vm2788 = vmor %vm2786, %vm2787
  %v2789 = vsel %vm2788, %v2781, %v2785
  %v2790 = vand.u32 2147483647, %v1964
  %vm2791 = vcmp.eq.f32.partialorder %v2790, 8.507059e+37
  %v2792 = vand.u32 %v1964, 2147483648
  %v2793 = vor.u32 1.1754944e-38, %v2792
  %v2794 = vsel %vm2791, %v2793, %v2789
  %v2795 = vrcp.pop %v1967
  %v2796 = vmul.f32 %v1967, %v2795
  %v2797 = vsub.f32 1.0, %v2796
  %v2798 = vmul.f32 %v2795, %v2797
  %v2799 = vadd.f32 %v2795, %v2798
  %vm2800 = vweird.f32 %v1967
  %vm2801 = vweird.f32 %v2795
  %vm2802 = vmor %vm2800, %vm2801
  %v2803 = vsel %vm2802, %v2795, %v2799
  %v2804 = vand.u32 2147483647, %v1967
  %vm2805 = vcmp.eq.f32.partialorder %v2804, 8.507059e+37
  %v2806 = vand.u32 %v1967, 2147483648
  %v2807 = vor.u32 1.1754944e-38, %v2806
  %v2808 = vsel %vm2805, %v2807, %v2803
  %v2809 = vrcp.pop %v1970
  %v2810 = vmul.f32 %v1970, %v2809
  %v2811 = vsub.f32 1.0, %v2810
  %v2812 = vmul.f32 %v2809, %v2811
  %v2813 = vadd.f32 %v2809, %v2812
  %vm2814 = vweird.f32 %v1970
  %vm2815 = vweird.f32 %v2809
  %vm2816 = vmor %vm2814, %vm2815
  %v2817 = vsel %vm2816, %v2809, %v2813
  %v2818 = vand.u32 2147483647, %v1970
  %vm2819 = vcmp.eq.f32.partialorder %v2818, 8.507059e+37
  %v2820 = vand.u32 %v1970, 2147483648
  %v2821 = vor.u32 1.1754944e-38, %v2820
  %v2822 = vsel %vm2819, %v2821, %v2817
  %v2823 = vrcp.pop %v1973
  %v2824 = vmul.f32 %v1973, %v2823
  %v2825 = vsub.f32 1.0, %v2824
  %v2826 = vmul.f32 %v2823, %v2825
  %v2827 = vadd.f32 %v2823, %v2826
  %vm2828 = vweird.f32 %v1973
  %vm2829 = vweird.f32 %v2823
  %vm2830 = vmor %vm2828, %vm2829
  %v2831 = vsel %vm2830, %v2823, %v2827
  %v2832 = vand.u32 2147483647, %v1973
  %vm2833 = vcmp.eq.f32.partialorder %v2832, 8.507059e+37
  %v2834 = vand.u32 %v1973, 2147483648
  %v2835 = vor.u32 1.1754944e-38, %v2834
  %v2836 = vsel %vm2833, %v2835, %v2831
  %v2837 = vrcp.pop %v1976
  %v2838 = vmul.f32 %v1976, %v2837
  %v2839 = vsub.f32 1.0, %v2838
  %v2840 = vmul.f32 %v2837, %v2839
  %v2841 = vadd.f32 %v2837, %v2840
  %vm2842 = vweird.f32 %v1976
  %vm2843 = vweird.f32 %v2837
  %vm2844 = vmor %vm2842, %vm2843
  %v2845 = vsel %vm2844, %v2837, %v2841
  %v2846 = vand.u32 2147483647, %v1976
  %vm2847 = vcmp.eq.f32.partialorder %v2846, 8.507059e+37
  %v2848 = vand.u32 %v1976, 2147483648
  %v2849 = vor.u32 1.1754944e-38, %v2848
  %v2850 = vsel %vm2847, %v2849, %v2845
  %v2851 = vrcp.pop %v1979
  %v2852 = vmul.f32 %v1979, %v2851
  %v2853 = vsub.f32 1.0, %v2852
  %v2854 = vmul.f32 %v2851, %v2853
  %v2855 = vadd.f32 %v2851, %v2854
  %vm2856 = vweird.f32 %v1979
  %vm2857 = vweird.f32 %v2851
  %vm2858 = vmor %vm2856, %vm2857
  %v2859 = vsel %vm2858, %v2851, %v2855
  %v2860 = vand.u32 2147483647, %v1979
  %vm2861 = vcmp.eq.f32.partialorder %v2860, 8.507059e+37
  %v2862 = vand.u32 %v1979, 2147483648
  %v2863 = vor.u32 1.1754944e-38, %v2862
  %v2864 = vsel %vm2861, %v2863, %v2859
  %v2865 = vrcp.pop %v1982
  %v2866 = vmul.f32 %v1982, %v2865
  %v2867 = vsub.f32 1.0, %v2866
  %v2868 = vmul.f32 %v2865, %v2867
  %v2869 = vadd.f32 %v2865, %v2868
  %vm2870 = vweird.f32 %v1982
  %vm2871 = vweird.f32 %v2865
  %vm2872 = vmor %vm2870, %vm2871
  %v2873 = vsel %vm2872, %v2865, %v2869
  %v2874 = vand.u32 2147483647, %v1982
  %vm2875 = vcmp.eq.f32.partialorder %v2874, 8.507059e+37
  %v2876 = vand.u32 %v1982, 2147483648
  %v2877 = vor.u32 1.1754944e-38, %v2876
  %v2878 = vsel %vm2875, %v2877, %v2873
  %v2879 = vmul.f32 %v1664, %v1996
  %v2880 = vmul.f32 %v1666, %v2010
  %v2881 = vmul.f32 %v1668, %v2024
  %v2882 = vmul.f32 %v1670, %v2038
  %v2883 = vmul.f32 %v1672, %v2052
  %v2884 = vmul.f32 %v1674, %v2066
  %v2885 = vmul.f32 %v1676, %v2080
  %v2886 = vmul.f32 %v1678, %v2094
  %v2887 = vmul.f32 %v1680, %v2108
  %v2888 = vmul.f32 %v1682, %v2122
  %v2889 = vmul.f32 %v1684, %v2136
  %v2890 = vmul.f32 %v1686, %v2150
  %v2891 = vmul.f32 %v1688, %v2164
  %v2892 = vmul.f32 %v1690, %v2178
  %v2893 = vmul.f32 %v1692, %v2192
  %v2894 = vmul.f32 %v1694, %v2206
  %v2895 = vmul.f32 %v1696, %v2220
  %v2896 = vmul.f32 %v1698, %v2234
  %v2897 = vmul.f32 %v1700, %v2248
  %v2898 = vmul.f32 %v1702, %v2262
  %v2899 = vmul.f32 %v1704, %v2276
  %v2900 = vmul.f32 %v1706, %v2290
  %v2901 = vmul.f32 %v1708, %v2304
  %v2902 = vmul.f32 %v1710, %v2318
  %v2903 = vmul.f32 %v1712, %v2332
  %v2904 = vmul.f32 %v1714, %v2346
  %v2905 = vmul.f32 %v1716, %v2360
  %v2906 = vmul.f32 %v1718, %v2374
  %v2907 = vmul.f32 %v1720, %v2388
  %v2908 = vmul.f32 %v1722, %v2402
  %v2909 = vmul.f32 %v1724, %v2416
  %v2910 = vmul.f32 %v1726, %v2430
  %v2911 = vmul.f32 %v1728, %v2444
  %v2912 = vmul.f32 %v1730, %v2458
  %v2913 = vmul.f32 %v1732, %v2472
  %v2914 = vmul.f32 %v1734, %v2486
  %v2915 = vmul.f32 %v1736, %v2500
  %v2916 = vmul.f32 %v1738, %v2514
  %v2917 = vmul.f32 %v1740, %v2528
  %v2918 = vmul.f32 %v1742, %v2542
  %v2919 = vmul.f32 %v1744, %v2556
  %v2920 = vmul.f32 %v1746, %v2570
  %v2921 = vmul.f32 %v1748, %v2584
  %v2922 = vmul.f32 %v1750, %v2598
  %v2923 = vmul.f32 %v1752, %v2612
  %v2924 = vmul.f32 %v1754, %v2626
  %v2925 = vmul.f32 %v1756, %v2640
  %v2926 = vmul.f32 %v1758, %v2654
  %v2927 = vmul.f32 %v1760, %v2668
  %v2928 = vmul.f32 %v1762, %v2682
  %v2929 = vmul.f32 %v1764, %v2696
  %v2930 = vmul.f32 %v1766, %v2710
  %v2931 = vmul.f32 %v1768, %v2724
  %v2932 = vmul.f32 %v1770, %v2738
  %v2933 = vmul.f32 %v1772, %v2752
  %v2934 = vmul.f32 %v1774, %v2766
  %v2935 = vmul.f32 %v1776, %v2780
  %v2936 = vmul.f32 %v1778, %v2794
  %v2937 = vmul.f32 %v1780, %v2808
  %v2938 = vmul.f32 %v1782, %v2822
  %v2939 = vmul.f32 %v1784, %v2836
  %v2940 = vmul.f32 %v1786, %v2850
  %v2941 = vmul.f32 %v1788, %v2864
  %v2942 = vmul.f32 %v1790, %v2878
  %2943 = vrot.lane.b32.xlu0 %v534, 64
  %v2944 = vpop.permute.xlu0 %2943
  %2945 = vrot.lane.b32.xlu0 %v537, 64
  %v2946 = vpop.permute.xlu0 %2945
  %2947 = vrot.lane.b32.xlu0 %v540, 64
  %v2948 = vpop.permute.xlu0 %2947
  %2949 = vrot.lane.b32.xlu0 %v543, 64
  %v2950 = vpop.permute.xlu0 %2949
  %2951 = vrot.lane.b32.xlu0 %v546, 64
  %v2952 = vpop.permute.xlu0 %2951
  %2953 = vrot.lane.b32.xlu0 %v549, 64
  %v2954 = vpop.permute.xlu0 %2953
  %2955 = vrot.lane.b32.xlu0 %v552, 64
  %v2956 = vpop.permute.xlu0 %2955
  %2957 = vrot.lane.b32.xlu0 %v555, 64
  %v2958 = vpop.permute.xlu0 %2957
  %v2968 = vsel %vm1406, %v2879, 0
  %v2971 = vsel %vm1406, %v2880, 0
  %v2974 = vsel %vm1406, %v2881, 0
  %v2977 = vsel %vm1406, %v2882, 0
  %v2980 = vsel %vm1406, %v2883, 0
  %v2983 = vsel %vm1406, %v2884, 0
  %v2986 = vsel %vm1406, %v2885, 0
  %v2989 = vsel %vm1406, %v2886, 0
  %2991 = vmatpush.msra.mxu0 0.0
  %2992 = vmatpush.msra.mxu0 0.0
  %2993 = vmatpush.msra.mxu0 0.0
  %2994 = vmatpush.msra.mxu0 0.0
  %2995 = vmatpush.msra.mxu0 0.0
  %2996 = vmatpush.msra.mxu0 0.0
  %2997 = vmatpush.msra.mxu0 0.0
  %2998 = vmatpush.msra.mxu0 0.0
  %2999 = vmatpush.msra.mxu0 %v2958
  %3000 = vmatpush.msra.mxu0 %v2956
  %3001 = vmatpush.msra.mxu0 %v2954
  %3002 = vmatpush.msra.mxu0 %v2952
  %3003 = vmatpush.msra.mxu0 %v2950
  %3004 = vmatpush.msra.mxu0 %v2948
  %3005 = vmatpush.msra.mxu0 %v2946
  %3006 = vmatpush.msra.mxu0 %v2944
  %3007 = vmatmul.f32.gmra.mxu0 %v2968
  %v3008 = vpop.f32.mrf.mxu0
  %v3009 = vadd.f32 0.0, %v3008
  %3010 = vmatmul.f32.gmra.mxu0 %v2971
  %v3011 = vpop.f32.mrf.mxu0
  %v3012 = vadd.f32 0.0, %v3011
  %3013 = vmatmul.f32.gmra.mxu0 %v2974
  %v3014 = vpop.f32.mrf.mxu0
  %v3015 = vadd.f32 0.0, %v3014
  %3016 = vmatmul.f32.gmra.mxu0 %v2977
  %v3017 = vpop.f32.mrf.mxu0
  %v3018 = vadd.f32 0.0, %v3017
  %3019 = vmatmul.f32.gmra.mxu0 %v2980
  %v3020 = vpop.f32.mrf.mxu0
  %v3021 = vadd.f32 0.0, %v3020
  %3022 = vmatmul.f32.gmra.mxu0 %v2983
  %v3023 = vpop.f32.mrf.mxu0
  %v3024 = vadd.f32 0.0, %v3023
  %3025 = vmatmul.f32.gmra.mxu0 %v2986
  %v3026 = vpop.f32.mrf.mxu0
  %v3027 = vadd.f32 0.0, %v3026
  %3028 = vmatmul.f32.gmra.mxu0 %v2989
  %v3029 = vpop.f32.mrf.mxu0
  %v3030 = vadd.f32 0.0, %v3029
  %3031 = vdwg.mxu0
  %3032 = vrot.lane.b32.xlu0 %v590, 64
  %v3033 = vpop.permute.xlu0 %3032
  %3034 = vrot.lane.b32.xlu0 %v592, 64
  %v3035 = vpop.permute.xlu0 %3034
  %3036 = vrot.lane.b32.xlu0 %v594, 64
  %v3037 = vpop.permute.xlu0 %3036
  %3038 = vrot.lane.b32.xlu0 %v596, 64
  %v3039 = vpop.permute.xlu0 %3038
  %3040 = vrot.lane.b32.xlu0 %v598, 64
  %v3041 = vpop.permute.xlu0 %3040
  %3042 = vrot.lane.b32.xlu0 %v600, 64
  %v3043 = vpop.permute.xlu0 %3042
  %3044 = vrot.lane.b32.xlu0 %v602, 64
  %v3045 = vpop.permute.xlu0 %3044
  %3046 = vrot.lane.b32.xlu0 %v604, 64
  %v3047 = vpop.permute.xlu0 %3046
  %v3057 = vsel %vm1406, %v2887, 0
  %v3060 = vsel %vm1406, %v2888, 0
  %v3063 = vsel %vm1406, %v2889, 0
  %v3066 = vsel %vm1406, %v2890, 0
  %v3069 = vsel %vm1406, %v2891, 0
  %v3072 = vsel %vm1406, %v2892, 0
  %v3075 = vsel %vm1406, %v2893, 0
  %v3078 = vsel %vm1406, %v2894, 0
  %3080 = vmatpush.msra.mxu0 0.0
  %3081 = vmatpush.msra.mxu0 0.0
  %3082 = vmatpush.msra.mxu0 0.0
  %3083 = vmatpush.msra.mxu0 0.0
  %3084 = vmatpush.msra.mxu0 0.0
  %3085 = vmatpush.msra.mxu0 0.0
  %3086 = vmatpush.msra.mxu0 0.0
  %3087 = vmatpush.msra.mxu0 0.0
  %3088 = vmatpush.msra.mxu0 %v3047
  %3089 = vmatpush.msra.mxu0 %v3045
  %3090 = vmatpush.msra.mxu0 %v3043
  %3091 = vmatpush.msra.mxu0 %v3041
  %3092 = vmatpush.msra.mxu0 %v3039
  %3093 = vmatpush.msra.mxu0 %v3037
  %3094 = vmatpush.msra.mxu0 %v3035
  %3095 = vmatpush.msra.mxu0 %v3033
  %3096 = vmatmul.f32.gmra.mxu0 %v3057
  %v3097 = vpop.f32.mrf.mxu0
  %v3098 = vadd.f32 0.0, %v3097
  %3099 = vmatmul.f32.gmra.mxu0 %v3060
  %v3100 = vpop.f32.mrf.mxu0
  %v3101 = vadd.f32 0.0, %v3100
  %3102 = vmatmul.f32.gmra.mxu0 %v3063
  %v3103 = vpop.f32.mrf.mxu0
  %v3104 = vadd.f32 0.0, %v3103
  %3105 = vmatmul.f32.gmra.mxu0 %v3066
  %v3106 = vpop.f32.mrf.mxu0
  %v3107 = vadd.f32 0.0, %v3106
  %3108 = vmatmul.f32.gmra.mxu0 %v3069
  %v3109 = vpop.f32.mrf.mxu0
  %v3110 = vadd.f32 0.0, %v3109
  %3111 = vmatmul.f32.gmra.mxu0 %v3072
  %v3112 = vpop.f32.mrf.mxu0
  %v3113 = vadd.f32 0.0, %v3112
  %3114 = vmatmul.f32.gmra.mxu0 %v3075
  %v3115 = vpop.f32.mrf.mxu0
  %v3116 = vadd.f32 0.0, %v3115
  %3117 = vmatmul.f32.gmra.mxu0 %v3078
  %v3118 = vpop.f32.mrf.mxu0
  %v3119 = vadd.f32 0.0, %v3118
  %3120 = vdwg.mxu0
  %3121 = vrot.lane.b32.xlu0 %v606, 64
  %v3122 = vpop.permute.xlu0 %3121
  %3123 = vrot.lane.b32.xlu0 %v608, 64
  %v3124 = vpop.permute.xlu0 %3123
  %3125 = vrot.lane.b32.xlu0 %v610, 64
  %v3126 = vpop.permute.xlu0 %3125
  %3127 = vrot.lane.b32.xlu0 %v612, 64
  %v3128 = vpop.permute.xlu0 %3127
  %3129 = vrot.lane.b32.xlu0 %v614, 64
  %v3130 = vpop.permute.xlu0 %3129
  %3131 = vrot.lane.b32.xlu0 %v616, 64
  %v3132 = vpop.permute.xlu0 %3131
  %3133 = vrot.lane.b32.xlu0 %v618, 64
  %v3134 = vpop.permute.xlu0 %3133
  %3135 = vrot.lane.b32.xlu0 %v620, 64
  %v3136 = vpop.permute.xlu0 %3135
  %v3146 = vsel %vm1406, %v2895, 0
  %v3149 = vsel %vm1406, %v2896, 0
  %v3152 = vsel %vm1406, %v2897, 0
  %v3155 = vsel %vm1406, %v2898, 0
  %v3158 = vsel %vm1406, %v2899, 0
  %v3161 = vsel %vm1406, %v2900, 0
  %v3164 = vsel %vm1406, %v2901, 0
  %v3167 = vsel %vm1406, %v2902, 0
  %3169 = vmatpush.msra.mxu0 0.0
  %3170 = vmatpush.msra.mxu0 0.0
  %3171 = vmatpush.msra.mxu0 0.0
  %3172 = vmatpush.msra.mxu0 0.0
  %3173 = vmatpush.msra.mxu0 0.0
  %3174 = vmatpush.msra.mxu0 0.0
  %3175 = vmatpush.msra.mxu0 0.0
  %3176 = vmatpush.msra.mxu0 0.0
  %3177 = vmatpush.msra.mxu0 %v3136
  %3178 = vmatpush.msra.mxu0 %v3134
  %3179 = vmatpush.msra.mxu0 %v3132
  %3180 = vmatpush.msra.mxu0 %v3130
  %3181 = vmatpush.msra.mxu0 %v3128
  %3182 = vmatpush.msra.mxu0 %v3126
  %3183 = vmatpush.msra.mxu0 %v3124
  %3184 = vmatpush.msra.mxu0 %v3122
  %3185 = vmatmul.f32.gmra.mxu0 %v3146
  %v3186 = vpop.f32.mrf.mxu0
  %v3187 = vadd.f32 0.0, %v3186
  %3188 = vmatmul.f32.gmra.mxu0 %v3149
  %v3189 = vpop.f32.mrf.mxu0
  %v3190 = vadd.f32 0.0, %v3189
  %3191 = vmatmul.f32.gmra.mxu0 %v3152
  %v3192 = vpop.f32.mrf.mxu0
  %v3193 = vadd.f32 0.0, %v3192
  %3194 = vmatmul.f32.gmra.mxu0 %v3155
  %v3195 = vpop.f32.mrf.mxu0
  %v3196 = vadd.f32 0.0, %v3195
  %3197 = vmatmul.f32.gmra.mxu0 %v3158
  %v3198 = vpop.f32.mrf.mxu0
  %v3199 = vadd.f32 0.0, %v3198
  %3200 = vmatmul.f32.gmra.mxu0 %v3161
  %v3201 = vpop.f32.mrf.mxu0
  %v3202 = vadd.f32 0.0, %v3201
  %3203 = vmatmul.f32.gmra.mxu0 %v3164
  %v3204 = vpop.f32.mrf.mxu0
  %v3205 = vadd.f32 0.0, %v3204
  %3206 = vmatmul.f32.gmra.mxu0 %v3167
  %v3207 = vpop.f32.mrf.mxu0
  %v3208 = vadd.f32 0.0, %v3207
  %3209 = vdwg.mxu0
  %3210 = vrot.lane.b32.xlu0 %v622, 64
  %v3211 = vpop.permute.xlu0 %3210
  %3212 = vrot.lane.b32.xlu0 %v624, 64
  %v3213 = vpop.permute.xlu0 %3212
  %3214 = vrot.lane.b32.xlu0 %v626, 64
  %v3215 = vpop.permute.xlu0 %3214
  %3216 = vrot.lane.b32.xlu0 %v628, 64
  %v3217 = vpop.permute.xlu0 %3216
  %3218 = vrot.lane.b32.xlu0 %v630, 64
  %v3219 = vpop.permute.xlu0 %3218
  %3220 = vrot.lane.b32.xlu0 %v632, 64
  %v3221 = vpop.permute.xlu0 %3220
  %3222 = vrot.lane.b32.xlu0 %v634, 64
  %v3223 = vpop.permute.xlu0 %3222
  %3224 = vrot.lane.b32.xlu0 %v636, 64
  %v3225 = vpop.permute.xlu0 %3224
  %v3235 = vsel %vm1406, %v2903, 0
  %v3238 = vsel %vm1406, %v2904, 0
  %v3241 = vsel %vm1406, %v2905, 0
  %v3244 = vsel %vm1406, %v2906, 0
  %v3247 = vsel %vm1406, %v2907, 0
  %v3250 = vsel %vm1406, %v2908, 0
  %v3253 = vsel %vm1406, %v2909, 0
  %v3256 = vsel %vm1406, %v2910, 0
  %3258 = vmatpush.msra.mxu0 0.0
  %3259 = vmatpush.msra.mxu0 0.0
  %3260 = vmatpush.msra.mxu0 0.0
  %3261 = vmatpush.msra.mxu0 0.0
  %3262 = vmatpush.msra.mxu0 0.0
  %3263 = vmatpush.msra.mxu0 0.0
  %3264 = vmatpush.msra.mxu0 0.0
  %3265 = vmatpush.msra.mxu0 0.0
  %3266 = vmatpush.msra.mxu0 %v3225
  %3267 = vmatpush.msra.mxu0 %v3223
  %3268 = vmatpush.msra.mxu0 %v3221
  %3269 = vmatpush.msra.mxu0 %v3219
  %3270 = vmatpush.msra.mxu0 %v3217
  %3271 = vmatpush.msra.mxu0 %v3215
  %3272 = vmatpush.msra.mxu0 %v3213
  %3273 = vmatpush.msra.mxu0 %v3211
  %3274 = vmatmul.f32.gmra.mxu0 %v3235
  %v3275 = vpop.f32.mrf.mxu0
  %v3276 = vadd.f32 0.0, %v3275
  %3277 = vmatmul.f32.gmra.mxu0 %v3238
  %v3278 = vpop.f32.mrf.mxu0
  %v3279 = vadd.f32 0.0, %v3278
  %3280 = vmatmul.f32.gmra.mxu0 %v3241
  %v3281 = vpop.f32.mrf.mxu0
  %v3282 = vadd.f32 0.0, %v3281
  %3283 = vmatmul.f32.gmra.mxu0 %v3244
  %v3284 = vpop.f32.mrf.mxu0
  %v3285 = vadd.f32 0.0, %v3284
  %3286 = vmatmul.f32.gmra.mxu0 %v3247
  %v3287 = vpop.f32.mrf.mxu0
  %v3288 = vadd.f32 0.0, %v3287
  %3289 = vmatmul.f32.gmra.mxu0 %v3250
  %v3290 = vpop.f32.mrf.mxu0
  %v3291 = vadd.f32 0.0, %v3290
  %3292 = vmatmul.f32.gmra.mxu0 %v3253
  %v3293 = vpop.f32.mrf.mxu0
  %v3294 = vadd.f32 0.0, %v3293
  %3295 = vmatmul.f32.gmra.mxu0 %v3256
  %v3296 = vpop.f32.mrf.mxu0
  %v3297 = vadd.f32 0.0, %v3296
  %3298 = vdwg.mxu0
  %3299 = vrot.lane.b32.xlu0 %v558, 64
  %v3300 = vpop.permute.xlu0 %3299
  %3301 = vrot.lane.b32.xlu0 %v561, 64
  %v3302 = vpop.permute.xlu0 %3301
  %3303 = vrot.lane.b32.xlu0 %v564, 64
  %v3304 = vpop.permute.xlu0 %3303
  %3305 = vrot.lane.b32.xlu0 %v567, 64
  %v3306 = vpop.permute.xlu0 %3305
  %3307 = vrot.lane.b32.xlu0 %v570, 64
  %v3308 = vpop.permute.xlu0 %3307
  %3309 = vrot.lane.b32.xlu0 %v573, 64
  %v3310 = vpop.permute.xlu0 %3309
  %3311 = vrot.lane.b32.xlu0 %v576, 64
  %v3312 = vpop.permute.xlu0 %3311
  %3313 = vrot.lane.b32.xlu0 %v579, 64
  %v3314 = vpop.permute.xlu0 %3313
  %v3324 = vsel %vm1406, %v2911, 0
  %v3327 = vsel %vm1406, %v2912, 0
  %v3330 = vsel %vm1406, %v2913, 0
  %v3333 = vsel %vm1406, %v2914, 0
  %v3336 = vsel %vm1406, %v2915, 0
  %v3339 = vsel %vm1406, %v2916, 0
  %v3342 = vsel %vm1406, %v2917, 0
  %v3345 = vsel %vm1406, %v2918, 0
  %3347 = vmatpush.msra.mxu0 0.0
  %3348 = vmatpush.msra.mxu0 0.0
  %3349 = vmatpush.msra.mxu0 0.0
  %3350 = vmatpush.msra.mxu0 0.0
  %3351 = vmatpush.msra.mxu0 0.0
  %3352 = vmatpush.msra.mxu0 0.0
  %3353 = vmatpush.msra.mxu0 0.0
  %3354 = vmatpush.msra.mxu0 0.0
  %3355 = vmatpush.msra.mxu0 %v3314
  %3356 = vmatpush.msra.mxu0 %v3312
  %3357 = vmatpush.msra.mxu0 %v3310
  %3358 = vmatpush.msra.mxu0 %v3308
  %3359 = vmatpush.msra.mxu0 %v3306
  %3360 = vmatpush.msra.mxu0 %v3304
  %3361 = vmatpush.msra.mxu0 %v3302
  %3362 = vmatpush.msra.mxu0 %v3300
  %3363 = vmatmul.f32.gmra.mxu0 %v3324
  %v3364 = vpop.f32.mrf.mxu0
  %v3365 = vadd.f32 0.0, %v3364
  %3366 = vmatmul.f32.gmra.mxu0 %v3327
  %v3367 = vpop.f32.mrf.mxu0
  %v3368 = vadd.f32 0.0, %v3367
  %3369 = vmatmul.f32.gmra.mxu0 %v3330
  %v3370 = vpop.f32.mrf.mxu0
  %v3371 = vadd.f32 0.0, %v3370
  %3372 = vmatmul.f32.gmra.mxu0 %v3333
  %v3373 = vpop.f32.mrf.mxu0
  %v3374 = vadd.f32 0.0, %v3373
  %3375 = vmatmul.f32.gmra.mxu0 %v3336
  %v3376 = vpop.f32.mrf.mxu0
  %v3377 = vadd.f32 0.0, %v3376
  %3378 = vmatmul.f32.gmra.mxu0 %v3339
  %v3379 = vpop.f32.mrf.mxu0
  %v3380 = vadd.f32 0.0, %v3379
  %3381 = vmatmul.f32.gmra.mxu0 %v3342
  %v3382 = vpop.f32.mrf.mxu0
  %v3383 = vadd.f32 0.0, %v3382
  %3384 = vmatmul.f32.gmra.mxu0 %v3345
  %v3385 = vpop.f32.mrf.mxu0
  %v3386 = vadd.f32 0.0, %v3385
  %3387 = vdwg.mxu0
  %3388 = vrot.lane.b32.xlu0 %v646, 64
  %v3389 = vpop.permute.xlu0 %3388
  %3390 = vrot.lane.b32.xlu0 %v648, 64
  %v3391 = vpop.permute.xlu0 %3390
  %3392 = vrot.lane.b32.xlu0 %v650, 64
  %v3393 = vpop.permute.xlu0 %3392
  %3394 = vrot.lane.b32.xlu0 %v652, 64
  %v3395 = vpop.permute.xlu0 %3394
  %3396 = vrot.lane.b32.xlu0 %v654, 64
  %v3397 = vpop.permute.xlu0 %3396
  %3398 = vrot.lane.b32.xlu0 %v656, 64
  %v3399 = vpop.permute.xlu0 %3398
  %3400 = vrot.lane.b32.xlu0 %v658, 64
  %v3401 = vpop.permute.xlu0 %3400
  %3402 = vrot.lane.b32.xlu0 %v660, 64
  %v3403 = vpop.permute.xlu0 %3402
  %v3413 = vsel %vm1406, %v2919, 0
  %v3416 = vsel %vm1406, %v2920, 0
  %v3419 = vsel %vm1406, %v2921, 0
  %v3422 = vsel %vm1406, %v2922, 0
  %v3425 = vsel %vm1406, %v2923, 0
  %v3428 = vsel %vm1406, %v2924, 0
  %v3431 = vsel %vm1406, %v2925, 0
  %v3434 = vsel %vm1406, %v2926, 0
  %3436 = vmatpush.msra.mxu0 0.0
  %3437 = vmatpush.msra.mxu0 0.0
  %3438 = vmatpush.msra.mxu0 0.0
  %3439 = vmatpush.msra.mxu0 0.0
  %3440 = vmatpush.msra.mxu0 0.0
  %3441 = vmatpush.msra.mxu0 0.0
  %3442 = vmatpush.msra.mxu0 0.0
  %3443 = vmatpush.msra.mxu0 0.0
  %3444 = vmatpush.msra.mxu0 %v3403
  %3445 = vmatpush.msra.mxu0 %v3401
  %3446 = vmatpush.msra.mxu0 %v3399
  %3447 = vmatpush.msra.mxu0 %v3397
  %3448 = vmatpush.msra.mxu0 %v3395
  %3449 = vmatpush.msra.mxu0 %v3393
  %3450 = vmatpush.msra.mxu0 %v3391
  %3451 = vmatpush.msra.mxu0 %v3389
  %3452 = vmatmul.f32.gmra.mxu0 %v3413
  %v3453 = vpop.f32.mrf.mxu0
  %v3454 = vadd.f32 0.0, %v3453
  %3455 = vmatmul.f32.gmra.mxu0 %v3416
  %v3456 = vpop.f32.mrf.mxu0
  %v3457 = vadd.f32 0.0, %v3456
  %3458 = vmatmul.f32.gmra.mxu0 %v3419
  %v3459 = vpop.f32.mrf.mxu0
  %v3460 = vadd.f32 0.0, %v3459
  %3461 = vmatmul.f32.gmra.mxu0 %v3422
  %v3462 = vpop.f32.mrf.mxu0
  %v3463 = vadd.f32 0.0, %v3462
  %3464 = vmatmul.f32.gmra.mxu0 %v3425
  %v3465 = vpop.f32.mrf.mxu0
  %v3466 = vadd.f32 0.0, %v3465
  %3467 = vmatmul.f32.gmra.mxu0 %v3428
  %v3468 = vpop.f32.mrf.mxu0
  %v3469 = vadd.f32 0.0, %v3468
  %3470 = vmatmul.f32.gmra.mxu0 %v3431
  %v3471 = vpop.f32.mrf.mxu0
  %v3472 = vadd.f32 0.0, %v3471
  %3473 = vmatmul.f32.gmra.mxu0 %v3434
  %v3474 = vpop.f32.mrf.mxu0
  %v3475 = vadd.f32 0.0, %v3474
  %3476 = vdwg.mxu0
  %3477 = vrot.lane.b32.xlu0 %v662, 64
  %v3478 = vpop.permute.xlu0 %3477
  %3479 = vrot.lane.b32.xlu0 %v664, 64
  %v3480 = vpop.permute.xlu0 %3479
  %3481 = vrot.lane.b32.xlu0 %v666, 64
  %v3482 = vpop.permute.xlu0 %3481
  %3483 = vrot.lane.b32.xlu0 %v668, 64
  %v3484 = vpop.permute.xlu0 %3483
  %3485 = vrot.lane.b32.xlu0 %v670, 64
  %v3486 = vpop.permute.xlu0 %3485
  %3487 = vrot.lane.b32.xlu0 %v672, 64
  %v3488 = vpop.permute.xlu0 %3487
  %3489 = vrot.lane.b32.xlu0 %v674, 64
  %v3490 = vpop.permute.xlu0 %3489
  %3491 = vrot.lane.b32.xlu0 %v676, 64
  %v3492 = vpop.permute.xlu0 %3491
  %v3502 = vsel %vm1406, %v2927, 0
  %v3505 = vsel %vm1406, %v2928, 0
  %v3508 = vsel %vm1406, %v2929, 0
  %v3511 = vsel %vm1406, %v2930, 0
  %v3514 = vsel %vm1406, %v2931, 0
  %v3517 = vsel %vm1406, %v2932, 0
  %v3520 = vsel %vm1406, %v2933, 0
  %v3523 = vsel %vm1406, %v2934, 0
  %3525 = vmatpush.msra.mxu0 0.0
  %3526 = vmatpush.msra.mxu0 0.0
  %3527 = vmatpush.msra.mxu0 0.0
  %3528 = vmatpush.msra.mxu0 0.0
  %3529 = vmatpush.msra.mxu0 0.0
  %3530 = vmatpush.msra.mxu0 0.0
  %3531 = vmatpush.msra.mxu0 0.0
  %3532 = vmatpush.msra.mxu0 0.0
  %3533 = vmatpush.msra.mxu0 %v3492
  %3534 = vmatpush.msra.mxu0 %v3490
  %3535 = vmatpush.msra.mxu0 %v3488
  %3536 = vmatpush.msra.mxu0 %v3486
  %3537 = vmatpush.msra.mxu0 %v3484
  %3538 = vmatpush.msra.mxu0 %v3482
  %3539 = vmatpush.msra.mxu0 %v3480
  %3540 = vmatpush.msra.mxu0 %v3478
  %3541 = vmatmul.f32.gmra.mxu0 %v3502
  %v3542 = vpop.f32.mrf.mxu0
  %v3543 = vadd.f32 0.0, %v3542
  %3544 = vmatmul.f32.gmra.mxu0 %v3505
  %v3545 = vpop.f32.mrf.mxu0
  %v3546 = vadd.f32 0.0, %v3545
  %3547 = vmatmul.f32.gmra.mxu0 %v3508
  %v3548 = vpop.f32.mrf.mxu0
  %v3549 = vadd.f32 0.0, %v3548
  %3550 = vmatmul.f32.gmra.mxu0 %v3511
  %v3551 = vpop.f32.mrf.mxu0
  %v3552 = vadd.f32 0.0, %v3551
  %3553 = vmatmul.f32.gmra.mxu0 %v3514
  %v3554 = vpop.f32.mrf.mxu0
  %v3555 = vadd.f32 0.0, %v3554
  %3556 = vmatmul.f32.gmra.mxu0 %v3517
  %v3557 = vpop.f32.mrf.mxu0
  %v3558 = vadd.f32 0.0, %v3557
  %3559 = vmatmul.f32.gmra.mxu0 %v3520
  %v3560 = vpop.f32.mrf.mxu0
  %v3561 = vadd.f32 0.0, %v3560
  %3562 = vmatmul.f32.gmra.mxu0 %v3523
  %v3563 = vpop.f32.mrf.mxu0
  %v3564 = vadd.f32 0.0, %v3563
  %3565 = vdwg.mxu0
  %3566 = vrot.lane.b32.xlu0 %v678, 64
  %v3567 = vpop.permute.xlu0 %3566
  %3568 = vrot.lane.b32.xlu0 %v680, 64
  %v3569 = vpop.permute.xlu0 %3568
  %3570 = vrot.lane.b32.xlu0 %v682, 64
  %v3571 = vpop.permute.xlu0 %3570
  %3572 = vrot.lane.b32.xlu0 %v684, 64
  %v3573 = vpop.permute.xlu0 %3572
  %3574 = vrot.lane.b32.xlu0 %v686, 64
  %v3575 = vpop.permute.xlu0 %3574
  %3576 = vrot.lane.b32.xlu0 %v688, 64
  %v3577 = vpop.permute.xlu0 %3576
  %3578 = vrot.lane.b32.xlu0 %v690, 64
  %v3579 = vpop.permute.xlu0 %3578
  %3580 = vrot.lane.b32.xlu0 %v692, 64
  %v3581 = vpop.permute.xlu0 %3580
  %v3591 = vsel %vm1406, %v2935, 0
  %v3594 = vsel %vm1406, %v2936, 0
  %v3597 = vsel %vm1406, %v2937, 0
  %v3600 = vsel %vm1406, %v2938, 0
  %v3603 = vsel %vm1406, %v2939, 0
  %v3606 = vsel %vm1406, %v2940, 0
  %v3609 = vsel %vm1406, %v2941, 0
  %v3612 = vsel %vm1406, %v2942, 0
  %3614 = vmatpush.msra.mxu0 0.0
  %3615 = vmatpush.msra.mxu0 0.0
  %3616 = vmatpush.msra.mxu0 0.0
  %3617 = vmatpush.msra.mxu0 0.0
  %3618 = vmatpush.msra.mxu0 0.0
  %3619 = vmatpush.msra.mxu0 0.0
  %3620 = vmatpush.msra.mxu0 0.0
  %3621 = vmatpush.msra.mxu0 0.0
  %3622 = vmatpush.msra.mxu0 %v3581
  %3623 = vmatpush.msra.mxu0 %v3579
  %3624 = vmatpush.msra.mxu0 %v3577
  %3625 = vmatpush.msra.mxu0 %v3575
  %3626 = vmatpush.msra.mxu0 %v3573
  %3627 = vmatpush.msra.mxu0 %v3571
  %3628 = vmatpush.msra.mxu0 %v3569
  %3629 = vmatpush.msra.mxu0 %v3567
  %3630 = vmatmul.f32.gmra.mxu0 %v3591
  %v3631 = vpop.f32.mrf.mxu0
  %v3632 = vadd.f32 0.0, %v3631
  %3633 = vmatmul.f32.gmra.mxu0 %v3594
  %v3634 = vpop.f32.mrf.mxu0
  %v3635 = vadd.f32 0.0, %v3634
  %3636 = vmatmul.f32.gmra.mxu0 %v3597
  %v3637 = vpop.f32.mrf.mxu0
  %v3638 = vadd.f32 0.0, %v3637
  %3639 = vmatmul.f32.gmra.mxu0 %v3600
  %v3640 = vpop.f32.mrf.mxu0
  %v3641 = vadd.f32 0.0, %v3640
  %3642 = vmatmul.f32.gmra.mxu0 %v3603
  %v3643 = vpop.f32.mrf.mxu0
  %v3644 = vadd.f32 0.0, %v3643
  %3645 = vmatmul.f32.gmra.mxu0 %v3606
  %v3646 = vpop.f32.mrf.mxu0
  %v3647 = vadd.f32 0.0, %v3646
  %3648 = vmatmul.f32.gmra.mxu0 %v3609
  %v3649 = vpop.f32.mrf.mxu0
  %v3650 = vadd.f32 0.0, %v3649
  %3651 = vmatmul.f32.gmra.mxu0 %v3612
  %v3652 = vpop.f32.mrf.mxu0
  %v3653 = vadd.f32 0.0, %v3652
  %3654 = vdwg.mxu0
  %3663 = vrot.lane.b32.xlu0 %v3098, 8
  %v3664 = vpop.permute.xlu0 %3663
  %3665 = vrot.lane.b32.xlu0 %v3101, 8
  %v3666 = vpop.permute.xlu0 %3665
  %3667 = vrot.lane.b32.xlu0 %v3104, 8
  %v3668 = vpop.permute.xlu0 %3667
  %3669 = vrot.lane.b32.xlu0 %v3107, 8
  %v3670 = vpop.permute.xlu0 %3669
  %3671 = vrot.lane.b32.xlu0 %v3110, 8
  %v3672 = vpop.permute.xlu0 %3671
  %3673 = vrot.lane.b32.xlu0 %v3113, 8
  %v3674 = vpop.permute.xlu0 %3673
  %3675 = vrot.lane.b32.xlu0 %v3116, 8
  %v3676 = vpop.permute.xlu0 %3675
  %3677 = vrot.lane.b32.xlu0 %v3119, 8
  %v3678 = vpop.permute.xlu0 %3677
  %3695 = vrot.lane.b32.xlu0 %v3187, 16
  %v3696 = vpop.permute.xlu0 %3695
  %3697 = vrot.lane.b32.xlu0 %v3190, 16
  %v3698 = vpop.permute.xlu0 %3697
  %3699 = vrot.lane.b32.xlu0 %v3193, 16
  %v3700 = vpop.permute.xlu0 %3699
  %3701 = vrot.lane.b32.xlu0 %v3196, 16
  %v3702 = vpop.permute.xlu0 %3701
  %3703 = vrot.lane.b32.xlu0 %v3199, 16
  %v3704 = vpop.permute.xlu0 %3703
  %3705 = vrot.lane.b32.xlu0 %v3202, 16
  %v3706 = vpop.permute.xlu0 %3705
  %3707 = vrot.lane.b32.xlu0 %v3205, 16
  %v3708 = vpop.permute.xlu0 %3707
  %3709 = vrot.lane.b32.xlu0 %v3208, 16
  %v3710 = vpop.permute.xlu0 %3709
  %3727 = vrot.lane.b32.xlu0 %v3276, 24
  %v3728 = vpop.permute.xlu0 %3727
  %3729 = vrot.lane.b32.xlu0 %v3279, 24
  %v3730 = vpop.permute.xlu0 %3729
  %3731 = vrot.lane.b32.xlu0 %v3282, 24
  %v3732 = vpop.permute.xlu0 %3731
  %3733 = vrot.lane.b32.xlu0 %v3285, 24
  %v3734 = vpop.permute.xlu0 %3733
  %3735 = vrot.lane.b32.xlu0 %v3288, 24
  %v3736 = vpop.permute.xlu0 %3735
  %3737 = vrot.lane.b32.xlu0 %v3291, 24
  %v3738 = vpop.permute.xlu0 %3737
  %3739 = vrot.lane.b32.xlu0 %v3294, 24
  %v3740 = vpop.permute.xlu0 %3739
  %3741 = vrot.lane.b32.xlu0 %v3297, 24
  %v3742 = vpop.permute.xlu0 %3741
  %v3751 = vsel %vm709, %v3009, %v3664
  %v3752 = vsel %vm709, %v3012, %v3666
  %v3753 = vsel %vm709, %v3015, %v3668
  %v3754 = vsel %vm709, %v3018, %v3670
  %v3755 = vsel %vm709, %v3021, %v3672
  %v3756 = vsel %vm709, %v3024, %v3674
  %v3757 = vsel %vm709, %v3027, %v3676
  %v3758 = vsel %vm709, %v3030, %v3678
  %vm3759 = vcmask 130048
  %v3760 = vsel %vm3759, %v3751, %v3696
  %v3761 = vsel %vm3759, %v3752, %v3698
  %v3762 = vsel %vm3759, %v3753, %v3700
  %v3763 = vsel %vm3759, %v3754, %v3702
  %v3764 = vsel %vm3759, %v3755, %v3704
  %v3765 = vsel %vm3759, %v3756, %v3706
  %v3766 = vsel %vm3759, %v3757, %v3708
  %v3767 = vsel %vm3759, %v3758, %v3710
  %vm3768 = vcmask 195584
  %v3769 = vsel %vm3768, %v3760, %v3728
  %v3770 = vsel %vm3768, %v3761, %v3730
  %v3771 = vsel %vm3768, %v3762, %v3732
  %v3772 = vsel %vm3768, %v3763, %v3734
  %v3773 = vsel %vm3768, %v3764, %v3736
  %v3774 = vsel %vm3768, %v3765, %v3738
  %v3775 = vsel %vm3768, %v3766, %v3740
  %v3776 = vsel %vm3768, %v3767, %v3742
  %3785 = vrot.lane.b32.xlu0 %v3454, 8
  %v3786 = vpop.permute.xlu0 %3785
  %3787 = vrot.lane.b32.xlu0 %v3457, 8
  %v3788 = vpop.permute.xlu0 %3787
  %3789 = vrot.lane.b32.xlu0 %v3460, 8
  %v3790 = vpop.permute.xlu0 %3789
  %3791 = vrot.lane.b32.xlu0 %v3463, 8
  %v3792 = vpop.permute.xlu0 %3791
  %3793 = vrot.lane.b32.xlu0 %v3466, 8
  %v3794 = vpop.permute.xlu0 %3793
  %3795 = vrot.lane.b32.xlu0 %v3469, 8
  %v3796 = vpop.permute.xlu0 %3795
  %3797 = vrot.lane.b32.xlu0 %v3472, 8
  %v3798 = vpop.permute.xlu0 %3797
  %3799 = vrot.lane.b32.xlu0 %v3475, 8
  %v3800 = vpop.permute.xlu0 %3799
  %3817 = vrot.lane.b32.xlu0 %v3543, 16
  %v3818 = vpop.permute.xlu0 %3817
  %3819 = vrot.lane.b32.xlu0 %v3546, 16
  %v3820 = vpop.permute.xlu0 %3819
  %3821 = vrot.lane.b32.xlu0 %v3549, 16
  %v3822 = vpop.permute.xlu0 %3821
  %3823 = vrot.lane.b32.xlu0 %v3552, 16
  %v3824 = vpop.permute.xlu0 %3823
  %3825 = vrot.lane.b32.xlu0 %v3555, 16
  %v3826 = vpop.permute.xlu0 %3825
  %3827 = vrot.lane.b32.xlu0 %v3558, 16
  %v3828 = vpop.permute.xlu0 %3827
  %3829 = vrot.lane.b32.xlu0 %v3561, 16
  %v3830 = vpop.permute.xlu0 %3829
  %3831 = vrot.lane.b32.xlu0 %v3564, 16
  %v3832 = vpop.permute.xlu0 %3831
  %3849 = vrot.lane.b32.xlu0 %v3632, 24
  %v3850 = vpop.permute.xlu0 %3849
  %3851 = vrot.lane.b32.xlu0 %v3635, 24
  %v3852 = vpop.permute.xlu0 %3851
  %3853 = vrot.lane.b32.xlu0 %v3638, 24
  %v3854 = vpop.permute.xlu0 %3853
  %3855 = vrot.lane.b32.xlu0 %v3641, 24
  %v3856 = vpop.permute.xlu0 %3855
  %3857 = vrot.lane.b32.xlu0 %v3644, 24
  %v3858 = vpop.permute.xlu0 %3857
  %3859 = vrot.lane.b32.xlu0 %v3647, 24
  %v3860 = vpop.permute.xlu0 %3859
  %3861 = vrot.lane.b32.xlu0 %v3650, 24
  %v3862 = vpop.permute.xlu0 %3861
  %3863 = vrot.lane.b32.xlu0 %v3653, 24
  %v3864 = vpop.permute.xlu0 %3863
  %v3873 = vsel %vm709, %v3365, %v3786
  %v3874 = vsel %vm709, %v3368, %v3788
  %v3875 = vsel %vm709, %v3371, %v3790
  %v3876 = vsel %vm709, %v3374, %v3792
  %v3877 = vsel %vm709, %v3377, %v3794
  %v3878 = vsel %vm709, %v3380, %v3796
  %v3879 = vsel %vm709, %v3383, %v3798
  %v3880 = vsel %vm709, %v3386, %v3800
  %v3881 = vsel %vm3759, %v3873, %v3818
  %v3882 = vsel %vm3759, %v3874, %v3820
  %v3883 = vsel %vm3759, %v3875, %v3822
  %v3884 = vsel %vm3759, %v3876, %v3824
  %v3885 = vsel %vm3759, %v3877, %v3826
  %v3886 = vsel %vm3759, %v3878, %v3828
  %v3887 = vsel %vm3759, %v3879, %v3830
  %v3888 = vsel %vm3759, %v3880, %v3832
  %v3889 = vsel %vm3768, %v3881, %v3850
  %v3890 = vsel %vm3768, %v3882, %v3852
  %v3891 = vsel %vm3768, %v3883, %v3854
  %v3892 = vsel %vm3768, %v3884, %v3856
  %v3893 = vsel %vm3768, %v3885, %v3858
  %v3894 = vsel %vm3768, %v3886, %v3860
  %v3895 = vsel %vm3768, %v3887, %v3862
  %v3896 = vsel %vm3768, %v3888, %v3864
  %v3897 = vld [vmem:[%s5] sm:$0xff]
  %v3898 = vld [vmem:[%s5 + $0x8] sm:$0xff]
  %v3899 = vld [vmem:[%s5 + $0x10] sm:$0xff]
  %v3900 = vld [vmem:[%s5 + $0x18] sm:$0xff]
  %v3901 = vld [vmem:[%s6] sm:$0x1]
  %v3903 = vperm.slane %v3901, 0
  %v3906 = vsel %vm62, %v3769, 0
  %v3909 = vsel %vm62, %v3770, 0
  %v3912 = vsel %vm62, %v3771, 0
  %v3915 = vsel %vm62, %v3772, 0
  %v3918 = vsel %vm62, %v3773, 0
  %v3921 = vsel %vm62, %v3774, 0
  %v3924 = vsel %vm62, %v3775, 0
  %v3927 = vsel %vm62, %v3776, 0
  %v3930 = vsel %vm62, %v3889, 0
  %v3933 = vsel %vm62, %v3890, 0
  %v3936 = vsel %vm62, %v3891, 0
  %v3939 = vsel %vm62, %v3892, 0
  %v3942 = vsel %vm62, %v3893, 0
  %v3945 = vsel %vm62, %v3894, 0
  %v3948 = vsel %vm62, %v3895, 0
  %v3951 = vsel %vm62, %v3896, 0
  %3953 = vmatpush.msra.mxu0 0.0
  %3954 = vmatpush.msra.mxu0 0.0
  %3955 = vmatpush.msra.mxu0 0.0
  %3956 = vmatpush.msra.mxu0 0.0
  %3957 = vmatpush.msra.mxu0 0.0
  %3958 = vmatpush.msra.mxu0 0.0
  %3959 = vmatpush.msra.mxu0 0.0
  %3960 = vmatpush.msra.mxu0 0.0
  %3961 = vmatpush.msra.mxu0 0.0
  %3962 = vmatpush.msra.mxu0 0.0
  %3963 = vmatpush.msra.mxu0 0.0
  %3964 = vmatpush.msra.mxu0 0.0
  %3965 = vmatpush.msra.mxu0 %v3900
  %3966 = vmatpush.msra.mxu0 %v3899
  %3967 = vmatpush.msra.mxu0 %v3898
  %3968 = vmatpush.msra.mxu0 %v3897
  %3969 = vmatmul.f32.gmra.mxu0 %v3906
  %v3970 = vpop.f32.mrf.mxu0
  %v3971 = vadd.f32 %v3903, %v3970
  %3972 = vmatmul.f32.gmra.mxu0 %v3909
  %v3973 = vpop.f32.mrf.mxu0
  %v3974 = vadd.f32 %v3903, %v3973
  %3975 = vmatmul.f32.gmra.mxu0 %v3912
  %v3976 = vpop.f32.mrf.mxu0
  %v3977 = vadd.f32 %v3903, %v3976
  %3978 = vmatmul.f32.gmra.mxu0 %v3915
  %v3979 = vpop.f32.mrf.mxu0
  %v3980 = vadd.f32 %v3903, %v3979
  %3981 = vmatmul.f32.gmra.mxu0 %v3918
  %v3982 = vpop.f32.mrf.mxu0
  %v3983 = vadd.f32 %v3903, %v3982
  %3984 = vmatmul.f32.gmra.mxu0 %v3921
  %v3985 = vpop.f32.mrf.mxu0
  %v3986 = vadd.f32 %v3903, %v3985
  %3987 = vmatmul.f32.gmra.mxu0 %v3924
  %v3988 = vpop.f32.mrf.mxu0
  %v3989 = vadd.f32 %v3903, %v3988
  %3990 = vmatmul.f32.gmra.mxu0 %v3927
  %v3991 = vpop.f32.mrf.mxu0
  %v3992 = vadd.f32 %v3903, %v3991
  %3993 = vmatmul.f32.gmra.mxu0 %v3930
  %v3994 = vpop.f32.mrf.mxu0
  %v3995 = vadd.f32 %v3903, %v3994
  %3996 = vmatmul.f32.gmra.mxu0 %v3933
  %v3997 = vpop.f32.mrf.mxu0
  %v3998 = vadd.f32 %v3903, %v3997
  %3999 = vmatmul.f32.gmra.mxu0 %v3936
  %v4000 = vpop.f32.mrf.mxu0
  %v4001 = vadd.f32 %v3903, %v4000
  %4002 = vmatmul.f32.gmra.mxu0 %v3939
  %v4003 = vpop.f32.mrf.mxu0
  %v4004 = vadd.f32 %v3903, %v4003
  %4005 = vmatmul.f32.gmra.mxu0 %v3942
  %v4006 = vpop.f32.mrf.mxu0
  %v4007 = vadd.f32 %v3903, %v4006
  %4008 = vmatmul.f32.gmra.mxu0 %v3945
  %v4009 = vpop.f32.mrf.mxu0
  %v4010 = vadd.f32 %v3903, %v4009
  %4011 = vmatmul.f32.gmra.mxu0 %v3948
  %v4012 = vpop.f32.mrf.mxu0
  %v4013 = vadd.f32 %v3903, %v4012
  %4014 = vmatmul.f32.gmra.mxu0 %v3951
  %v4015 = vpop.f32.mrf.mxu0
  %v4016 = vadd.f32 %v3903, %v4015
  %4017 = vdwg.mxu0
  %v4018 = vadd.f32 %v44, %v3971
  %v4019 = vadd.f32 %v45, %v3974
  %v4020 = vadd.f32 %v46, %v3977
  %v4021 = vadd.f32 %v47, %v3980
  %v4022 = vadd.f32 %v48, %v3983
  %v4023 = vadd.f32 %v49, %v3986
  %v4024 = vadd.f32 %v50, %v3989
  %v4025 = vadd.f32 %v51, %v3992
  %v4026 = vadd.f32 %v52, %v3995
  %v4027 = vadd.f32 %v53, %v3998
  %v4028 = vadd.f32 %v54, %v4001
  %v4029 = vadd.f32 %v55, %v4004
  %v4030 = vadd.f32 %v56, %v4007
  %v4031 = vadd.f32 %v57, %v4010
  %v4032 = vadd.f32 %v58, %v4013
  %v4033 = vadd.f32 %v59, %v4016
  %v4034 = vld [vmem:[%s7] sm:$0x1]
  %v4035 = vld [vmem:[%s8] sm:$0x1]
  %v4036 = vsel %vm62, %v4018, 0.0
  %4037 = vadd.xlane.f32.xlu0 %v4036
  %v4038 = vpop.xlane.xlu0 %4037
  %v4039 = vsel %vm62, %v4019, 0.0
  %4040 = vadd.xlane.f32.xlu0 %v4039
  %v4041 = vpop.xlane.xlu0 %4040
  %v4042 = vsel %vm62, %v4020, 0.0
  %4043 = vadd.xlane.f32.xlu0 %v4042
  %v4044 = vpop.xlane.xlu0 %4043
  %v4045 = vsel %vm62, %v4021, 0.0
  %4046 = vadd.xlane.f32.xlu0 %v4045
  %v4047 = vpop.xlane.xlu0 %4046
  %v4048 = vsel %vm62, %v4022, 0.0
  %4049 = vadd.xlane.f32.xlu0 %v4048
  %v4050 = vpop.xlane.xlu0 %4049
  %v4051 = vsel %vm62, %v4023, 0.0
  %4052 = vadd.xlane.f32.xlu0 %v4051
  %v4053 = vpop.xlane.xlu0 %4052
  %v4054 = vsel %vm62, %v4024, 0.0
  %4055 = vadd.xlane.f32.xlu0 %v4054
  %v4056 = vpop.xlane.xlu0 %4055
  %v4057 = vsel %vm62, %v4025, 0.0
  %4058 = vadd.xlane.f32.xlu0 %v4057
  %v4059 = vpop.xlane.xlu0 %4058
  %v4060 = vsel %vm62, %v4026, 0.0
  %4061 = vadd.xlane.f32.xlu0 %v4060
  %v4062 = vpop.xlane.xlu0 %4061
  %v4063 = vsel %vm62, %v4027, 0.0
  %4064 = vadd.xlane.f32.xlu0 %v4063
  %v4065 = vpop.xlane.xlu0 %4064
  %v4066 = vsel %vm62, %v4028, 0.0
  %4067 = vadd.xlane.f32.xlu0 %v4066
  %v4068 = vpop.xlane.xlu0 %4067
  %v4069 = vsel %vm62, %v4029, 0.0
  %4070 = vadd.xlane.f32.xlu0 %v4069
  %v4071 = vpop.xlane.xlu0 %4070
  %v4072 = vsel %vm62, %v4030, 0.0
  %4073 = vadd.xlane.f32.xlu0 %v4072
  %v4074 = vpop.xlane.xlu0 %4073
  %v4075 = vsel %vm62, %v4031, 0.0
  %4076 = vadd.xlane.f32.xlu0 %v4075
  %v4077 = vpop.xlane.xlu0 %4076
  %v4078 = vsel %vm62, %v4032, 0.0
  %4079 = vadd.xlane.f32.xlu0 %v4078
  %v4080 = vpop.xlane.xlu0 %4079
  %v4081 = vsel %vm62, %v4033, 0.0
  %4082 = vadd.xlane.f32.xlu0 %v4081
  %v4083 = vpop.xlane.xlu0 %4082
  %v4084 = vmul.f32 %v4038, %v117
  %v4085 = vmul.f32 %v4041, %v117
  %v4086 = vmul.f32 %v4044, %v117
  %v4087 = vmul.f32 %v4047, %v117
  %v4088 = vmul.f32 %v4050, %v117
  %v4089 = vmul.f32 %v4053, %v117
  %v4090 = vmul.f32 %v4056, %v117
  %v4091 = vmul.f32 %v4059, %v117
  %v4092 = vmul.f32 %v4062, %v117
  %v4093 = vmul.f32 %v4065, %v117
  %v4094 = vmul.f32 %v4068, %v117
  %v4095 = vmul.f32 %v4071, %v117
  %v4096 = vmul.f32 %v4074, %v117
  %v4097 = vmul.f32 %v4077, %v117
  %v4098 = vmul.f32 %v4080, %v117
  %v4099 = vmul.f32 %v4083, %v117
  %v4100 = vsub.f32 %v4018, %v4084
  %v4101 = vsub.f32 %v4019, %v4085
  %v4102 = vsub.f32 %v4020, %v4086
  %v4103 = vsub.f32 %v4021, %v4087
  %v4104 = vsub.f32 %v4022, %v4088
  %v4105 = vsub.f32 %v4023, %v4089
  %v4106 = vsub.f32 %v4024, %v4090
  %v4107 = vsub.f32 %v4025, %v4091
  %v4108 = vsub.f32 %v4026, %v4092
  %v4109 = vsub.f32 %v4027, %v4093
  %v4110 = vsub.f32 %v4028, %v4094
  %v4111 = vsub.f32 %v4029, %v4095
  %v4112 = vsub.f32 %v4030, %v4096
  %v4113 = vsub.f32 %v4031, %v4097
  %v4114 = vsub.f32 %v4032, %v4098
  %v4115 = vsub.f32 %v4033, %v4099
  %v4116 = vmul.f32 %v4100, %v4100
  %v4117 = vmul.f32 %v4101, %v4101
  %v4118 = vmul.f32 %v4102, %v4102
  %v4119 = vmul.f32 %v4103, %v4103
  %v4120 = vmul.f32 %v4104, %v4104
  %v4121 = vmul.f32 %v4105, %v4105
  %v4122 = vmul.f32 %v4106, %v4106
  %v4123 = vmul.f32 %v4107, %v4107
  %v4124 = vmul.f32 %v4108, %v4108
  %v4125 = vmul.f32 %v4109, %v4109
  %v4126 = vmul.f32 %v4110, %v4110
  %v4127 = vmul.f32 %v4111, %v4111
  %v4128 = vmul.f32 %v4112, %v4112
  %v4129 = vmul.f32 %v4113, %v4113
  %v4130 = vmul.f32 %v4114, %v4114
  %v4131 = vmul.f32 %v4115, %v4115
  %v4132 = vsel %vm62, %v4116, 0.0
  %4133 = vadd.xlane.f32.xlu0 %v4132
  %v4134 = vpop.xlane.xlu0 %4133
  %v4135 = vsel %vm62, %v4117, 0.0
  %4136 = vadd.xlane.f32.xlu0 %v4135
  %v4137 = vpop.xlane.xlu0 %4136
  %v4138 = vsel %vm62, %v4118, 0.0
  %4139 = vadd.xlane.f32.xlu0 %v4138
  %v4140 = vpop.xlane.xlu0 %4139
  %v4141 = vsel %vm62, %v4119, 0.0
  %4142 = vadd.xlane.f32.xlu0 %v4141
  %v4143 = vpop.xlane.xlu0 %4142
  %v4144 = vsel %vm62, %v4120, 0.0
  %4145 = vadd.xlane.f32.xlu0 %v4144
  %v4146 = vpop.xlane.xlu0 %4145
  %v4147 = vsel %vm62, %v4121, 0.0
  %4148 = vadd.xlane.f32.xlu0 %v4147
  %v4149 = vpop.xlane.xlu0 %4148
  %v4150 = vsel %vm62, %v4122, 0.0
  %4151 = vadd.xlane.f32.xlu0 %v4150
  %v4152 = vpop.xlane.xlu0 %4151
  %v4153 = vsel %vm62, %v4123, 0.0
  %4154 = vadd.xlane.f32.xlu0 %v4153
  %v4155 = vpop.xlane.xlu0 %4154
  %v4156 = vsel %vm62, %v4124, 0.0
  %4157 = vadd.xlane.f32.xlu0 %v4156
  %v4158 = vpop.xlane.xlu0 %4157
  %v4159 = vsel %vm62, %v4125, 0.0
  %4160 = vadd.xlane.f32.xlu0 %v4159
  %v4161 = vpop.xlane.xlu0 %4160
  %v4162 = vsel %vm62, %v4126, 0.0
  %4163 = vadd.xlane.f32.xlu0 %v4162
  %v4164 = vpop.xlane.xlu0 %4163
  %v4165 = vsel %vm62, %v4127, 0.0
  %4166 = vadd.xlane.f32.xlu0 %v4165
  %v4167 = vpop.xlane.xlu0 %4166
  %v4168 = vsel %vm62, %v4128, 0.0
  %4169 = vadd.xlane.f32.xlu0 %v4168
  %v4170 = vpop.xlane.xlu0 %4169
  %v4171 = vsel %vm62, %v4129, 0.0
  %4172 = vadd.xlane.f32.xlu0 %v4171
  %v4173 = vpop.xlane.xlu0 %4172
  %v4174 = vsel %vm62, %v4130, 0.0
  %4175 = vadd.xlane.f32.xlu0 %v4174
  %v4176 = vpop.xlane.xlu0 %4175
  %v4177 = vsel %vm62, %v4131, 0.0
  %4178 = vadd.xlane.f32.xlu0 %v4177
  %v4179 = vpop.xlane.xlu0 %4178
  %v4180 = vmul.f32 %v4134, %v117
  %v4181 = vmul.f32 %v4137, %v117
  %v4182 = vmul.f32 %v4140, %v117
  %v4183 = vmul.f32 %v4143, %v117
  %v4184 = vmul.f32 %v4146, %v117
  %v4185 = vmul.f32 %v4149, %v117
  %v4186 = vmul.f32 %v4152, %v117
  %v4187 = vmul.f32 %v4155, %v117
  %v4188 = vmul.f32 %v4158, %v117
  %v4189 = vmul.f32 %v4161, %v117
  %v4190 = vmul.f32 %v4164, %v117
  %v4191 = vmul.f32 %v4167, %v117
  %v4192 = vmul.f32 %v4170, %v117
  %v4193 = vmul.f32 %v4173, %v117
  %v4194 = vmul.f32 %v4176, %v117
  %v4195 = vmul.f32 %v4179, %v117
  %v4196 = vadd.f32 %v4180, 1e-05
  %v4197 = vadd.f32 %v4181, 1e-05
  %v4198 = vadd.f32 %v4182, 1e-05
  %v4199 = vadd.f32 %v4183, 1e-05
  %v4200 = vadd.f32 %v4184, 1e-05
  %v4201 = vadd.f32 %v4185, 1e-05
  %v4202 = vadd.f32 %v4186, 1e-05
  %v4203 = vadd.f32 %v4187, 1e-05
  %v4204 = vadd.f32 %v4188, 1e-05
  %v4205 = vadd.f32 %v4189, 1e-05
  %v4206 = vadd.f32 %v4190, 1e-05
  %v4207 = vadd.f32 %v4191, 1e-05
  %v4208 = vadd.f32 %v4192, 1e-05
  %v4209 = vadd.f32 %v4193, 1e-05
  %v4210 = vadd.f32 %v4194, 1e-05
  %v4211 = vadd.f32 %v4195, 1e-05
  %v4212 = vrsqrt.pop %v4196
  %v4213 = vmul.f32 %v4212, %v4196
  %v4214 = vmul.f32 %v4213, %v4212
  %v4215 = vmul.f32 0.5, %v4214
  %v4216 = vsub.f32 1.5, %v4215
  %v4217 = vmul.f32 %v4212, %v4216
  %vm4218 = vweird.f32 %v4196
  %vm4219 = vweird.f32 %v4212
  %vm4220 = vmor %vm4218, %vm4219
  %v4221 = vsel %vm4220, %v4212, %v4217
  %v4222 = vrsqrt.pop %v4197
  %v4223 = vmul.f32 %v4222, %v4197
  %v4224 = vmul.f32 %v4223, %v4222
  %v4225 = vmul.f32 0.5, %v4224
  %v4226 = vsub.f32 1.5, %v4225
  %v4227 = vmul.f32 %v4222, %v4226
  %vm4228 = vweird.f32 %v4197
  %vm4229 = vweird.f32 %v4222
  %vm4230 = vmor %vm4228, %vm4229
  %v4231 = vsel %vm4230, %v4222, %v4227
  %v4232 = vrsqrt.pop %v4198
  %v4233 = vmul.f32 %v4232, %v4198
  %v4234 = vmul.f32 %v4233, %v4232
  %v4235 = vmul.f32 0.5, %v4234
  %v4236 = vsub.f32 1.5, %v4235
  %v4237 = vmul.f32 %v4232, %v4236
  %vm4238 = vweird.f32 %v4198
  %vm4239 = vweird.f32 %v4232
  %vm4240 = vmor %vm4238, %vm4239
  %v4241 = vsel %vm4240, %v4232, %v4237
  %v4242 = vrsqrt.pop %v4199
  %v4243 = vmul.f32 %v4242, %v4199
  %v4244 = vmul.f32 %v4243, %v4242
  %v4245 = vmul.f32 0.5, %v4244
  %v4246 = vsub.f32 1.5, %v4245
  %v4247 = vmul.f32 %v4242, %v4246
  %vm4248 = vweird.f32 %v4199
  %vm4249 = vweird.f32 %v4242
  %vm4250 = vmor %vm4248, %vm4249
  %v4251 = vsel %vm4250, %v4242, %v4247
  %v4252 = vrsqrt.pop %v4200
  %v4253 = vmul.f32 %v4252, %v4200
  %v4254 = vmul.f32 %v4253, %v4252
  %v4255 = vmul.f32 0.5, %v4254
  %v4256 = vsub.f32 1.5, %v4255
  %v4257 = vmul.f32 %v4252, %v4256
  %vm4258 = vweird.f32 %v4200
  %vm4259 = vweird.f32 %v4252
  %vm4260 = vmor %vm4258, %vm4259
  %v4261 = vsel %vm4260, %v4252, %v4257
  %v4262 = vrsqrt.pop %v4201
  %v4263 = vmul.f32 %v4262, %v4201
  %v4264 = vmul.f32 %v4263, %v4262
  %v4265 = vmul.f32 0.5, %v4264
  %v4266 = vsub.f32 1.5, %v4265
  %v4267 = vmul.f32 %v4262, %v4266
  %vm4268 = vweird.f32 %v4201
  %vm4269 = vweird.f32 %v4262
  %vm4270 = vmor %vm4268, %vm4269
  %v4271 = vsel %vm4270, %v4262, %v4267
  %v4272 = vrsqrt.pop %v4202
  %v4273 = vmul.f32 %v4272, %v4202
  %v4274 = vmul.f32 %v4273, %v4272
  %v4275 = vmul.f32 0.5, %v4274
  %v4276 = vsub.f32 1.5, %v4275
  %v4277 = vmul.f32 %v4272, %v4276
  %vm4278 = vweird.f32 %v4202
  %vm4279 = vweird.f32 %v4272
  %vm4280 = vmor %vm4278, %vm4279
  %v4281 = vsel %vm4280, %v4272, %v4277
  %v4282 = vrsqrt.pop %v4203
  %v4283 = vmul.f32 %v4282, %v4203
  %v4284 = vmul.f32 %v4283, %v4282
  %v4285 = vmul.f32 0.5, %v4284
  %v4286 = vsub.f32 1.5, %v4285
  %v4287 = vmul.f32 %v4282, %v4286
  %vm4288 = vweird.f32 %v4203
  %vm4289 = vweird.f32 %v4282
  %vm4290 = vmor %vm4288, %vm4289
  %v4291 = vsel %vm4290, %v4282, %v4287
  %v4292 = vrsqrt.pop %v4204
  %v4293 = vmul.f32 %v4292, %v4204
  %v4294 = vmul.f32 %v4293, %v4292
  %v4295 = vmul.f32 0.5, %v4294
  %v4296 = vsub.f32 1.5, %v4295
  %v4297 = vmul.f32 %v4292, %v4296
  %vm4298 = vweird.f32 %v4204
  %vm4299 = vweird.f32 %v4292
  %vm4300 = vmor %vm4298, %vm4299
  %v4301 = vsel %vm4300, %v4292, %v4297
  %v4302 = vrsqrt.pop %v4205
  %v4303 = vmul.f32 %v4302, %v4205
  %v4304 = vmul.f32 %v4303, %v4302
  %v4305 = vmul.f32 0.5, %v4304
  %v4306 = vsub.f32 1.5, %v4305
  %v4307 = vmul.f32 %v4302, %v4306
  %vm4308 = vweird.f32 %v4205
  %vm4309 = vweird.f32 %v4302
  %vm4310 = vmor %vm4308, %vm4309
  %v4311 = vsel %vm4310, %v4302, %v4307
  %v4312 = vrsqrt.pop %v4206
  %v4313 = vmul.f32 %v4312, %v4206
  %v4314 = vmul.f32 %v4313, %v4312
  %v4315 = vmul.f32 0.5, %v4314
  %v4316 = vsub.f32 1.5, %v4315
  %v4317 = vmul.f32 %v4312, %v4316
  %vm4318 = vweird.f32 %v4206
  %vm4319 = vweird.f32 %v4312
  %vm4320 = vmor %vm4318, %vm4319
  %v4321 = vsel %vm4320, %v4312, %v4317
  %v4322 = vrsqrt.pop %v4207
  %v4323 = vmul.f32 %v4322, %v4207
  %v4324 = vmul.f32 %v4323, %v4322
  %v4325 = vmul.f32 0.5, %v4324
  %v4326 = vsub.f32 1.5, %v4325
  %v4327 = vmul.f32 %v4322, %v4326
  %vm4328 = vweird.f32 %v4207
  %vm4329 = vweird.f32 %v4322
  %vm4330 = vmor %vm4328, %vm4329
  %v4331 = vsel %vm4330, %v4322, %v4327
  %v4332 = vrsqrt.pop %v4208
  %v4333 = vmul.f32 %v4332, %v4208
  %v4334 = vmul.f32 %v4333, %v4332
  %v4335 = vmul.f32 0.5, %v4334
  %v4336 = vsub.f32 1.5, %v4335
  %v4337 = vmul.f32 %v4332, %v4336
  %vm4338 = vweird.f32 %v4208
  %vm4339 = vweird.f32 %v4332
  %vm4340 = vmor %vm4338, %vm4339
  %v4341 = vsel %vm4340, %v4332, %v4337
  %v4342 = vrsqrt.pop %v4209
  %v4343 = vmul.f32 %v4342, %v4209
  %v4344 = vmul.f32 %v4343, %v4342
  %v4345 = vmul.f32 0.5, %v4344
  %v4346 = vsub.f32 1.5, %v4345
  %v4347 = vmul.f32 %v4342, %v4346
  %vm4348 = vweird.f32 %v4209
  %vm4349 = vweird.f32 %v4342
  %vm4350 = vmor %vm4348, %vm4349
  %v4351 = vsel %vm4350, %v4342, %v4347
  %v4352 = vrsqrt.pop %v4210
  %v4353 = vmul.f32 %v4352, %v4210
  %v4354 = vmul.f32 %v4353, %v4352
  %v4355 = vmul.f32 0.5, %v4354
  %v4356 = vsub.f32 1.5, %v4355
  %v4357 = vmul.f32 %v4352, %v4356
  %vm4358 = vweird.f32 %v4210
  %vm4359 = vweird.f32 %v4352
  %vm4360 = vmor %vm4358, %vm4359
  %v4361 = vsel %vm4360, %v4352, %v4357
  %v4362 = vrsqrt.pop %v4211
  %v4363 = vmul.f32 %v4362, %v4211
  %v4364 = vmul.f32 %v4363, %v4362
  %v4365 = vmul.f32 0.5, %v4364
  %v4366 = vsub.f32 1.5, %v4365
  %v4367 = vmul.f32 %v4362, %v4366
  %vm4368 = vweird.f32 %v4211
  %vm4369 = vweird.f32 %v4362
  %vm4370 = vmor %vm4368, %vm4369
  %v4371 = vsel %vm4370, %v4362, %v4367
  %v4372 = vmul.f32 %v4100, %v4221
  %v4373 = vmul.f32 %v4101, %v4231
  %v4374 = vmul.f32 %v4102, %v4241
  %v4375 = vmul.f32 %v4103, %v4251
  %v4376 = vmul.f32 %v4104, %v4261
  %v4377 = vmul.f32 %v4105, %v4271
  %v4378 = vmul.f32 %v4106, %v4281
  %v4379 = vmul.f32 %v4107, %v4291
  %v4380 = vmul.f32 %v4108, %v4301
  %v4381 = vmul.f32 %v4109, %v4311
  %v4382 = vmul.f32 %v4110, %v4321
  %v4383 = vmul.f32 %v4111, %v4331
  %v4384 = vmul.f32 %v4112, %v4341
  %v4385 = vmul.f32 %v4113, %v4351
  %v4386 = vmul.f32 %v4114, %v4361
  %v4387 = vmul.f32 %v4115, %v4371
  %v4389 = vperm.slane %v4034, 0
  %v4391 = vmul.f32 %v4372, %v4389
  %v4392 = vmul.f32 %v4373, %v4389
  %v4393 = vmul.f32 %v4374, %v4389
  %v4394 = vmul.f32 %v4375, %v4389
  %v4395 = vmul.f32 %v4376, %v4389
  %v4396 = vmul.f32 %v4377, %v4389
  %v4397 = vmul.f32 %v4378, %v4389
  %v4398 = vmul.f32 %v4379, %v4389
  %v4399 = vmul.f32 %v4380, %v4389
  %v4400 = vmul.f32 %v4381, %v4389
  %v4401 = vmul.f32 %v4382, %v4389
  %v4402 = vmul.f32 %v4383, %v4389
  %v4403 = vmul.f32 %v4384, %v4389
  %v4404 = vmul.f32 %v4385, %v4389
  %v4405 = vmul.f32 %v4386, %v4389
  %v4406 = vmul.f32 %v4387, %v4389
  %v4408 = vperm.slane %v4035, 0
  %v4410 = vadd.f32 %v4391, %v4408
  %v4411 = vadd.f32 %v4392, %v4408
  %v4412 = vadd.f32 %v4393, %v4408
  %v4413 = vadd.f32 %v4394, %v4408
  %v4414 = vadd.f32 %v4395, %v4408
  %v4415 = vadd.f32 %v4396, %v4408
  %v4416 = vadd.f32 %v4397, %v4408
  %v4417 = vadd.f32 %v4398, %v4408
  %v4418 = vadd.f32 %v4399, %v4408
  %v4419 = vadd.f32 %v4400, %v4408
  %v4420 = vadd.f32 %v4401, %v4408
  %v4421 = vadd.f32 %v4402, %v4408
  %v4422 = vadd.f32 %v4403, %v4408
  %v4423 = vadd.f32 %v4404, %v4408
  %v4424 = vadd.f32 %v4405, %v4408
  %v4425 = vadd.f32 %v4406, %v4408
  %v4426 = vld [vmem:[%s9] sm:$0xff]
  %v4427 = vld [vmem:[%s9 + $0x8] sm:$0xff]
  %v4428 = vld [vmem:[%s9 + $0x10] sm:$0xff]
  %v4429 = vld [vmem:[%s9 + $0x18] sm:$0xff]
  %v4430 = vld [vmem:[%s10] sm:$0x1]
  %v4432 = vperm.slane %v4430, 0
  %v4435 = vsel %vm62, %v4410, 0
  %v4438 = vsel %vm62, %v4411, 0
  %v4441 = vsel %vm62, %v4412, 0
  %v4444 = vsel %vm62, %v4413, 0
  %v4447 = vsel %vm62, %v4414, 0
  %v4450 = vsel %vm62, %v4415, 0
  %v4453 = vsel %vm62, %v4416, 0
  %v4456 = vsel %vm62, %v4417, 0
  %v4459 = vsel %vm62, %v4418, 0
  %v4462 = vsel %vm62, %v4419, 0
  %v4465 = vsel %vm62, %v4420, 0
  %v4468 = vsel %vm62, %v4421, 0
  %v4471 = vsel %vm62, %v4422, 0
  %v4474 = vsel %vm62, %v4423, 0
  %v4477 = vsel %vm62, %v4424, 0
  %v4480 = vsel %vm62, %v4425, 0
  %4482 = vmatpush.msra.mxu0 0.0
  %4483 = vmatpush.msra.mxu0 0.0
  %4484 = vmatpush.msra.mxu0 0.0
  %4485 = vmatpush.msra.mxu0 0.0
  %4486 = vmatpush.msra.mxu0 0.0
  %4487 = vmatpush.msra.mxu0 0.0
  %4488 = vmatpush.msra.mxu0 0.0
  %4489 = vmatpush.msra.mxu0 0.0
  %4490 = vmatpush.msra.mxu0 0.0
  %4491 = vmatpush.msra.mxu0 0.0
  %4492 = vmatpush.msra.mxu0 0.0
  %4493 = vmatpush.msra.mxu0 0.0
  %4494 = vmatpush.msra.mxu0 %v4429
  %4495 = vmatpush.msra.mxu0 %v4428
  %4496 = vmatpush.msra.mxu0 %v4427
  %4497 = vmatpush.msra.mxu0 %v4426
  %4498 = vmatmul.f32.gmra.mxu0 %v4435
  %v4499 = vpop.f32.mrf.mxu0
  %v4500 = vadd.f32 %v4432, %v4499
  %4501 = vmatmul.f32.gmra.mxu0 %v4438
  %v4502 = vpop.f32.mrf.mxu0
  %v4503 = vadd.f32 %v4432, %v4502
  %4504 = vmatmul.f32.gmra.mxu0 %v4441
  %v4505 = vpop.f32.mrf.mxu0
  %v4506 = vadd.f32 %v4432, %v4505
  %4507 = vmatmul.f32.gmra.mxu0 %v4444
  %v4508 = vpop.f32.mrf.mxu0
  %v4509 = vadd.f32 %v4432, %v4508
  %4510 = vmatmul.f32.gmra.mxu0 %v4447
  %v4511 = vpop.f32.mrf.mxu0
  %v4512 = vadd.f32 %v4432, %v4511
  %4513 = vmatmul.f32.gmra.mxu0 %v4450
  %v4514 = vpop.f32.mrf.mxu0
  %v4515 = vadd.f32 %v4432, %v4514
  %4516 = vmatmul.f32.gmra.mxu0 %v4453
  %v4517 = vpop.f32.mrf.mxu0
  %v4518 = vadd.f32 %v4432, %v4517
  %4519 = vmatmul.f32.gmra.mxu0 %v4456
  %v4520 = vpop.f32.mrf.mxu0
  %v4521 = vadd.f32 %v4432, %v4520
  %4522 = vmatmul.f32.gmra.mxu0 %v4459
  %v4523 = vpop.f32.mrf.mxu0
  %v4524 = vadd.f32 %v4432, %v4523
  %4525 = vmatmul.f32.gmra.mxu0 %v4462
  %v4526 = vpop.f32.mrf.mxu0
  %v4527 = vadd.f32 %v4432, %v4526
  %4528 = vmatmul.f32.gmra.mxu0 %v4465
  %v4529 = vpop.f32.mrf.mxu0
  %v4530 = vadd.f32 %v4432, %v4529
  %4531 = vmatmul.f32.gmra.mxu0 %v4468
  %v4532 = vpop.f32.mrf.mxu0
  %v4533 = vadd.f32 %v4432, %v4532
  %4534 = vmatmul.f32.gmra.mxu0 %v4471
  %v4535 = vpop.f32.mrf.mxu0
  %v4536 = vadd.f32 %v4432, %v4535
  %4537 = vmatmul.f32.gmra.mxu0 %v4474
  %v4538 = vpop.f32.mrf.mxu0
  %v4539 = vadd.f32 %v4432, %v4538
  %4540 = vmatmul.f32.gmra.mxu0 %v4477
  %v4541 = vpop.f32.mrf.mxu0
  %v4542 = vadd.f32 %v4432, %v4541
  %4543 = vmatmul.f32.gmra.mxu0 %v4480
  %v4544 = vpop.f32.mrf.mxu0
  %v4545 = vadd.f32 %v4432, %v4544
  %4546 = vdwg.mxu0
  %v4547 = vmul.f32 %v4500, 0.5
  %v4548 = vmul.f32 %v4503, 0.5
  %v4549 = vmul.f32 %v4506, 0.5
  %v4550 = vmul.f32 %v4509, 0.5
  %v4551 = vmul.f32 %v4512, 0.5
  %v4552 = vmul.f32 %v4515, 0.5
  %v4553 = vmul.f32 %v4518, 0.5
  %v4554 = vmul.f32 %v4521, 0.5
  %v4555 = vmul.f32 %v4524, 0.5
  %v4556 = vmul.f32 %v4527, 0.5
  %v4557 = vmul.f32 %v4530, 0.5
  %v4558 = vmul.f32 %v4533, 0.5
  %v4559 = vmul.f32 %v4536, 0.5
  %v4560 = vmul.f32 %v4539, 0.5
  %v4561 = vmul.f32 %v4542, 0.5
  %v4562 = vmul.f32 %v4545, 0.5
  %v4563 = vmul.f32 %v4500, 0.70710677
  %v4564 = vmul.f32 %v4503, 0.70710677
  %v4565 = vmul.f32 %v4506, 0.70710677
  %v4566 = vmul.f32 %v4509, 0.70710677
  %v4567 = vmul.f32 %v4512, 0.70710677
  %v4568 = vmul.f32 %v4515, 0.70710677
  %v4569 = vmul.f32 %v4518, 0.70710677
  %v4570 = vmul.f32 %v4521, 0.70710677
  %v4571 = vmul.f32 %v4524, 0.70710677
  %v4572 = vmul.f32 %v4527, 0.70710677
  %v4573 = vmul.f32 %v4530, 0.70710677
  %v4574 = vmul.f32 %v4533, 0.70710677
  %v4575 = vmul.f32 %v4536, 0.70710677
  %v4576 = vmul.f32 %v4539, 0.70710677
  %v4577 = vmul.f32 %v4542, 0.70710677
  %v4578 = vmul.f32 %v4545, 0.70710677
  %v4579 = vmul.f32 %v4563, %v4563
  %v4580 = vmin.f32 16.0, %v4579
  %v4581 = vmul.f32 %v4580, 2.1237322e-06
  %v4582 = vadd.f32 %v4581, 0.00028619796
  %v4583 = vmul.f32 %v4580, %v4582
  %v4584 = vadd.f32 %v4583, 0.0036580483
  %v4585 = vmul.f32 %v4580, %v4584
  %v4586 = vadd.f32 %v4585, 0.05243302
  %v4587 = vmul.f32 %v4580, %v4586
  %v4588 = vadd.f32 %v4587, 0.18741608
  %v4589 = vmul.f32 %v4580, %v4588
  %v4590 = vadd.f32 %v4589, 1.1283791
  %v4591 = vmul.f32 %v4563, %v4590
  %v4592 = vmul.f32 %v4580, 3.8918573e-05
  %v4593 = vadd.f32 %v4592, 0.001143296
  %v4594 = vmul.f32 %v4580, %v4593
  %v4595 = vadd.f32 %v4594, 0.014752088
  %v4596 = vmul.f32 %v4580, %v4595
  %v4597 = vadd.f32 %v4596, 0.112945676
  %v4598 = vmul.f32 %v4580, %v4597
  %v4599 = vadd.f32 %v4598, 0.4994258
  %v4600 = vmul.f32 %v4580, %v4599
  %v4601 = vadd.f32 %v4600, 1.0
  %v4602 = vrcp.pop %v4601
  %v4603 = vmul.f32 %v4601, %v4602
  %v4604 = vsub.f32 1.0, %v4603
  %v4605 = vmul.f32 %v4602, %v4604
  %v4606 = vadd.f32 %v4602, %v4605
  %vm4607 = vweird.f32 %v4601
  %vm4608 = vweird.f32 %v4602
  %vm4609 = vmor %vm4607, %vm4608
  %v4610 = vsel %vm4609, %v4602, %v4606
  %v4611 = vand.u32 2147483647, %v4601
  %vm4612 = vcmp.eq.f32.partialorder %v4611, 8.507059e+37
  %v4613 = vand.u32 %v4601, 2147483648
  %v4614 = vor.u32 1.1754944e-38, %v4613
  %v4615 = vsel %vm4612, %v4614, %v4610
  %v4616 = vmul.f32 %v4591, %v4615
  %v4617 = vmin.f32 %v4616, 1.0
  %v4618 = vmax.f32 %v4617, -1.0
  %v4619 = vmul.f32 %v4564, %v4564
  %v4620 = vmin.f32 16.0, %v4619
  %v4621 = vmul.f32 %v4620, 2.1237322e-06
  %v4622 = vadd.f32 %v4621, 0.00028619796
  %v4623 = vmul.f32 %v4620, %v4622
  %v4624 = vadd.f32 %v4623, 0.0036580483
  %v4625 = vmul.f32 %v4620, %v4624
  %v4626 = vadd.f32 %v4625, 0.05243302
  %v4627 = vmul.f32 %v4620, %v4626
  %v4628 = vadd.f32 %v4627, 0.18741608
  %v4629 = vmul.f32 %v4620, %v4628
  %v4630 = vadd.f32 %v4629, 1.1283791
  %v4631 = vmul.f32 %v4564, %v4630
  %v4632 = vmul.f32 %v4620, 3.8918573e-05
  %v4633 = vadd.f32 %v4632, 0.001143296
  %v4634 = vmul.f32 %v4620, %v4633
  %v4635 = vadd.f32 %v4634, 0.014752088
  %v4636 = vmul.f32 %v4620, %v4635
  %v4637 = vadd.f32 %v4636, 0.112945676
  %v4638 = vmul.f32 %v4620, %v4637
  %v4639 = vadd.f32 %v4638, 0.4994258
  %v4640 = vmul.f32 %v4620, %v4639
  %v4641 = vadd.f32 %v4640, 1.0
  %v4642 = vrcp.pop %v4641
  %v4643 = vmul.f32 %v4641, %v4642
  %v4644 = vsub.f32 1.0, %v4643
  %v4645 = vmul.f32 %v4642, %v4644
  %v4646 = vadd.f32 %v4642, %v4645
  %vm4647 = vweird.f32 %v4641
  %vm4648 = vweird.f32 %v4642
  %vm4649 = vmor %vm4647, %vm4648
  %v4650 = vsel %vm4649, %v4642, %v4646
  %v4651 = vand.u32 2147483647, %v4641
  %vm4652 = vcmp.eq.f32.partialorder %v4651, 8.507059e+37
  %v4653 = vand.u32 %v4641, 2147483648
  %v4654 = vor.u32 1.1754944e-38, %v4653
  %v4655 = vsel %vm4652, %v4654, %v4650
  %v4656 = vmul.f32 %v4631, %v4655
  %v4657 = vmin.f32 %v4656, 1.0
  %v4658 = vmax.f32 %v4657, -1.0
  %v4659 = vmul.f32 %v4565, %v4565
  %v4660 = vmin.f32 16.0, %v4659
  %v4661 = vmul.f32 %v4660, 2.1237322e-06
  %v4662 = vadd.f32 %v4661, 0.00028619796
  %v4663 = vmul.f32 %v4660, %v4662
  %v4664 = vadd.f32 %v4663, 0.0036580483
  %v4665 = vmul.f32 %v4660, %v4664
  %v4666 = vadd.f32 %v4665, 0.05243302
  %v4667 = vmul.f32 %v4660, %v4666
  %v4668 = vadd.f32 %v4667, 0.18741608
  %v4669 = vmul.f32 %v4660, %v4668
  %v4670 = vadd.f32 %v4669, 1.1283791
  %v4671 = vmul.f32 %v4565, %v4670
  %v4672 = vmul.f32 %v4660, 3.8918573e-05
  %v4673 = vadd.f32 %v4672, 0.001143296
  %v4674 = vmul.f32 %v4660, %v4673
  %v4675 = vadd.f32 %v4674, 0.014752088
  %v4676 = vmul.f32 %v4660, %v4675
  %v4677 = vadd.f32 %v4676, 0.112945676
  %v4678 = vmul.f32 %v4660, %v4677
  %v4679 = vadd.f32 %v4678, 0.4994258
  %v4680 = vmul.f32 %v4660, %v4679
  %v4681 = vadd.f32 %v4680, 1.0
  %v4682 = vrcp.pop %v4681
  %v4683 = vmul.f32 %v4681, %v4682
  %v4684 = vsub.f32 1.0, %v4683
  %v4685 = vmul.f32 %v4682, %v4684
  %v4686 = vadd.f32 %v4682, %v4685
  %vm4687 = vweird.f32 %v4681
  %vm4688 = vweird.f32 %v4682
  %vm4689 = vmor %vm4687, %vm4688
  %v4690 = vsel %vm4689, %v4682, %v4686
  %v4691 = vand.u32 2147483647, %v4681
  %vm4692 = vcmp.eq.f32.partialorder %v4691, 8.507059e+37
  %v4693 = vand.u32 %v4681, 2147483648
  %v4694 = vor.u32 1.1754944e-38, %v4693
  %v4695 = vsel %vm4692, %v4694, %v4690
  %v4696 = vmul.f32 %v4671, %v4695
  %v4697 = vmin.f32 %v4696, 1.0
  %v4698 = vmax.f32 %v4697, -1.0
  %v4699 = vmul.f32 %v4566, %v4566
  %v4700 = vmin.f32 16.0, %v4699
  %v4701 = vmul.f32 %v4700, 2.1237322e-06
  %v4702 = vadd.f32 %v4701, 0.00028619796
  %v4703 = vmul.f32 %v4700, %v4702
  %v4704 = vadd.f32 %v4703, 0.0036580483
  %v4705 = vmul.f32 %v4700, %v4704
  %v4706 = vadd.f32 %v4705, 0.05243302
  %v4707 = vmul.f32 %v4700, %v4706
  %v4708 = vadd.f32 %v4707, 0.18741608
  %v4709 = vmul.f32 %v4700, %v4708
  %v4710 = vadd.f32 %v4709, 1.1283791
  %v4711 = vmul.f32 %v4566, %v4710
  %v4712 = vmul.f32 %v4700, 3.8918573e-05
  %v4713 = vadd.f32 %v4712, 0.001143296
  %v4714 = vmul.f32 %v4700, %v4713
  %v4715 = vadd.f32 %v4714, 0.014752088
  %v4716 = vmul.f32 %v4700, %v4715
  %v4717 = vadd.f32 %v4716, 0.112945676
  %v4718 = vmul.f32 %v4700, %v4717
  %v4719 = vadd.f32 %v4718, 0.4994258
  %v4720 = vmul.f32 %v4700, %v4719
  %v4721 = vadd.f32 %v4720, 1.0
  %v4722 = vrcp.pop %v4721
  %v4723 = vmul.f32 %v4721, %v4722
  %v4724 = vsub.f32 1.0, %v4723
  %v4725 = vmul.f32 %v4722, %v4724
  %v4726 = vadd.f32 %v4722, %v4725
  %vm4727 = vweird.f32 %v4721
  %vm4728 = vweird.f32 %v4722
  %vm4729 = vmor %vm4727, %vm4728
  %v4730 = vsel %vm4729, %v4722, %v4726
  %v4731 = vand.u32 2147483647, %v4721
  %vm4732 = vcmp.eq.f32.partialorder %v4731, 8.507059e+37
  %v4733 = vand.u32 %v4721, 2147483648
  %v4734 = vor.u32 1.1754944e-38, %v4733
  %v4735 = vsel %vm4732, %v4734, %v4730
  %v4736 = vmul.f32 %v4711, %v4735
  %v4737 = vmin.f32 %v4736, 1.0
  %v4738 = vmax.f32 %v4737, -1.0
  %v4739 = vmul.f32 %v4567, %v4567
  %v4740 = vmin.f32 16.0, %v4739
  %v4741 = vmul.f32 %v4740, 2.1237322e-06
  %v4742 = vadd.f32 %v4741, 0.00028619796
  %v4743 = vmul.f32 %v4740, %v4742
  %v4744 = vadd.f32 %v4743, 0.0036580483
  %v4745 = vmul.f32 %v4740, %v4744
  %v4746 = vadd.f32 %v4745, 0.05243302
  %v4747 = vmul.f32 %v4740, %v4746
  %v4748 = vadd.f32 %v4747, 0.18741608
  %v4749 = vmul.f32 %v4740, %v4748
  %v4750 = vadd.f32 %v4749, 1.1283791
  %v4751 = vmul.f32 %v4567, %v4750
  %v4752 = vmul.f32 %v4740, 3.8918573e-05
  %v4753 = vadd.f32 %v4752, 0.001143296
  %v4754 = vmul.f32 %v4740, %v4753
  %v4755 = vadd.f32 %v4754, 0.014752088
  %v4756 = vmul.f32 %v4740, %v4755
  %v4757 = vadd.f32 %v4756, 0.112945676
  %v4758 = vmul.f32 %v4740, %v4757
  %v4759 = vadd.f32 %v4758, 0.4994258
  %v4760 = vmul.f32 %v4740, %v4759
  %v4761 = vadd.f32 %v4760, 1.0
  %v4762 = vrcp.pop %v4761
  %v4763 = vmul.f32 %v4761, %v4762
  %v4764 = vsub.f32 1.0, %v4763
  %v4765 = vmul.f32 %v4762, %v4764
  %v4766 = vadd.f32 %v4762, %v4765
  %vm4767 = vweird.f32 %v4761
  %vm4768 = vweird.f32 %v4762
  %vm4769 = vmor %vm4767, %vm4768
  %v4770 = vsel %vm4769, %v4762, %v4766
  %v4771 = vand.u32 2147483647, %v4761
  %vm4772 = vcmp.eq.f32.partialorder %v4771, 8.507059e+37
  %v4773 = vand.u32 %v4761, 2147483648
  %v4774 = vor.u32 1.1754944e-38, %v4773
  %v4775 = vsel %vm4772, %v4774, %v4770
  %v4776 = vmul.f32 %v4751, %v4775
  %v4777 = vmin.f32 %v4776, 1.0
  %v4778 = vmax.f32 %v4777, -1.0
  %v4779 = vmul.f32 %v4568, %v4568
  %v4780 = vmin.f32 16.0, %v4779
  %v4781 = vmul.f32 %v4780, 2.1237322e-06
  %v4782 = vadd.f32 %v4781, 0.00028619796
  %v4783 = vmul.f32 %v4780, %v4782
  %v4784 = vadd.f32 %v4783, 0.0036580483
  %v4785 = vmul.f32 %v4780, %v4784
  %v4786 = vadd.f32 %v4785, 0.05243302
  %v4787 = vmul.f32 %v4780, %v4786
  %v4788 = vadd.f32 %v4787, 0.18741608
  %v4789 = vmul.f32 %v4780, %v4788
  %v4790 = vadd.f32 %v4789, 1.1283791
  %v4791 = vmul.f32 %v4568, %v4790
  %v4792 = vmul.f32 %v4780, 3.8918573e-05
  %v4793 = vadd.f32 %v4792, 0.001143296
  %v4794 = vmul.f32 %v4780, %v4793
  %v4795 = vadd.f32 %v4794, 0.014752088
  %v4796 = vmul.f32 %v4780, %v4795
  %v4797 = vadd.f32 %v4796, 0.112945676
  %v4798 = vmul.f32 %v4780, %v4797
  %v4799 = vadd.f32 %v4798, 0.4994258
  %v4800 = vmul.f32 %v4780, %v4799
  %v4801 = vadd.f32 %v4800, 1.0
  %v4802 = vrcp.pop %v4801
  %v4803 = vmul.f32 %v4801, %v4802
  %v4804 = vsub.f32 1.0, %v4803
  %v4805 = vmul.f32 %v4802, %v4804
  %v4806 = vadd.f32 %v4802, %v4805
  %vm4807 = vweird.f32 %v4801
  %vm4808 = vweird.f32 %v4802
  %vm4809 = vmor %vm4807, %vm4808
  %v4810 = vsel %vm4809, %v4802, %v4806
  %v4811 = vand.u32 2147483647, %v4801
  %vm4812 = vcmp.eq.f32.partialorder %v4811, 8.507059e+37
  %v4813 = vand.u32 %v4801, 2147483648
  %v4814 = vor.u32 1.1754944e-38, %v4813
  %v4815 = vsel %vm4812, %v4814, %v4810
  %v4816 = vmul.f32 %v4791, %v4815
  %v4817 = vmin.f32 %v4816, 1.0
  %v4818 = vmax.f32 %v4817, -1.0
  %v4819 = vmul.f32 %v4569, %v4569
  %v4820 = vmin.f32 16.0, %v4819
  %v4821 = vmul.f32 %v4820, 2.1237322e-06
  %v4822 = vadd.f32 %v4821, 0.00028619796
  %v4823 = vmul.f32 %v4820, %v4822
  %v4824 = vadd.f32 %v4823, 0.0036580483
  %v4825 = vmul.f32 %v4820, %v4824
  %v4826 = vadd.f32 %v4825, 0.05243302
  %v4827 = vmul.f32 %v4820, %v4826
  %v4828 = vadd.f32 %v4827, 0.18741608
  %v4829 = vmul.f32 %v4820, %v4828
  %v4830 = vadd.f32 %v4829, 1.1283791
  %v4831 = vmul.f32 %v4569, %v4830
  %v4832 = vmul.f32 %v4820, 3.8918573e-05
  %v4833 = vadd.f32 %v4832, 0.001143296
  %v4834 = vmul.f32 %v4820, %v4833
  %v4835 = vadd.f32 %v4834, 0.014752088
  %v4836 = vmul.f32 %v4820, %v4835
  %v4837 = vadd.f32 %v4836, 0.112945676
  %v4838 = vmul.f32 %v4820, %v4837
  %v4839 = vadd.f32 %v4838, 0.4994258
  %v4840 = vmul.f32 %v4820, %v4839
  %v4841 = vadd.f32 %v4840, 1.0
  %v4842 = vrcp.pop %v4841
  %v4843 = vmul.f32 %v4841, %v4842
  %v4844 = vsub.f32 1.0, %v4843
  %v4845 = vmul.f32 %v4842, %v4844
  %v4846 = vadd.f32 %v4842, %v4845
  %vm4847 = vweird.f32 %v4841
  %vm4848 = vweird.f32 %v4842
  %vm4849 = vmor %vm4847, %vm4848
  %v4850 = vsel %vm4849, %v4842, %v4846
  %v4851 = vand.u32 2147483647, %v4841
  %vm4852 = vcmp.eq.f32.partialorder %v4851, 8.507059e+37
  %v4853 = vand.u32 %v4841, 2147483648
  %v4854 = vor.u32 1.1754944e-38, %v4853
  %v4855 = vsel %vm4852, %v4854, %v4850
  %v4856 = vmul.f32 %v4831, %v4855
  %v4857 = vmin.f32 %v4856, 1.0
  %v4858 = vmax.f32 %v4857, -1.0
  %v4859 = vmul.f32 %v4570, %v4570
  %v4860 = vmin.f32 16.0, %v4859
  %v4861 = vmul.f32 %v4860, 2.1237322e-06
  %v4862 = vadd.f32 %v4861, 0.00028619796
  %v4863 = vmul.f32 %v4860, %v4862
  %v4864 = vadd.f32 %v4863, 0.0036580483
  %v4865 = vmul.f32 %v4860, %v4864
  %v4866 = vadd.f32 %v4865, 0.05243302
  %v4867 = vmul.f32 %v4860, %v4866
  %v4868 = vadd.f32 %v4867, 0.18741608
  %v4869 = vmul.f32 %v4860, %v4868
  %v4870 = vadd.f32 %v4869, 1.1283791
  %v4871 = vmul.f32 %v4570, %v4870
  %v4872 = vmul.f32 %v4860, 3.8918573e-05
  %v4873 = vadd.f32 %v4872, 0.001143296
  %v4874 = vmul.f32 %v4860, %v4873
  %v4875 = vadd.f32 %v4874, 0.014752088
  %v4876 = vmul.f32 %v4860, %v4875
  %v4877 = vadd.f32 %v4876, 0.112945676
  %v4878 = vmul.f32 %v4860, %v4877
  %v4879 = vadd.f32 %v4878, 0.4994258
  %v4880 = vmul.f32 %v4860, %v4879
  %v4881 = vadd.f32 %v4880, 1.0
  %v4882 = vrcp.pop %v4881
  %v4883 = vmul.f32 %v4881, %v4882
  %v4884 = vsub.f32 1.0, %v4883
  %v4885 = vmul.f32 %v4882, %v4884
  %v4886 = vadd.f32 %v4882, %v4885
  %vm4887 = vweird.f32 %v4881
  %vm4888 = vweird.f32 %v4882
  %vm4889 = vmor %vm4887, %vm4888
  %v4890 = vsel %vm4889, %v4882, %v4886
  %v4891 = vand.u32 2147483647, %v4881
  %vm4892 = vcmp.eq.f32.partialorder %v4891, 8.507059e+37
  %v4893 = vand.u32 %v4881, 2147483648
  %v4894 = vor.u32 1.1754944e-38, %v4893
  %v4895 = vsel %vm4892, %v4894, %v4890
  %v4896 = vmul.f32 %v4871, %v4895
  %v4897 = vmin.f32 %v4896, 1.0
  %v4898 = vmax.f32 %v4897, -1.0
  %v4899 = vmul.f32 %v4571, %v4571
  %v4900 = vmin.f32 16.0, %v4899
  %v4901 = vmul.f32 %v4900, 2.1237322e-06
  %v4902 = vadd.f32 %v4901, 0.00028619796
  %v4903 = vmul.f32 %v4900, %v4902
  %v4904 = vadd.f32 %v4903, 0.0036580483
  %v4905 = vmul.f32 %v4900, %v4904
  %v4906 = vadd.f32 %v4905, 0.05243302
  %v4907 = vmul.f32 %v4900, %v4906
  %v4908 = vadd.f32 %v4907, 0.18741608
  %v4909 = vmul.f32 %v4900, %v4908
  %v4910 = vadd.f32 %v4909, 1.1283791
  %v4911 = vmul.f32 %v4571, %v4910
  %v4912 = vmul.f32 %v4900, 3.8918573e-05
  %v4913 = vadd.f32 %v4912, 0.001143296
  %v4914 = vmul.f32 %v4900, %v4913
  %v4915 = vadd.f32 %v4914, 0.014752088
  %v4916 = vmul.f32 %v4900, %v4915
  %v4917 = vadd.f32 %v4916, 0.112945676
  %v4918 = vmul.f32 %v4900, %v4917
  %v4919 = vadd.f32 %v4918, 0.4994258
  %v4920 = vmul.f32 %v4900, %v4919
  %v4921 = vadd.f32 %v4920, 1.0
  %v4922 = vrcp.pop %v4921
  %v4923 = vmul.f32 %v4921, %v4922
  %v4924 = vsub.f32 1.0, %v4923
  %v4925 = vmul.f32 %v4922, %v4924
  %v4926 = vadd.f32 %v4922, %v4925
  %vm4927 = vweird.f32 %v4921
  %vm4928 = vweird.f32 %v4922
  %vm4929 = vmor %vm4927, %vm4928
  %v4930 = vsel %vm4929, %v4922, %v4926
  %v4931 = vand.u32 2147483647, %v4921
  %vm4932 = vcmp.eq.f32.partialorder %v4931, 8.507059e+37
  %v4933 = vand.u32 %v4921, 2147483648
  %v4934 = vor.u32 1.1754944e-38, %v4933
  %v4935 = vsel %vm4932, %v4934, %v4930
  %v4936 = vmul.f32 %v4911, %v4935
  %v4937 = vmin.f32 %v4936, 1.0
  %v4938 = vmax.f32 %v4937, -1.0
  %v4939 = vmul.f32 %v4572, %v4572
  %v4940 = vmin.f32 16.0, %v4939
  %v4941 = vmul.f32 %v4940, 2.1237322e-06
  %v4942 = vadd.f32 %v4941, 0.00028619796
  %v4943 = vmul.f32 %v4940, %v4942
  %v4944 = vadd.f32 %v4943, 0.0036580483
  %v4945 = vmul.f32 %v4940, %v4944
  %v4946 = vadd.f32 %v4945, 0.05243302
  %v4947 = vmul.f32 %v4940, %v4946
  %v4948 = vadd.f32 %v4947, 0.18741608
  %v4949 = vmul.f32 %v4940, %v4948
  %v4950 = vadd.f32 %v4949, 1.1283791
  %v4951 = vmul.f32 %v4572, %v4950
  %v4952 = vmul.f32 %v4940, 3.8918573e-05
  %v4953 = vadd.f32 %v4952, 0.001143296
  %v4954 = vmul.f32 %v4940, %v4953
  %v4955 = vadd.f32 %v4954, 0.014752088
  %v4956 = vmul.f32 %v4940, %v4955
  %v4957 = vadd.f32 %v4956, 0.112945676
  %v4958 = vmul.f32 %v4940, %v4957
  %v4959 = vadd.f32 %v4958, 0.4994258
  %v4960 = vmul.f32 %v4940, %v4959
  %v4961 = vadd.f32 %v4960, 1.0
  %v4962 = vrcp.pop %v4961
  %v4963 = vmul.f32 %v4961, %v4962
  %v4964 = vsub.f32 1.0, %v4963
  %v4965 = vmul.f32 %v4962, %v4964
  %v4966 = vadd.f32 %v4962, %v4965
  %vm4967 = vweird.f32 %v4961
  %vm4968 = vweird.f32 %v4962
  %vm4969 = vmor %vm4967, %vm4968
  %v4970 = vsel %vm4969, %v4962, %v4966
  %v4971 = vand.u32 2147483647, %v4961
  %vm4972 = vcmp.eq.f32.partialorder %v4971, 8.507059e+37
  %v4973 = vand.u32 %v4961, 2147483648
  %v4974 = vor.u32 1.1754944e-38, %v4973
  %v4975 = vsel %vm4972, %v4974, %v4970
  %v4976 = vmul.f32 %v4951, %v4975
  %v4977 = vmin.f32 %v4976, 1.0
  %v4978 = vmax.f32 %v4977, -1.0
  %v4979 = vmul.f32 %v4573, %v4573
  %v4980 = vmin.f32 16.0, %v4979
  %v4981 = vmul.f32 %v4980, 2.1237322e-06
  %v4982 = vadd.f32 %v4981, 0.00028619796
  %v4983 = vmul.f32 %v4980, %v4982
  %v4984 = vadd.f32 %v4983, 0.0036580483
  %v4985 = vmul.f32 %v4980, %v4984
  %v4986 = vadd.f32 %v4985, 0.05243302
  %v4987 = vmul.f32 %v4980, %v4986
  %v4988 = vadd.f32 %v4987, 0.18741608
  %v4989 = vmul.f32 %v4980, %v4988
  %v4990 = vadd.f32 %v4989, 1.1283791
  %v4991 = vmul.f32 %v4573, %v4990
  %v4992 = vmul.f32 %v4980, 3.8918573e-05
  %v4993 = vadd.f32 %v4992, 0.001143296
  %v4994 = vmul.f32 %v4980, %v4993
  %v4995 = vadd.f32 %v4994, 0.014752088
  %v4996 = vmul.f32 %v4980, %v4995
  %v4997 = vadd.f32 %v4996, 0.112945676
  %v4998 = vmul.f32 %v4980, %v4997
  %v4999 = vadd.f32 %v4998, 0.4994258
  %v5000 = vmul.f32 %v4980, %v4999
  %v5001 = vadd.f32 %v5000, 1.0
  %v5002 = vrcp.pop %v5001
  %v5003 = vmul.f32 %v5001, %v5002
  %v5004 = vsub.f32 1.0, %v5003
  %v5005 = vmul.f32 %v5002, %v5004
  %v5006 = vadd.f32 %v5002, %v5005
  %vm5007 = vweird.f32 %v5001
  %vm5008 = vweird.f32 %v5002
  %vm5009 = vmor %vm5007, %vm5008
  %v5010 = vsel %vm5009, %v5002, %v5006
  %v5011 = vand.u32 2147483647, %v5001
  %vm5012 = vcmp.eq.f32.partialorder %v5011, 8.507059e+37
  %v5013 = vand.u32 %v5001, 2147483648
  %v5014 = vor.u32 1.1754944e-38, %v5013
  %v5015 = vsel %vm5012, %v5014, %v5010
  %v5016 = vmul.f32 %v4991, %v5015
  %v5017 = vmin.f32 %v5016, 1.0
  %v5018 = vmax.f32 %v5017, -1.0
  %v5019 = vmul.f32 %v4574, %v4574
  %v5020 = vmin.f32 16.0, %v5019
  %v5021 = vmul.f32 %v5020, 2.1237322e-06
  %v5022 = vadd.f32 %v5021, 0.00028619796
  %v5023 = vmul.f32 %v5020, %v5022
  %v5024 = vadd.f32 %v5023, 0.0036580483
  %v5025 = vmul.f32 %v5020, %v5024
  %v5026 = vadd.f32 %v5025, 0.05243302
  %v5027 = vmul.f32 %v5020, %v5026
  %v5028 = vadd.f32 %v5027, 0.18741608
  %v5029 = vmul.f32 %v5020, %v5028
  %v5030 = vadd.f32 %v5029, 1.1283791
  %v5031 = vmul.f32 %v4574, %v5030
  %v5032 = vmul.f32 %v5020, 3.8918573e-05
  %v5033 = vadd.f32 %v5032, 0.001143296
  %v5034 = vmul.f32 %v5020, %v5033
  %v5035 = vadd.f32 %v5034, 0.014752088
  %v5036 = vmul.f32 %v5020, %v5035
  %v5037 = vadd.f32 %v5036, 0.112945676
  %v5038 = vmul.f32 %v5020, %v5037
  %v5039 = vadd.f32 %v5038, 0.4994258
  %v5040 = vmul.f32 %v5020, %v5039
  %v5041 = vadd.f32 %v5040, 1.0
  %v5042 = vrcp.pop %v5041
  %v5043 = vmul.f32 %v5041, %v5042
  %v5044 = vsub.f32 1.0, %v5043
  %v5045 = vmul.f32 %v5042, %v5044
  %v5046 = vadd.f32 %v5042, %v5045
  %vm5047 = vweird.f32 %v5041
  %vm5048 = vweird.f32 %v5042
  %vm5049 = vmor %vm5047, %vm5048
  %v5050 = vsel %vm5049, %v5042, %v5046
  %v5051 = vand.u32 2147483647, %v5041
  %vm5052 = vcmp.eq.f32.partialorder %v5051, 8.507059e+37
  %v5053 = vand.u32 %v5041, 2147483648
  %v5054 = vor.u32 1.1754944e-38, %v5053
  %v5055 = vsel %vm5052, %v5054, %v5050
  %v5056 = vmul.f32 %v5031, %v5055
  %v5057 = vmin.f32 %v5056, 1.0
  %v5058 = vmax.f32 %v5057, -1.0
  %v5059 = vmul.f32 %v4575, %v4575
  %v5060 = vmin.f32 16.0, %v5059
  %v5061 = vmul.f32 %v5060, 2.1237322e-06
  %v5062 = vadd.f32 %v5061, 0.00028619796
  %v5063 = vmul.f32 %v5060, %v5062
  %v5064 = vadd.f32 %v5063, 0.0036580483
  %v5065 = vmul.f32 %v5060, %v5064
  %v5066 = vadd.f32 %v5065, 0.05243302
  %v5067 = vmul.f32 %v5060, %v5066
  %v5068 = vadd.f32 %v5067, 0.18741608
  %v5069 = vmul.f32 %v5060, %v5068
  %v5070 = vadd.f32 %v5069, 1.1283791
  %v5071 = vmul.f32 %v4575, %v5070
  %v5072 = vmul.f32 %v5060, 3.8918573e-05
  %v5073 = vadd.f32 %v5072, 0.001143296
  %v5074 = vmul.f32 %v5060, %v5073
  %v5075 = vadd.f32 %v5074, 0.014752088
  %v5076 = vmul.f32 %v5060, %v5075
  %v5077 = vadd.f32 %v5076, 0.112945676
  %v5078 = vmul.f32 %v5060, %v5077
  %v5079 = vadd.f32 %v5078, 0.4994258
  %v5080 = vmul.f32 %v5060, %v5079
  %v5081 = vadd.f32 %v5080, 1.0
  %v5082 = vrcp.pop %v5081
  %v5083 = vmul.f32 %v5081, %v5082
  %v5084 = vsub.f32 1.0, %v5083
  %v5085 = vmul.f32 %v5082, %v5084
  %v5086 = vadd.f32 %v5082, %v5085
  %vm5087 = vweird.f32 %v5081
  %vm5088 = vweird.f32 %v5082
  %vm5089 = vmor %vm5087, %vm5088
  %v5090 = vsel %vm5089, %v5082, %v5086
  %v5091 = vand.u32 2147483647, %v5081
  %vm5092 = vcmp.eq.f32.partialorder %v5091, 8.507059e+37
  %v5093 = vand.u32 %v5081, 2147483648
  %v5094 = vor.u32 1.1754944e-38, %v5093
  %v5095 = vsel %vm5092, %v5094, %v5090
  %v5096 = vmul.f32 %v5071, %v5095
  %v5097 = vmin.f32 %v5096, 1.0
  %v5098 = vmax.f32 %v5097, -1.0
  %v5099 = vmul.f32 %v4576, %v4576
  %v5100 = vmin.f32 16.0, %v5099
  %v5101 = vmul.f32 %v5100, 2.1237322e-06
  %v5102 = vadd.f32 %v5101, 0.00028619796
  %v5103 = vmul.f32 %v5100, %v5102
  %v5104 = vadd.f32 %v5103, 0.0036580483
  %v5105 = vmul.f32 %v5100, %v5104
  %v5106 = vadd.f32 %v5105, 0.05243302
  %v5107 = vmul.f32 %v5100, %v5106
  %v5108 = vadd.f32 %v5107, 0.18741608
  %v5109 = vmul.f32 %v5100, %v5108
  %v5110 = vadd.f32 %v5109, 1.1283791
  %v5111 = vmul.f32 %v4576, %v5110
  %v5112 = vmul.f32 %v5100, 3.8918573e-05
  %v5113 = vadd.f32 %v5112, 0.001143296
  %v5114 = vmul.f32 %v5100, %v5113
  %v5115 = vadd.f32 %v5114, 0.014752088
  %v5116 = vmul.f32 %v5100, %v5115
  %v5117 = vadd.f32 %v5116, 0.112945676
  %v5118 = vmul.f32 %v5100, %v5117
  %v5119 = vadd.f32 %v5118, 0.4994258
  %v5120 = vmul.f32 %v5100, %v5119
  %v5121 = vadd.f32 %v5120, 1.0
  %v5122 = vrcp.pop %v5121
  %v5123 = vmul.f32 %v5121, %v5122
  %v5124 = vsub.f32 1.0, %v5123
  %v5125 = vmul.f32 %v5122, %v5124
  %v5126 = vadd.f32 %v5122, %v5125
  %vm5127 = vweird.f32 %v5121
  %vm5128 = vweird.f32 %v5122
  %vm5129 = vmor %vm5127, %vm5128
  %v5130 = vsel %vm5129, %v5122, %v5126
  %v5131 = vand.u32 2147483647, %v5121
  %vm5132 = vcmp.eq.f32.partialorder %v5131, 8.507059e+37
  %v5133 = vand.u32 %v5121, 2147483648
  %v5134 = vor.u32 1.1754944e-38, %v5133
  %v5135 = vsel %vm5132, %v5134, %v5130
  %v5136 = vmul.f32 %v5111, %v5135
  %v5137 = vmin.f32 %v5136, 1.0
  %v5138 = vmax.f32 %v5137, -1.0
  %v5139 = vmul.f32 %v4577, %v4577
  %v5140 = vmin.f32 16.0, %v5139
  %v5141 = vmul.f32 %v5140, 2.1237322e-06
  %v5142 = vadd.f32 %v5141, 0.00028619796
  %v5143 = vmul.f32 %v5140, %v5142
  %v5144 = vadd.f32 %v5143, 0.0036580483
  %v5145 = vmul.f32 %v5140, %v5144
  %v5146 = vadd.f32 %v5145, 0.05243302
  %v5147 = vmul.f32 %v5140, %v5146
  %v5148 = vadd.f32 %v5147, 0.18741608
  %v5149 = vmul.f32 %v5140, %v5148
  %v5150 = vadd.f32 %v5149, 1.1283791
  %v5151 = vmul.f32 %v4577, %v5150
  %v5152 = vmul.f32 %v5140, 3.8918573e-05
  %v5153 = vadd.f32 %v5152, 0.001143296
  %v5154 = vmul.f32 %v5140, %v5153
  %v5155 = vadd.f32 %v5154, 0.014752088
  %v5156 = vmul.f32 %v5140, %v5155
  %v5157 = vadd.f32 %v5156, 0.112945676
  %v5158 = vmul.f32 %v5140, %v5157
  %v5159 = vadd.f32 %v5158, 0.4994258
  %v5160 = vmul.f32 %v5140, %v5159
  %v5161 = vadd.f32 %v5160, 1.0
  %v5162 = vrcp.pop %v5161
  %v5163 = vmul.f32 %v5161, %v5162
  %v5164 = vsub.f32 1.0, %v5163
  %v5165 = vmul.f32 %v5162, %v5164
  %v5166 = vadd.f32 %v5162, %v5165
  %vm5167 = vweird.f32 %v5161
  %vm5168 = vweird.f32 %v5162
  %vm5169 = vmor %vm5167, %vm5168
  %v5170 = vsel %vm5169, %v5162, %v5166
  %v5171 = vand.u32 2147483647, %v5161
  %vm5172 = vcmp.eq.f32.partialorder %v5171, 8.507059e+37
  %v5173 = vand.u32 %v5161, 2147483648
  %v5174 = vor.u32 1.1754944e-38, %v5173
  %v5175 = vsel %vm5172, %v5174, %v5170
  %v5176 = vmul.f32 %v5151, %v5175
  %v5177 = vmin.f32 %v5176, 1.0
  %v5178 = vmax.f32 %v5177, -1.0
  %v5179 = vmul.f32 %v4578, %v4578
  %v5180 = vmin.f32 16.0, %v5179
  %v5181 = vmul.f32 %v5180, 2.1237322e-06
  %v5182 = vadd.f32 %v5181, 0.00028619796
  %v5183 = vmul.f32 %v5180, %v5182
  %v5184 = vadd.f32 %v5183, 0.0036580483
  %v5185 = vmul.f32 %v5180, %v5184
  %v5186 = vadd.f32 %v5185, 0.05243302
  %v5187 = vmul.f32 %v5180, %v5186
  %v5188 = vadd.f32 %v5187, 0.18741608
  %v5189 = vmul.f32 %v5180, %v5188
  %v5190 = vadd.f32 %v5189, 1.1283791
  %v5191 = vmul.f32 %v4578, %v5190
  %v5192 = vmul.f32 %v5180, 3.8918573e-05
  %v5193 = vadd.f32 %v5192, 0.001143296
  %v5194 = vmul.f32 %v5180, %v5193
  %v5195 = vadd.f32 %v5194, 0.014752088
  %v5196 = vmul.f32 %v5180, %v5195
  %v5197 = vadd.f32 %v5196, 0.112945676
  %v5198 = vmul.f32 %v5180, %v5197
  %v5199 = vadd.f32 %v5198, 0.4994258
  %v5200 = vmul.f32 %v5180, %v5199
  %v5201 = vadd.f32 %v5200, 1.0
  %v5202 = vrcp.pop %v5201
  %v5203 = vmul.f32 %v5201, %v5202
  %v5204 = vsub.f32 1.0, %v5203
  %v5205 = vmul.f32 %v5202, %v5204
  %v5206 = vadd.f32 %v5202, %v5205
  %vm5207 = vweird.f32 %v5201
  %vm5208 = vweird.f32 %v5202
  %vm5209 = vmor %vm5207, %vm5208
  %v5210 = vsel %vm5209, %v5202, %v5206
  %v5211 = vand.u32 2147483647, %v5201
  %vm5212 = vcmp.eq.f32.partialorder %v5211, 8.507059e+37
  %v5213 = vand.u32 %v5201, 2147483648
  %v5214 = vor.u32 1.1754944e-38, %v5213
  %v5215 = vsel %vm5212, %v5214, %v5210
  %v5216 = vmul.f32 %v5191, %v5215
  %v5217 = vmin.f32 %v5216, 1.0
  %v5218 = vmax.f32 %v5217, -1.0
  %v5219 = vadd.f32 %v4618, 1.0
  %v5220 = vadd.f32 %v4658, 1.0
  %v5221 = vadd.f32 %v4698, 1.0
  %v5222 = vadd.f32 %v4738, 1.0
  %v5223 = vadd.f32 %v4778, 1.0
  %v5224 = vadd.f32 %v4818, 1.0
  %v5225 = vadd.f32 %v4858, 1.0
  %v5226 = vadd.f32 %v4898, 1.0
  %v5227 = vadd.f32 %v4938, 1.0
  %v5228 = vadd.f32 %v4978, 1.0
  %v5229 = vadd.f32 %v5018, 1.0
  %v5230 = vadd.f32 %v5058, 1.0
  %v5231 = vadd.f32 %v5098, 1.0
  %v5232 = vadd.f32 %v5138, 1.0
  %v5233 = vadd.f32 %v5178, 1.0
  %v5234 = vadd.f32 %v5218, 1.0
  %v5235 = vmul.f32 %v4547, %v5219
  %v5236 = vmul.f32 %v4548, %v5220
  %v5237 = vmul.f32 %v4549, %v5221
  %v5238 = vmul.f32 %v4550, %v5222
  %v5239 = vmul.f32 %v4551, %v5223
  %v5240 = vmul.f32 %v4552, %v5224
  %v5241 = vmul.f32 %v4553, %v5225
  %v5242 = vmul.f32 %v4554, %v5226
  %v5243 = vmul.f32 %v4555, %v5227
  %v5244 = vmul.f32 %v4556, %v5228
  %v5245 = vmul.f32 %v4557, %v5229
  %v5246 = vmul.f32 %v4558, %v5230
  %v5247 = vmul.f32 %v4559, %v5231
  %v5248 = vmul.f32 %v4560, %v5232
  %v5249 = vmul.f32 %v4561, %v5233
  %v5250 = vmul.f32 %v4562, %v5234
  %v5251 = vld [vmem:[%s11] sm:$0xff]
  %v5252 = vld [vmem:[%s11 + $0x8] sm:$0xff]
  %v5253 = vld [vmem:[%s11 + $0x10] sm:$0xff]
  %v5254 = vld [vmem:[%s11 + $0x18] sm:$0xff]
  %v5255 = vld [vmem:[%s11 + $0x20] sm:$0xff]
  %v5256 = vld [vmem:[%s11 + $0x28] sm:$0xff]
  %v5257 = vld [vmem:[%s11 + $0x30] sm:$0xff]
  %v5258 = vld [vmem:[%s11 + $0x38] sm:$0xff]
  %v5259 = vld [vmem:[%s11 + $0x40] sm:$0xff]
  %v5260 = vld [vmem:[%s11 + $0x48] sm:$0xff]
  %v5261 = vld [vmem:[%s11 + $0x50] sm:$0xff]
  %v5262 = vld [vmem:[%s11 + $0x58] sm:$0xff]
  %v5263 = vld [vmem:[%s11 + $0x60] sm:$0xff]
  %v5264 = vld [vmem:[%s11 + $0x68] sm:$0xff]
  %v5265 = vld [vmem:[%s11 + $0x70] sm:$0xff]
  %v5266 = vld [vmem:[%s11 + $0x78] sm:$0xff]
  %v5267 = vld [vmem:[%s12] sm:$0x1]
  %v5269 = vperm.slane %v5267, 0
  %5271 = vmatpush.msra.mxu0 %v5266
  %5272 = vmatpush.msra.mxu0 %v5265
  %5273 = vmatpush.msra.mxu0 %v5264
  %5274 = vmatpush.msra.mxu0 %v5263
  %5275 = vmatpush.msra.mxu0 %v5262
  %5276 = vmatpush.msra.mxu0 %v5261
  %5277 = vmatpush.msra.mxu0 %v5260
  %5278 = vmatpush.msra.mxu0 %v5259
  %5279 = vmatpush.msra.mxu0 %v5258
  %5280 = vmatpush.msra.mxu0 %v5257
  %5281 = vmatpush.msra.mxu0 %v5256
  %5282 = vmatpush.msra.mxu0 %v5255
  %5283 = vmatpush.msra.mxu0 %v5254
  %5284 = vmatpush.msra.mxu0 %v5253
  %5285 = vmatpush.msra.mxu0 %v5252
  %5286 = vmatpush.msra.mxu0 %v5251
  %5287 = vmatmul.f32.gmra.mxu0 %v5235
  %v5288 = vpop.f32.mrf.mxu0
  %v5289 = vadd.f32 %v5269, %v5288
  %5290 = vmatmul.f32.gmra.mxu0 %v5236
  %v5291 = vpop.f32.mrf.mxu0
  %v5292 = vadd.f32 %v5269, %v5291
  %5293 = vmatmul.f32.gmra.mxu0 %v5237
  %v5294 = vpop.f32.mrf.mxu0
  %v5295 = vadd.f32 %v5269, %v5294
  %5296 = vmatmul.f32.gmra.mxu0 %v5238
  %v5297 = vpop.f32.mrf.mxu0
  %v5298 = vadd.f32 %v5269, %v5297
  %5299 = vmatmul.f32.gmra.mxu0 %v5239
  %v5300 = vpop.f32.mrf.mxu0
  %v5301 = vadd.f32 %v5269, %v5300
  %5302 = vmatmul.f32.gmra.mxu0 %v5240
  %v5303 = vpop.f32.mrf.mxu0
  %v5304 = vadd.f32 %v5269, %v5303
  %5305 = vmatmul.f32.gmra.mxu0 %v5241
  %v5306 = vpop.f32.mrf.mxu0
  %v5307 = vadd.f32 %v5269, %v5306
  %5308 = vmatmul.f32.gmra.mxu0 %v5242
  %v5309 = vpop.f32.mrf.mxu0
  %v5310 = vadd.f32 %v5269, %v5309
  %5311 = vmatmul.f32.gmra.mxu0 %v5243
  %v5312 = vpop.f32.mrf.mxu0
  %v5313 = vadd.f32 %v5269, %v5312
  %5314 = vmatmul.f32.gmra.mxu0 %v5244
  %v5315 = vpop.f32.mrf.mxu0
  %v5316 = vadd.f32 %v5269, %v5315
  %5317 = vmatmul.f32.gmra.mxu0 %v5245
  %v5318 = vpop.f32.mrf.mxu0
  %v5319 = vadd.f32 %v5269, %v5318
  %5320 = vmatmul.f32.gmra.mxu0 %v5246
  %v5321 = vpop.f32.mrf.mxu0
  %v5322 = vadd.f32 %v5269, %v5321
  %5323 = vmatmul.f32.gmra.mxu0 %v5247
  %v5324 = vpop.f32.mrf.mxu0
  %v5325 = vadd.f32 %v5269, %v5324
  %5326 = vmatmul.f32.gmra.mxu0 %v5248
  %v5327 = vpop.f32.mrf.mxu0
  %v5328 = vadd.f32 %v5269, %v5327
  %5329 = vmatmul.f32.gmra.mxu0 %v5249
  %v5330 = vpop.f32.mrf.mxu0
  %v5331 = vadd.f32 %v5269, %v5330
  %5332 = vmatmul.f32.gmra.mxu0 %v5250
  %v5333 = vpop.f32.mrf.mxu0
  %v5334 = vadd.f32 %v5269, %v5333
  %5335 = vdwg.mxu0
  %v5336 = vadd.f32 %v4018, %v5289
  %v5337 = vadd.f32 %v4019, %v5292
  %v5338 = vadd.f32 %v4020, %v5295
  %v5339 = vadd.f32 %v4021, %v5298
  %v5340 = vadd.f32 %v4022, %v5301
  %v5341 = vadd.f32 %v4023, %v5304
  %v5342 = vadd.f32 %v4024, %v5307
  %v5343 = vadd.f32 %v4025, %v5310
  %v5344 = vadd.f32 %v4026, %v5313
  %v5345 = vadd.f32 %v4027, %v5316
  %v5346 = vadd.f32 %v4028, %v5319
  %v5347 = vadd.f32 %v4029, %v5322
  %v5348 = vadd.f32 %v4030, %v5325
  %v5349 = vadd.f32 %v4031, %v5328
  %v5350 = vadd.f32 %v4032, %v5331
  %v5351 = vadd.f32 %v4033, %v5334
  %5352 = vst.msk [vmem:[%s13] sm:$0xff] %vm62, %v5336
  %5353 = vst.msk [vmem:[%s13 + $0x8] sm:$0xff] %vm62, %v5337
  %5354 = vst.msk [vmem:[%s13 + $0x10] sm:$0xff] %vm62, %v5338
  %5355 = vst.msk [vmem:[%s13 + $0x18] sm:$0xff] %vm62, %v5339
  %5356 = vst.msk [vmem:[%s13 + $0x20] sm:$0xff] %vm62, %v5340
  %5357 = vst.msk [vmem:[%s13 + $0x28] sm:$0xff] %vm62, %v5341
  %5358 = vst.msk [vmem:[%s13 + $0x30] sm:$0xff] %vm62, %v5342
  %5359 = vst.msk [vmem:[%s13 + $0x38] sm:$0xff] %vm62, %v5343
  %5360 = vst.msk [vmem:[%s13 + $0x40] sm:$0xff] %vm62, %v5344
  %5361 = vst.msk [vmem:[%s13 + $0x48] sm:$0xff] %vm62, %v5345
  %5362 = vst.msk [vmem:[%s13 + $0x50] sm:$0xff] %vm62, %v5346
  %5363 = vst.msk [vmem:[%s13 + $0x58] sm:$0xff] %vm62, %v5347
  %5364 = vst.msk [vmem:[%s13 + $0x60] sm:$0xff] %vm62, %v5348
  %5365 = vst.msk [vmem:[%s13 + $0x68] sm:$0xff] %vm62, %v5349
  %5366 = vst.msk [vmem:[%s13 + $0x70] sm:$0xff] %vm62, %v5350
  %5367 = vst.msk [vmem:[%s13 + $0x78] sm:$0xff] %vm62, %v5351
  // Predicated region
  $region54: #{tpu_custom_call.1} parent=0 // pred_check
    _
  $region55: #{tpu_custom_call.1} parent=0 // pred_check_branch
    %5369 = sbr.rel (0) target = $region57
  $region56: #{tpu_custom_call.1} parent=0 // pred_region
    _
  $region57: #{tpu_custom_call.1} parent=0 // pred_fallthru
    _
  // Predicated region
  $region58: #{tpu_custom_call.1} parent=0 // pred_check
    _
  $region59: #{tpu_custom_call.1} parent=0 // pred_check_branch
    %5371 = sbr.rel (0) target = $region61
  $region60: #{tpu_custom_call.1} parent=0 // pred_region
    _
  $region61: #{tpu_custom_call.1} parent=0 // pred_fallthru
    _

</llo_original>
